<compile_context>
chip_gen: v6e
topology: v6e:2x2x1
jax: 0.10.0
libtpu: 0.0.40
codegen_flags: <defaults>
</compile_context>

<pallas_src>
import functools

import jax
import jax.numpy as jnp
from jax import lax
from jax.experimental import pallas as pl
from jax.experimental.pallas import tpu as pltpu


# ----------------------------------------------------------------------------
# Fused forward kernel: bt batch elements per grid step, all weights in VMEM.
# ----------------------------------------------------------------------------
def _decoder_kernel(
    a_ref, wflat_ref, posb_ref,
    wq_ref, bq_ref, wk_ref, bk_ref, wv_ref, bv_ref, wo_ref, bo_ref,
    ffw1_ref, ffb1_ref, ffw2_ref, ffb2_ref,
    n1a_ref, n1b_ref, n2a_ref, n2b_ref,
    debw_ref, debb_ref,
    out_ref, scores_ref,
    *, n_layers, heads, seq, emb, bt, eps, normalize):
    dk = emb // heads
    scale = float(dk) ** -0.5            # Python float: jit-safe, no device math
    inv_dm1 = 1.0 / float(emb - 1)

    # ---- bottleneck Linear(latent, S*E) as ONE full-M matmul ----------------
    # a_ref holds the block-expanded latent (bt*S, S*lat): row (b, s) contains
    # z[b] in columns [s*lat, (s+1)*lat) and zeros elsewhere, so a single
    # matmul with the (S*lat, E)-packed weight yields all (b, s) rows at once.
    # posb_ref already holds nec2vec bias + positional embedding per row.
    y = (jnp.dot(a_ref[...], wflat_ref[...],
                 preferred_element_type=jnp.float32) + posb_ref[...])   # (M, E)

    def norm(x, alpha, bias):
        # PyTorch Norm: alpha * (x - mean) / (std_unbiased + eps) + bias
        mean = jnp.mean(x, axis=-1, keepdims=True)
        var = jnp.sum((x - mean) ** 2, axis=-1, keepdims=True) * inv_dm1
        inv = pl.reciprocal(jnp.sqrt(var) + eps, approx=True)
        return alpha * (x - mean) * inv + bias

    score_tiles = []   # (S, S) softmax tiles, order: layer -> batch -> head

    # ---- N encoder layers (static unroll; N is tiny here). ------------------
    # For much larger N, switch to lax.fori_loop over stacked weight refs to
    # bound live ranges.
    for l in range(n_layers):
        x2 = norm(y, n1a_ref[l], n1b_ref[l]) if normalize else y

        # Full-width projections: one (M, E) @ (E, E) matmul each.
        q = jnp.dot(x2, wq_ref[l], preferred_element_type=jnp.float32) + bq_ref[l]
        k = jnp.dot(x2, wk_ref[l], preferred_element_type=jnp.float32) + bk_ref[l]
        v = jnp.dot(x2, wv_ref[l], preferred_element_type=jnp.float32) + bv_ref[l]

        o_batches = []
        for bi in range(bt):             # attention is per batch element
            r0 = bi * seq
            head_outs = []
            for h in range(heads):
                c0 = h * dk
                qh = q[r0:r0 + seq, c0:c0 + dk]
                kh = k[r0:r0 + seq, c0:c0 + dk]
                vh = v[r0:r0 + seq, c0:c0 + dk]
                sc = lax.dot_general(                 # (S, S) = Q K^T
                    qh, kh, (((1,), (1,)), ((), ())),
                    preferred_element_type=jnp.float32) * scale
                m = jnp.max(sc, axis=-1, keepdims=True)
                ex = jnp.exp(sc - m)
                p = ex * pl.reciprocal(jnp.sum(ex, axis=-1, keepdims=True),
                                       approx=True)
                score_tiles.append(p)
                head_outs.append(jnp.dot(p, vh,
                                         preferred_element_type=jnp.float32))
            o_batches.append(head_outs[0] if heads == 1
                             else jnp.concatenate(head_outs, axis=1))
        o_cat = o_batches[0] if bt == 1 else jnp.concatenate(o_batches, axis=0)

        # Output projection: one (M, E) @ (E, E) matmul.
        y = y + jnp.dot(o_cat, wo_ref[l],
                        preferred_element_type=jnp.float32) + bo_ref[l]
        # TODO(synk): dropout layers omitted (forward reproduced in eval mode).

        x2 = norm(y, n2a_ref[l], n2b_ref[l]) if normalize else y
        h1 = jnp.maximum(
            jnp.dot(x2, ffw1_ref[l], preferred_element_type=jnp.float32)
            + ffb1_ref[l], 0.0)
        y = y + jnp.dot(h1, ffw2_ref[l],
                        preferred_element_type=jnp.float32) + ffb2_ref[l]

    # ---- lane-dense scores slab: one wide store per grid step ---------------
    scores_ref[0] = (score_tiles[0] if len(score_tiles) == 1
                     else jnp.concatenate(score_tiles, axis=1))

    # ---- Debedder Linear(E, 1) as a single lane-dense (1, M) row ------------
    row = lax.dot_general(debw_ref[...], y, (((1,), (1,)), ((), ())),
                          preferred_element_type=jnp.float32)      # (1, M)
    out_ref[0] = row + debb_ref[...]


def _const_spec(shape):
    """Full-array block that is identical for every grid step."""
    nd = len(shape)
    return pl.BlockSpec(tuple(shape), lambda i, _nd=nd: (0,) * _nd)


# ----------------------------------------------------------------------------
# Wrapper: parameter packing (done once) + single pallas_call per forward.
# ----------------------------------------------------------------------------
def pack_params(params, cfg):
    """Pack per-layer parameter dicts into stacked VMEM-friendly layouts."""
    s, e = cfg["max_seq_len"], cfg["embed_dim"]
    lat = cfg["latent_dim"]
    layers = params["layers"]

    packed = {
        # (lat, S*E) -> (S*lat, E): column s*E+e of the original weight lands
        # at row s*lat+k, matching the block-expanded latent layout.
        "wflat": params["nec2vec_w"].reshape(lat, s, e)
                                    .transpose(1, 0, 2).reshape(s * lat, e),
        # nec2vec bias + positional embedding, per sequence position.
        "posb": params["nec2vec_b"].reshape(s, e) + params["pos_emb"],
        "debw": params["deb_w"].reshape(1, e),
        "debb": params["deb_b"].reshape(1, 1),
        "wq": jnp.stack([lp["wq"] for lp in layers]),
        "bq": jnp.stack([lp["bq"].reshape(1, e) for lp in layers]),
        "wk": jnp.stack([lp["wk"] for lp in layers]),
        "bk": jnp.stack([lp["bk"].reshape(1, e) for lp in layers]),
        "wv": jnp.stack([lp["wv"] for lp in layers]),
        "bv": jnp.stack([lp["bv"].reshape(1, e) for lp in layers]),
        "wo": jnp.stack([lp["wo"] for lp in layers]),
        "bo": jnp.stack([lp["bo"].reshape(1, e) for lp in layers]),
        "ffw1": jnp.stack([lp["ff_w1"] for lp in layers]),
        "ffb1": jnp.stack([lp["ff_b1"].reshape(1, -1) for lp in layers]),
        "ffw2": jnp.stack([lp["ff_w2"] for lp in layers]),
        "ffb2": jnp.stack([lp["ff_b2"].reshape(1, -1) for lp in layers]),
        "n1a": jnp.stack([lp["n1_alpha"].reshape(1, e) for lp in layers]),
        "n1b": jnp.stack([lp["n1_bias"].reshape(1, e) for lp in layers]),
        "n2a": jnp.stack([lp["n2_alpha"].reshape(1, e) for lp in layers]),
        "n2b": jnp.stack([lp["n2_bias"].reshape(1, e) for lp in layers]),
    }
    return packed


_WEIGHT_ORDER = ("wflat", "posb",
                 "wq", "bq", "wk", "bk", "wv", "bv", "wo", "bo",
                 "ffw1", "ffb1", "ffw2", "ffb2",
                 "n1a", "n1b", "n2a", "n2b", "debw", "debb")


def decoder_transformer_forward(z, packed, cfg):
    b = z.shape[0]
    s, e = cfg["max_seq_len"], cfg["embed_dim"]
    n, heads = cfg["N"], cfg["heads"]
    lat = cfg["latent_dim"]

    # Fold the whole batch into one grid step (maximal M) for small batches;
    # use 2 parallel steps (one per TensorCore on v7x) for larger even batches.
    n_blocks = 2 if (b >= 4 and b % 2 == 0) else 1
    bt = b // n_blocks
    m = bt * s                      # matmul M rows per grid step
    w_sc = n * bt * heads * s       # lane width of the scores slab

    # Block-expanded latent (layout plumbing only, no arithmetic): row (b, s)
    # carries z[b] in columns [s*lat, (s+1)*lat).  One in-kernel matmul with
    # the (S*lat, E) weight then produces every (b, s) embedding row.
    eye = jnp.eye(s, dtype=z.dtype)                                   # (S, S)
    a_exp = (eye[None, :, :, None] * z[:, None, None, :]).reshape(b * s, s * lat)

    posb_rep = jnp.tile(packed["posb"], (bt, 1))                      # (M, E)

    kernel = functools.partial(
        _decoder_kernel, n_layers=n, heads=heads, seq=s, emb=e, bt=bt,
        eps=1e-6, normalize=cfg["normalize"])

    weights = [posb_rep if k == "posb" else packed[k] for k in _WEIGHT_ORDER]

    in_specs = [pl.BlockSpec((m, s * lat), lambda i: (i, 0))]
    # Constant weights (<1 MiB total) stay resident in VMEM for all steps.
    in_specs += [_const_spec(w.shape) for w in weights]

    out, scores = pl.pallas_call(
        kernel,
        grid=(n_blocks,),
        in_specs=in_specs,
        out_specs=(
            pl.BlockSpec((1, 1, m), lambda i: (i, 0, 0)),       # lane-dense row
            pl.BlockSpec((1, s, w_sc), lambda i: (i, 0, 0)),    # lane-dense slab
        ),
        out_shape=(
            jax.ShapeDtypeStruct((n_blocks, 1, m), jnp.float32),
            jax.ShapeDtypeStruct((n_blocks, s, w_sc), jnp.float32),
        ),
        compiler_params=pltpu.CompilerParams(
            dimension_semantics=("parallel",)),     # v7x: blocks across both TCs
    )(a_exp, *weights)

    # Wrapper-side layout plumbing back to the module's output shapes.
    y_out = out.reshape(b, s)
    sc = scores.reshape(n_blocks, s, n, bt, heads, s)    # (blk, q, l, bi, h, k)
    sc = jnp.transpose(sc, (0, 3, 2, 4, 1, 5))           # (blk, bi, l, h, q, k)
    sc = sc.reshape(b, n, heads, s, s)
    attn_scores = [sc[:, l] for l in range(n)]
    return y_out, attn_scores


# ----------------------------------------------------------------------------
# Pure-JAX reference (for a sanity check) and deterministic parameter init.
# ----------------------------------------------------------------------------
def _reference_forward(z, params, cfg):
    s, e, heads, n = (cfg["max_seq_len"], cfg["embed_dim"],
                      cfg["heads"], cfg["N"])
    dk = e // heads
    b = z.shape[0]
    hp = lax.Precision.HIGHEST

    def dense(x, w, bias):
        return jnp.dot(x, w, precision=hp) + bias

    def norm_fn(x, alpha, bias, eps=1e-6):
        mean = jnp.mean(x, axis=-1, keepdims=True)
        var = jnp.sum((x - mean) ** 2, axis=-1, keepdims=True) / (e - 1)
        return alpha * (x - mean) / (jnp.sqrt(var) + eps) + bias

    y = dense(z, params["nec2vec_w"], params["nec2vec_b"]).reshape(b, s, e)
    y = y + params["pos_emb"][None]
    scores_all = []
    for lp in params["layers"]:
        x2 = norm_fn(y, lp["n1_alpha"], lp["n1_bias"]) if cfg["normalize"] else y
        def split(t):
            return t.reshape(b, s, heads, dk).transpose(0, 2, 1, 3)
        q = split(dense(x2, lp["wq"], lp["bq"]))
        k = split(dense(x2, lp["wk"], lp["bk"]))
        v = split(dense(x2, lp["wv"], lp["bv"]))
        sc = jnp.einsum("bhqd,bhkd->bhqk", q, k, precision=hp) / (dk ** 0.5)
        p = jax.nn.softmax(sc, axis=-1)
        o = jnp.einsum("bhqk,bhkd->bhqd", p, v, precision=hp)
        o = o.transpose(0, 2, 1, 3).reshape(b, s, e)
        y = y + dense(o, lp["wo"], lp["bo"])
        x2 = norm_fn(y, lp["n2_alpha"], lp["n2_bias"]) if cfg["normalize"] else y
        h1 = jax.nn.relu(dense(x2, lp["ff_w1"], lp["ff_b1"]))
        y = y + dense(h1, lp["ff_w2"], lp["ff_b2"])
        scores_all.append(p)
    out = dense(y, params["deb_w"], params["deb_b"])[..., 0]
    return out, scores_all


def init_params(key, cfg):
    s, e = cfg["max_seq_len"], cfg["embed_dim"]
    dff, lat, n = cfg["d_ff"], cfg["latent_dim"], cfg["N"]

    def dense(k, fan_in, fan_out):
        kw, kb = jax.random.split(k)
        scale = 1.0 / (fan_in ** 0.5)
        w = jax.random.uniform(kw, (fan_in, fan_out), jnp.float32, -scale, scale)
        bias = jax.random.uniform(kb, (fan_out,), jnp.float32, -scale, scale)
        return w, bias

    keys = jax.random.split(key, 3 + n)
    params = {}
    params["nec2vec_w"], params["nec2vec_b"] = dense(keys[0], lat, e * s)
    params["pos_emb"] = 0.02 * jax.random.normal(keys[1], (s, e), jnp.float32)
    params["deb_w"], params["deb_b"] = dense(keys[2], e, 1)

    layers = []
    for i in range(n):
        lk = jax.random.split(keys[3 + i], 6)
        lp = {}
        lp["wq"], lp["bq"] = dense(lk[0], e, e)
        lp["wk"], lp["bk"] = dense(lk[1], e, e)
        lp["wv"], lp["bv"] = dense(lk[2], e, e)
        lp["wo"], lp["bo"] = dense(lk[3], e, e)
        lp["ff_w1"], lp["ff_b1"] = dense(lk[4], e, dff)
        lp["ff_w2"], lp["ff_b2"] = dense(lk[5], dff, e)
        lp["n1_alpha"] = jnp.ones((e,), jnp.float32)
        lp["n1_bias"] = jnp.zeros((e,), jnp.float32)
        lp["n2_alpha"] = jnp.ones((e,), jnp.float32)
        lp["n2_bias"] = jnp.zeros((e,), jnp.float32)
        layers.append(lp)
    params["layers"] = layers
    return params


# ----------------------------------------------------------------------------
if __name__ == "__main__":
    cfg = {
        "N": 2,                 # model::N_attention_blocks
        "input_dim": 8,         # model::i_dim  (== max_seq_len, 'weight' encoding)
        "max_seq_len": 8,
        "embed_dim": 32,        # model::dim_attention_embedding
        "heads": 2,             # model::N_attention_heads
        "d_ff": 64,             # model::attention_hidden_dim
        "latent_dim": 16,       # model::latent_dim
        "normalize": True,      # model::normalize
    }

    key = jax.random.PRNGKey(0)
    pkey, zkey = jax.random.split(key)
    params = init_params(pkey, cfg)
    packed = pack_params(params, cfg)

    batch = 2
    z = jax.random.normal(zkey, (batch, cfg["latent_dim"]), jnp.float32)

    fwd = jax.jit(functools.partial(decoder_transformer_forward, cfg=cfg))
    y, attn_scores = fwd(z, packed)
    jax.block_until_ready(y)
    for sc in attn_scores:
        jax.block_until_ready(sc)

    assert y.shape == (batch, cfg["max_seq_len"])
    assert len(attn_scores) == cfg["N"]
    assert attn_scores[0].shape == (batch, cfg["heads"],
                                    cfg["max_seq_len"], cfg["max_seq_len"])

    # sanity check against a pure-JAX reference of the same forward
    y_ref, scores_ref = _reference_forward(z, params, cfg)
    assert jnp.allclose(y, y_ref, rtol=5e-2, atol=5e-2)
    for a, r in zip(attn_scores, scores_ref):
        assert jnp.allclose(a, r, rtol=5e-2, atol=5e-2)

    print("KERNEL_OK")
</pallas_src>

<mosaic_0001>
module attributes {stable_mosaic.version = 11 : i64} {
  func.func @_decoder_kernel(%arg0: i32, %arg1: memref<16x128xf32, #tpu.memory_space<vmem>>, %arg2: memref<128x32xf32, #tpu.memory_space<vmem>>, %arg3: memref<16x32xf32, #tpu.memory_space<vmem>>, %arg4: memref<2x32x32xf32, #tpu.memory_space<vmem>>, %arg5: memref<2x1x32xf32, #tpu.memory_space<vmem>>, %arg6: memref<2x32x32xf32, #tpu.memory_space<vmem>>, %arg7: memref<2x1x32xf32, #tpu.memory_space<vmem>>, %arg8: memref<2x32x32xf32, #tpu.memory_space<vmem>>, %arg9: memref<2x1x32xf32, #tpu.memory_space<vmem>>, %arg10: memref<2x32x32xf32, #tpu.memory_space<vmem>>, %arg11: memref<2x1x32xf32, #tpu.memory_space<vmem>>, %arg12: memref<2x32x64xf32, #tpu.memory_space<vmem>>, %arg13: memref<2x1x64xf32, #tpu.memory_space<vmem>>, %arg14: memref<2x64x32xf32, #tpu.memory_space<vmem>>, %arg15: memref<2x1x32xf32, #tpu.memory_space<vmem>>, %arg16: memref<2x1x32xf32, #tpu.memory_space<vmem>>, %arg17: memref<2x1x32xf32, #tpu.memory_space<vmem>>, %arg18: memref<2x1x32xf32, #tpu.memory_space<vmem>>, %arg19: memref<2x1x32xf32, #tpu.memory_space<vmem>>, %arg20: memref<1x32xf32, #tpu.memory_space<vmem>>, %arg21: memref<1x1xf32, #tpu.memory_space<vmem>>, %arg22: memref<1x1x16xf32, #tpu.memory_space<vmem>>, %arg23: memref<1x8x64xf32, #tpu.memory_space<vmem>>) attributes {dimension_semantics = [#tpu.dimension_semantics<parallel>], iteration_bounds = array<i64: 1>, scalar_prefetch = 0 : i64, scratch_operands = 0 : i64, tpu.core_type = #tpu.core_type<tc>, window_params = [{transform_indices = @transform_0, window_bounds = array<i64: 16, 128>}, {pipeline_mode = #tpu.pipeline_mode<synchronous>, transform_indices = @transform_1, window_bounds = array<i64: 128, 32>}, {pipeline_mode = #tpu.pipeline_mode<synchronous>, transform_indices = @transform_2, window_bounds = array<i64: 16, 32>}, {pipeline_mode = #tpu.pipeline_mode<synchronous>, transform_indices = @transform_3, window_bounds = array<i64: 2, 32, 32>}, {pipeline_mode = #tpu.pipeline_mode<synchronous>, transform_indices = @transform_4, window_bounds = array<i64: 2, 1, 32>}, {pipeline_mode = #tpu.pipeline_mode<synchronous>, transform_indices = @transform_5, window_bounds = array<i64: 2, 32, 32>}, {pipeline_mode = #tpu.pipeline_mode<synchronous>, transform_indices = @transform_6, window_bounds = array<i64: 2, 1, 32>}, {pipeline_mode = #tpu.pipeline_mode<synchronous>, transform_indices = @transform_7, window_bounds = array<i64: 2, 32, 32>}, {pipeline_mode = #tpu.pipeline_mode<synchronous>, transform_indices = @transform_8, window_bounds = array<i64: 2, 1, 32>}, {pipeline_mode = #tpu.pipeline_mode<synchronous>, transform_indices = @transform_9, window_bounds = array<i64: 2, 32, 32>}, {pipeline_mode = #tpu.pipeline_mode<synchronous>, transform_indices = @transform_10, window_bounds = array<i64: 2, 1, 32>}, {pipeline_mode = #tpu.pipeline_mode<synchronous>, transform_indices = @transform_11, window_bounds = array<i64: 2, 32, 64>}, {pipeline_mode = #tpu.pipeline_mode<synchronous>, transform_indices = @transform_12, window_bounds = array<i64: 2, 1, 64>}, {pipeline_mode = #tpu.pipeline_mode<synchronous>, transform_indices = @transform_13, window_bounds = array<i64: 2, 64, 32>}, {pipeline_mode = #tpu.pipeline_mode<synchronous>, transform_indices = @transform_14, window_bounds = array<i64: 2, 1, 32>}, {pipeline_mode = #tpu.pipeline_mode<synchronous>, transform_indices = @transform_15, window_bounds = array<i64: 2, 1, 32>}, {pipeline_mode = #tpu.pipeline_mode<synchronous>, transform_indices = @transform_16, window_bounds = array<i64: 2, 1, 32>}, {pipeline_mode = #tpu.pipeline_mode<synchronous>, transform_indices = @transform_17, window_bounds = array<i64: 2, 1, 32>}, {pipeline_mode = #tpu.pipeline_mode<synchronous>, transform_indices = @transform_18, window_bounds = array<i64: 2, 1, 32>}, {pipeline_mode = #tpu.pipeline_mode<synchronous>, transform_indices = @transform_19, window_bounds = array<i64: 1, 32>}, {pipeline_mode = #tpu.pipeline_mode<synchronous>, transform_indices = @transform_20, window_bounds = array<i64: 1, 1>}, {transform_indices = @transform_21, window_bounds = array<i64: 1, 1, 16>}, {transform_indices = @transform_22, window_bounds = array<i64: 1, 8, 64>}]} {
    %c0 = arith.constant 0 : index
    %c0_0 = arith.constant 0 : index
    %0 = vector.load %arg1[%c0, %c0_0] : memref<16x128xf32, #tpu.memory_space<vmem>>, vector<16x128xf32>
    %c0_1 = arith.constant 0 : index
    %c0_2 = arith.constant 0 : index
    %1 = vector.load %arg2[%c0_1, %c0_2] : memref<128x32xf32, #tpu.memory_space<vmem>>, vector<128x32xf32>
    %cst = arith.constant dense<0.000000e+00> : vector<16x32xf32>
    %2 = tpu.matmul %0, %1, %cst {dimension_numbers = #tpu.dot_dimension_numbers<[1], [0], [0], [1], [0, 0, 1, 1], [], []>} : vector<16x128xf32>, vector<128x32xf32>, vector<16x32xf32> -> vector<16x32xf32>
    %c0_3 = arith.constant 0 : index
    %c0_4 = arith.constant 0 : index
    %3 = vector.load %arg3[%c0_3, %c0_4] : memref<16x32xf32, #tpu.memory_space<vmem>>, vector<16x32xf32>
    %4 = arith.addf %2, %3 : vector<16x32xf32>
    %c0_5 = arith.constant 0 : index
    %c0_6 = arith.constant 0 : index
    %c0_7 = arith.constant 0 : index
    %5 = vector.load %arg16[%c0_5, %c0_6, %c0_7] : memref<2x1x32xf32, #tpu.memory_space<vmem>>, vector<1x1x32xf32>
    %6 = vector.shape_cast %5 : vector<1x1x32xf32> to vector<1x32xf32>
    %c0_8 = arith.constant 0 : index
    %c0_9 = arith.constant 0 : index
    %c0_10 = arith.constant 0 : index
    %7 = vector.load %arg17[%c0_8, %c0_9, %c0_10] : memref<2x1x32xf32, #tpu.memory_space<vmem>>, vector<1x1x32xf32>
    %8 = vector.shape_cast %7 : vector<1x1x32xf32> to vector<1x32xf32>
    %cst_11 = arith.constant dense<0.000000e+00> : vector<16xf32>
    %9 = vector.multi_reduction <add>, %4, %cst_11 [1] : vector<16x32xf32> to vector<16xf32>
    %10 = vector.shape_cast %9 : vector<16xf32> to vector<16x1xf32>
    %cst_12 = arith.constant 3.200000e+01 : f32
    %11 = vector.broadcast %cst_12 : f32 to vector<16x1xf32>
    %12 = arith.divf %10, %11 : vector<16x1xf32>
    %13 = vector.broadcast %12 : vector<16x1xf32> to vector<16x32xf32>
    %14 = arith.subf %4, %13 : vector<16x32xf32>
    %15 = arith.mulf %14, %14 : vector<16x32xf32>
    %cst_13 = arith.constant dense<0.000000e+00> : vector<16xf32>
    %16 = vector.multi_reduction <add>, %15, %cst_13 [1] : vector<16x32xf32> to vector<16xf32>
    %17 = vector.shape_cast %16 : vector<16xf32> to vector<16x1xf32>
    %cst_14 = arith.constant 0.0322580636 : f32
    %18 = vector.broadcast %cst_14 : f32 to vector<16x1xf32>
    %19 = arith.mulf %17, %18 : vector<16x1xf32>
    %20 = math.sqrt %19 : vector<16x1xf32>
    %cst_15 = arith.constant 9.99999997E-7 : f32
    %21 = vector.broadcast %cst_15 : f32 to vector<16x1xf32>
    %22 = arith.addf %20, %21 : vector<16x1xf32>
    %23 = tpu.reciprocal %22 {approx = true} : vector<16x1xf32> -> vector<16x1xf32>
    %24 = vector.broadcast %12 : vector<16x1xf32> to vector<16x32xf32>
    %25 = arith.subf %4, %24 : vector<16x32xf32>
    %26 = vector.broadcast %6 : vector<1x32xf32> to vector<16x32xf32>
    %27 = arith.mulf %26, %25 : vector<16x32xf32>
    %28 = vector.broadcast %23 : vector<16x1xf32> to vector<16x32xf32>
    %29 = arith.mulf %27, %28 : vector<16x32xf32>
    %30 = vector.broadcast %8 : vector<1x32xf32> to vector<16x32xf32>
    %31 = arith.addf %29, %30 : vector<16x32xf32>
    %c0_16 = arith.constant 0 : index
    %c0_17 = arith.constant 0 : index
    %c0_18 = arith.constant 0 : index
    %32 = vector.load %arg4[%c0_16, %c0_17, %c0_18] : memref<2x32x32xf32, #tpu.memory_space<vmem>>, vector<1x32x32xf32>
    %33 = vector.shape_cast %32 : vector<1x32x32xf32> to vector<32x32xf32>
    %cst_19 = arith.constant dense<0.000000e+00> : vector<16x32xf32>
    %34 = tpu.matmul %31, %33, %cst_19 {dimension_numbers = #tpu.dot_dimension_numbers<[1], [0], [0], [1], [0, 0, 1, 1], [], []>} : vector<16x32xf32>, vector<32x32xf32>, vector<16x32xf32> -> vector<16x32xf32>
    %c0_20 = arith.constant 0 : index
    %c0_21 = arith.constant 0 : index
    %c0_22 = arith.constant 0 : index
    %35 = vector.load %arg5[%c0_20, %c0_21, %c0_22] : memref<2x1x32xf32, #tpu.memory_space<vmem>>, vector<1x1x32xf32>
    %36 = vector.shape_cast %35 : vector<1x1x32xf32> to vector<1x32xf32>
    %37 = vector.broadcast %36 : vector<1x32xf32> to vector<16x32xf32>
    %38 = arith.addf %34, %37 : vector<16x32xf32>
    %c0_23 = arith.constant 0 : index
    %c0_24 = arith.constant 0 : index
    %c0_25 = arith.constant 0 : index
    %39 = vector.load %arg6[%c0_23, %c0_24, %c0_25] : memref<2x32x32xf32, #tpu.memory_space<vmem>>, vector<1x32x32xf32>
    %40 = vector.shape_cast %39 : vector<1x32x32xf32> to vector<32x32xf32>
    %cst_26 = arith.constant dense<0.000000e+00> : vector<16x32xf32>
    %41 = tpu.matmul %31, %40, %cst_26 {dimension_numbers = #tpu.dot_dimension_numbers<[1], [0], [0], [1], [0, 0, 1, 1], [], []>} : vector<16x32xf32>, vector<32x32xf32>, vector<16x32xf32> -> vector<16x32xf32>
    %c0_27 = arith.constant 0 : index
    %c0_28 = arith.constant 0 : index
    %c0_29 = arith.constant 0 : index
    %42 = vector.load %arg7[%c0_27, %c0_28, %c0_29] : memref<2x1x32xf32, #tpu.memory_space<vmem>>, vector<1x1x32xf32>
    %43 = vector.shape_cast %42 : vector<1x1x32xf32> to vector<1x32xf32>
    %44 = vector.broadcast %43 : vector<1x32xf32> to vector<16x32xf32>
    %45 = arith.addf %41, %44 : vector<16x32xf32>
    %c0_30 = arith.constant 0 : index
    %c0_31 = arith.constant 0 : index
    %c0_32 = arith.constant 0 : index
    %46 = vector.load %arg8[%c0_30, %c0_31, %c0_32] : memref<2x32x32xf32, #tpu.memory_space<vmem>>, vector<1x32x32xf32>
    %47 = vector.shape_cast %46 : vector<1x32x32xf32> to vector<32x32xf32>
    %cst_33 = arith.constant dense<0.000000e+00> : vector<16x32xf32>
    %48 = tpu.matmul %31, %47, %cst_33 {dimension_numbers = #tpu.dot_dimension_numbers<[1], [0], [0], [1], [0, 0, 1, 1], [], []>} : vector<16x32xf32>, vector<32x32xf32>, vector<16x32xf32> -> vector<16x32xf32>
    %c0_34 = arith.constant 0 : index
    %c0_35 = arith.constant 0 : index
    %c0_36 = arith.constant 0 : index
    %49 = vector.load %arg9[%c0_34, %c0_35, %c0_36] : memref<2x1x32xf32, #tpu.memory_space<vmem>>, vector<1x1x32xf32>
    %50 = vector.shape_cast %49 : vector<1x1x32xf32> to vector<1x32xf32>
    %51 = vector.broadcast %50 : vector<1x32xf32> to vector<16x32xf32>
    %52 = arith.addf %48, %51 : vector<16x32xf32>
    %53 = vector.extract_strided_slice %38 {offsets = [0, 0], sizes = [8, 16], strides = [1, 1]} : vector<16x32xf32> to vector<8x16xf32>
    %54 = vector.extract_strided_slice %45 {offsets = [0, 0], sizes = [8, 16], strides = [1, 1]} : vector<16x32xf32> to vector<8x16xf32>
    %55 = vector.extract_strided_slice %52 {offsets = [0, 0], sizes = [8, 16], strides = [1, 1]} : vector<16x32xf32> to vector<8x16xf32>
    %cst_37 = arith.constant dense<0.000000e+00> : vector<8x8xf32>
    %56 = tpu.matmul %53, %54, %cst_37 {dimension_numbers = #tpu.dot_dimension_numbers<[1], [1], [0], [0], [0, 0, 1, 0], [], []>} : vector<8x16xf32>, vector<8x16xf32>, vector<8x8xf32> -> vector<8x8xf32>
    %cst_38 = arith.constant 2.500000e-01 : f32
    %57 = vector.broadcast %cst_38 : f32 to vector<8x8xf32>
    %58 = arith.mulf %56, %57 : vector<8x8xf32>
    %cst_39 = arith.constant dense<0xFF800000> : vector<8xf32>
    %59 = vector.multi_reduction <maximumf>, %58, %cst_39 [1] : vector<8x8xf32> to vector<8xf32>
    %60 = vector.shape_cast %59 : vector<8xf32> to vector<8x1xf32>
    %61 = vector.broadcast %60 : vector<8x1xf32> to vector<8x8xf32>
    %62 = arith.subf %58, %61 : vector<8x8xf32>
    %63 = math.exp %62 : vector<8x8xf32>
    %cst_40 = arith.constant dense<0.000000e+00> : vector<8xf32>
    %64 = vector.multi_reduction <add>, %63, %cst_40 [1] : vector<8x8xf32> to vector<8xf32>
    %65 = vector.shape_cast %64 : vector<8xf32> to vector<8x1xf32>
    %66 = tpu.reciprocal %65 {approx = true} : vector<8x1xf32> -> vector<8x1xf32>
    %67 = vector.broadcast %66 : vector<8x1xf32> to vector<8x8xf32>
    %68 = arith.mulf %63, %67 : vector<8x8xf32>
    %cst_41 = arith.constant dense<0.000000e+00> : vector<8x16xf32>
    %69 = tpu.matmul %68, %55, %cst_41 {dimension_numbers = #tpu.dot_dimension_numbers<[1], [0], [0], [1], [0, 0, 1, 1], [], []>} : vector<8x8xf32>, vector<8x16xf32>, vector<8x16xf32> -> vector<8x16xf32>
    %70 = vector.extract_strided_slice %38 {offsets = [0, 16], sizes = [8, 16], strides = [1, 1]} : vector<16x32xf32> to vector<8x16xf32>
    %71 = vector.extract_strided_slice %45 {offsets = [0, 16], sizes = [8, 16], strides = [1, 1]} : vector<16x32xf32> to vector<8x16xf32>
    %72 = vector.extract_strided_slice %52 {offsets = [0, 16], sizes = [8, 16], strides = [1, 1]} : vector<16x32xf32> to vector<8x16xf32>
    %cst_42 = arith.constant dense<0.000000e+00> : vector<8x8xf32>
    %73 = tpu.matmul %70, %71, %cst_42 {dimension_numbers = #tpu.dot_dimension_numbers<[1], [1], [0], [0], [0, 0, 1, 0], [], []>} : vector<8x16xf32>, vector<8x16xf32>, vector<8x8xf32> -> vector<8x8xf32>
    %cst_43 = arith.constant 2.500000e-01 : f32
    %74 = vector.broadcast %cst_43 : f32 to vector<8x8xf32>
    %75 = arith.mulf %73, %74 : vector<8x8xf32>
    %cst_44 = arith.constant dense<0xFF800000> : vector<8xf32>
    %76 = vector.multi_reduction <maximumf>, %75, %cst_44 [1] : vector<8x8xf32> to vector<8xf32>
    %77 = vector.shape_cast %76 : vector<8xf32> to vector<8x1xf32>
    %78 = vector.broadcast %77 : vector<8x1xf32> to vector<8x8xf32>
    %79 = arith.subf %75, %78 : vector<8x8xf32>
    %80 = math.exp %79 : vector<8x8xf32>
    %cst_45 = arith.constant dense<0.000000e+00> : vector<8xf32>
    %81 = vector.multi_reduction <add>, %80, %cst_45 [1] : vector<8x8xf32> to vector<8xf32>
    %82 = vector.shape_cast %81 : vector<8xf32> to vector<8x1xf32>
    %83 = tpu.reciprocal %82 {approx = true} : vector<8x1xf32> -> vector<8x1xf32>
    %84 = vector.broadcast %83 : vector<8x1xf32> to vector<8x8xf32>
    %85 = arith.mulf %80, %84 : vector<8x8xf32>
    %cst_46 = arith.constant dense<0.000000e+00> : vector<8x16xf32>
    %86 = tpu.matmul %85, %72, %cst_46 {dimension_numbers = #tpu.dot_dimension_numbers<[1], [0], [0], [1], [0, 0, 1, 1], [], []>} : vector<8x8xf32>, vector<8x16xf32>, vector<8x16xf32> -> vector<8x16xf32>
    %87 = tpu.concatenate %69, %86 in 1 : vector<8x16xf32>, vector<8x16xf32> -> vector<8x32xf32>
    %88 = vector.extract_strided_slice %38 {offsets = [8, 0], sizes = [8, 16], strides = [1, 1]} : vector<16x32xf32> to vector<8x16xf32>
    %89 = vector.extract_strided_slice %45 {offsets = [8, 0], sizes = [8, 16], strides = [1, 1]} : vector<16x32xf32> to vector<8x16xf32>
    %90 = vector.extract_strided_slice %52 {offsets = [8, 0], sizes = [8, 16], strides = [1, 1]} : vector<16x32xf32> to vector<8x16xf32>
    %cst_47 = arith.constant dense<0.000000e+00> : vector<8x8xf32>
    %91 = tpu.matmul %88, %89, %cst_47 {dimension_numbers = #tpu.dot_dimension_numbers<[1], [1], [0], [0], [0, 0, 1, 0], [], []>} : vector<8x16xf32>, vector<8x16xf32>, vector<8x8xf32> -> vector<8x8xf32>
    %cst_48 = arith.constant 2.500000e-01 : f32
    %92 = vector.broadcast %cst_48 : f32 to vector<8x8xf32>
    %93 = arith.mulf %91, %92 : vector<8x8xf32>
    %cst_49 = arith.constant dense<0xFF800000> : vector<8xf32>
    %94 = vector.multi_reduction <maximumf>, %93, %cst_49 [1] : vector<8x8xf32> to vector<8xf32>
    %95 = vector.shape_cast %94 : vector<8xf32> to vector<8x1xf32>
    %96 = vector.broadcast %95 : vector<8x1xf32> to vector<8x8xf32>
    %97 = arith.subf %93, %96 : vector<8x8xf32>
    %98 = math.exp %97 : vector<8x8xf32>
    %cst_50 = arith.constant dense<0.000000e+00> : vector<8xf32>
    %99 = vector.multi_reduction <add>, %98, %cst_50 [1] : vector<8x8xf32> to vector<8xf32>
    %100 = vector.shape_cast %99 : vector<8xf32> to vector<8x1xf32>
    %101 = tpu.reciprocal %100 {approx = true} : vector<8x1xf32> -> vector<8x1xf32>
    %102 = vector.broadcast %101 : vector<8x1xf32> to vector<8x8xf32>
    %103 = arith.mulf %98, %102 : vector<8x8xf32>
    %cst_51 = arith.constant dense<0.000000e+00> : vector<8x16xf32>
    %104 = tpu.matmul %103, %90, %cst_51 {dimension_numbers = #tpu.dot_dimension_numbers<[1], [0], [0], [1], [0, 0, 1, 1], [], []>} : vector<8x8xf32>, vector<8x16xf32>, vector<8x16xf32> -> vector<8x16xf32>
    %105 = vector.extract_strided_slice %38 {offsets = [8, 16], sizes = [8, 16], strides = [1, 1]} : vector<16x32xf32> to vector<8x16xf32>
    %106 = vector.extract_strided_slice %45 {offsets = [8, 16], sizes = [8, 16], strides = [1, 1]} : vector<16x32xf32> to vector<8x16xf32>
    %107 = vector.extract_strided_slice %52 {offsets = [8, 16], sizes = [8, 16], strides = [1, 1]} : vector<16x32xf32> to vector<8x16xf32>
    %cst_52 = arith.constant dense<0.000000e+00> : vector<8x8xf32>
    %108 = tpu.matmul %105, %106, %cst_52 {dimension_numbers = #tpu.dot_dimension_numbers<[1], [1], [0], [0], [0, 0, 1, 0], [], []>} : vector<8x16xf32>, vector<8x16xf32>, vector<8x8xf32> -> vector<8x8xf32>
    %cst_53 = arith.constant 2.500000e-01 : f32
    %109 = vector.broadcast %cst_53 : f32 to vector<8x8xf32>
    %110 = arith.mulf %108, %109 : vector<8x8xf32>
    %cst_54 = arith.constant dense<0xFF800000> : vector<8xf32>
    %111 = vector.multi_reduction <maximumf>, %110, %cst_54 [1] : vector<8x8xf32> to vector<8xf32>
    %112 = vector.shape_cast %111 : vector<8xf32> to vector<8x1xf32>
    %113 = vector.broadcast %112 : vector<8x1xf32> to vector<8x8xf32>
    %114 = arith.subf %110, %113 : vector<8x8xf32>
    %115 = math.exp %114 : vector<8x8xf32>
    %cst_55 = arith.constant dense<0.000000e+00> : vector<8xf32>
    %116 = vector.multi_reduction <add>, %115, %cst_55 [1] : vector<8x8xf32> to vector<8xf32>
    %117 = vector.shape_cast %116 : vector<8xf32> to vector<8x1xf32>
    %118 = tpu.reciprocal %117 {approx = true} : vector<8x1xf32> -> vector<8x1xf32>
    %119 = vector.broadcast %118 : vector<8x1xf32> to vector<8x8xf32>
    %120 = arith.mulf %115, %119 : vector<8x8xf32>
    %cst_56 = arith.constant dense<0.000000e+00> : vector<8x16xf32>
    %121 = tpu.matmul %120, %107, %cst_56 {dimension_numbers = #tpu.dot_dimension_numbers<[1], [0], [0], [1], [0, 0, 1, 1], [], []>} : vector<8x8xf32>, vector<8x16xf32>, vector<8x16xf32> -> vector<8x16xf32>
    %122 = tpu.concatenate %104, %121 in 1 : vector<8x16xf32>, vector<8x16xf32> -> vector<8x32xf32>
    %123 = tpu.concatenate %87, %122 in 0 : vector<8x32xf32>, vector<8x32xf32> -> vector<16x32xf32>
    %c0_57 = arith.constant 0 : index
    %c0_58 = arith.constant 0 : index
    %c0_59 = arith.constant 0 : index
    %124 = vector.load %arg10[%c0_57, %c0_58, %c0_59] : memref<2x32x32xf32, #tpu.memory_space<vmem>>, vector<1x32x32xf32>
    %125 = vector.shape_cast %124 : vector<1x32x32xf32> to vector<32x32xf32>
    %cst_60 = arith.constant dense<0.000000e+00> : vector<16x32xf32>
    %126 = tpu.matmul %123, %125, %cst_60 {dimension_numbers = #tpu.dot_dimension_numbers<[1], [0], [0], [1], [0, 0, 1, 1], [], []>} : vector<16x32xf32>, vector<32x32xf32>, vector<16x32xf32> -> vector<16x32xf32>
    %127 = arith.addf %4, %126 : vector<16x32xf32>
    %c0_61 = arith.constant 0 : index
    %c0_62 = arith.constant 0 : index
    %c0_63 = arith.constant 0 : index
    %128 = vector.load %arg11[%c0_61, %c0_62, %c0_63] : memref<2x1x32xf32, #tpu.memory_space<vmem>>, vector<1x1x32xf32>
    %129 = vector.shape_cast %128 : vector<1x1x32xf32> to vector<1x32xf32>
    %130 = vector.broadcast %129 : vector<1x32xf32> to vector<16x32xf32>
    %131 = arith.addf %127, %130 : vector<16x32xf32>
    %c0_64 = arith.constant 0 : index
    %c0_65 = arith.constant 0 : index
    %c0_66 = arith.constant 0 : index
    %132 = vector.load %arg18[%c0_64, %c0_65, %c0_66] : memref<2x1x32xf32, #tpu.memory_space<vmem>>, vector<1x1x32xf32>
    %133 = vector.shape_cast %132 : vector<1x1x32xf32> to vector<1x32xf32>
    %c0_67 = arith.constant 0 : index
    %c0_68 = arith.constant 0 : index
    %c0_69 = arith.constant 0 : index
    %134 = vector.load %arg19[%c0_67, %c0_68, %c0_69] : memref<2x1x32xf32, #tpu.memory_space<vmem>>, vector<1x1x32xf32>
    %135 = vector.shape_cast %134 : vector<1x1x32xf32> to vector<1x32xf32>
    %cst_70 = arith.constant dense<0.000000e+00> : vector<16xf32>
    %136 = vector.multi_reduction <add>, %131, %cst_70 [1] : vector<16x32xf32> to vector<16xf32>
    %137 = vector.shape_cast %136 : vector<16xf32> to vector<16x1xf32>
    %cst_71 = arith.constant 3.200000e+01 : f32
    %138 = vector.broadcast %cst_71 : f32 to vector<16x1xf32>
    %139 = arith.divf %137, %138 : vector<16x1xf32>
    %140 = vector.broadcast %139 : vector<16x1xf32> to vector<16x32xf32>
    %141 = arith.subf %131, %140 : vector<16x32xf32>
    %142 = arith.mulf %141, %141 : vector<16x32xf32>
    %cst_72 = arith.constant dense<0.000000e+00> : vector<16xf32>
    %143 = vector.multi_reduction <add>, %142, %cst_72 [1] : vector<16x32xf32> to vector<16xf32>
    %144 = vector.shape_cast %143 : vector<16xf32> to vector<16x1xf32>
    %cst_73 = arith.constant 0.0322580636 : f32
    %145 = vector.broadcast %cst_73 : f32 to vector<16x1xf32>
    %146 = arith.mulf %144, %145 : vector<16x1xf32>
    %147 = math.sqrt %146 : vector<16x1xf32>
    %cst_74 = arith.constant 9.99999997E-7 : f32
    %148 = vector.broadcast %cst_74 : f32 to vector<16x1xf32>
    %149 = arith.addf %147, %148 : vector<16x1xf32>
    %150 = tpu.reciprocal %149 {approx = true} : vector<16x1xf32> -> vector<16x1xf32>
    %151 = vector.broadcast %139 : vector<16x1xf32> to vector<16x32xf32>
    %152 = arith.subf %131, %151 : vector<16x32xf32>
    %153 = vector.broadcast %133 : vector<1x32xf32> to vector<16x32xf32>
    %154 = arith.mulf %153, %152 : vector<16x32xf32>
    %155 = vector.broadcast %150 : vector<16x1xf32> to vector<16x32xf32>
    %156 = arith.mulf %154, %155 : vector<16x32xf32>
    %157 = vector.broadcast %135 : vector<1x32xf32> to vector<16x32xf32>
    %158 = arith.addf %156, %157 : vector<16x32xf32>
    %c0_75 = arith.constant 0 : index
    %c0_76 = arith.constant 0 : index
    %c0_77 = arith.constant 0 : index
    %159 = vector.load %arg12[%c0_75, %c0_76, %c0_77] : memref<2x32x64xf32, #tpu.memory_space<vmem>>, vector<1x32x64xf32>
    %160 = vector.shape_cast %159 : vector<1x32x64xf32> to vector<32x64xf32>
    %cst_78 = arith.constant dense<0.000000e+00> : vector<16x64xf32>
    %161 = tpu.matmul %158, %160, %cst_78 {dimension_numbers = #tpu.dot_dimension_numbers<[1], [0], [0], [1], [0, 0, 1, 1], [], []>} : vector<16x32xf32>, vector<32x64xf32>, vector<16x64xf32> -> vector<16x64xf32>
    %c0_79 = arith.constant 0 : index
    %c0_80 = arith.constant 0 : index
    %c0_81 = arith.constant 0 : index
    %162 = vector.load %arg13[%c0_79, %c0_80, %c0_81] : memref<2x1x64xf32, #tpu.memory_space<vmem>>, vector<1x1x64xf32>
    %163 = vector.shape_cast %162 : vector<1x1x64xf32> to vector<1x64xf32>
    %164 = vector.broadcast %163 : vector<1x64xf32> to vector<16x64xf32>
    %165 = arith.addf %161, %164 : vector<16x64xf32>
    %cst_82 = arith.constant 0.000000e+00 : f32
    %166 = vector.broadcast %cst_82 : f32 to vector<16x64xf32>
    %167 = arith.maximumf %165, %166 : vector<16x64xf32>
    %c0_83 = arith.constant 0 : index
    %c0_84 = arith.constant 0 : index
    %c0_85 = arith.constant 0 : index
    %168 = vector.load %arg14[%c0_83, %c0_84, %c0_85] : memref<2x64x32xf32, #tpu.memory_space<vmem>>, vector<1x64x32xf32>
    %169 = vector.shape_cast %168 : vector<1x64x32xf32> to vector<64x32xf32>
    %cst_86 = arith.constant dense<0.000000e+00> : vector<16x32xf32>
    %170 = tpu.matmul %167, %169, %cst_86 {dimension_numbers = #tpu.dot_dimension_numbers<[1], [0], [0], [1], [0, 0, 1, 1], [], []>} : vector<16x64xf32>, vector<64x32xf32>, vector<16x32xf32> -> vector<16x32xf32>
    %171 = arith.addf %131, %170 : vector<16x32xf32>
    %c0_87 = arith.constant 0 : index
    %c0_88 = arith.constant 0 : index
    %c0_89 = arith.constant 0 : index
    %172 = vector.load %arg15[%c0_87, %c0_88, %c0_89] : memref<2x1x32xf32, #tpu.memory_space<vmem>>, vector<1x1x32xf32>
    %173 = vector.shape_cast %172 : vector<1x1x32xf32> to vector<1x32xf32>
    %174 = vector.broadcast %173 : vector<1x32xf32> to vector<16x32xf32>
    %175 = arith.addf %171, %174 : vector<16x32xf32>
    %c1 = arith.constant 1 : index
    %c0_90 = arith.constant 0 : index
    %c0_91 = arith.constant 0 : index
    %176 = vector.load %arg16[%c1, %c0_90, %c0_91] : memref<2x1x32xf32, #tpu.memory_space<vmem>>, vector<1x1x32xf32>
    %177 = vector.shape_cast %176 : vector<1x1x32xf32> to vector<1x32xf32>
    %c1_92 = arith.constant 1 : index
    %c0_93 = arith.constant 0 : index
    %c0_94 = arith.constant 0 : index
    %178 = vector.load %arg17[%c1_92, %c0_93, %c0_94] : memref<2x1x32xf32, #tpu.memory_space<vmem>>, vector<1x1x32xf32>
    %179 = vector.shape_cast %178 : vector<1x1x32xf32> to vector<1x32xf32>
    %cst_95 = arith.constant dense<0.000000e+00> : vector<16xf32>
    %180 = vector.multi_reduction <add>, %175, %cst_95 [1] : vector<16x32xf32> to vector<16xf32>
    %181 = vector.shape_cast %180 : vector<16xf32> to vector<16x1xf32>
    %cst_96 = arith.constant 3.200000e+01 : f32
    %182 = vector.broadcast %cst_96 : f32 to vector<16x1xf32>
    %183 = arith.divf %181, %182 : vector<16x1xf32>
    %184 = vector.broadcast %183 : vector<16x1xf32> to vector<16x32xf32>
    %185 = arith.subf %175, %184 : vector<16x32xf32>
    %186 = arith.mulf %185, %185 : vector<16x32xf32>
    %cst_97 = arith.constant dense<0.000000e+00> : vector<16xf32>
    %187 = vector.multi_reduction <add>, %186, %cst_97 [1] : vector<16x32xf32> to vector<16xf32>
    %188 = vector.shape_cast %187 : vector<16xf32> to vector<16x1xf32>
    %cst_98 = arith.constant 0.0322580636 : f32
    %189 = vector.broadcast %cst_98 : f32 to vector<16x1xf32>
    %190 = arith.mulf %188, %189 : vector<16x1xf32>
    %191 = math.sqrt %190 : vector<16x1xf32>
    %cst_99 = arith.constant 9.99999997E-7 : f32
    %192 = vector.broadcast %cst_99 : f32 to vector<16x1xf32>
    %193 = arith.addf %191, %192 : vector<16x1xf32>
    %194 = tpu.reciprocal %193 {approx = true} : vector<16x1xf32> -> vector<16x1xf32>
    %195 = vector.broadcast %183 : vector<16x1xf32> to vector<16x32xf32>
    %196 = arith.subf %175, %195 : vector<16x32xf32>
    %197 = vector.broadcast %177 : vector<1x32xf32> to vector<16x32xf32>
    %198 = arith.mulf %197, %196 : vector<16x32xf32>
    %199 = vector.broadcast %194 : vector<16x1xf32> to vector<16x32xf32>
    %200 = arith.mulf %198, %199 : vector<16x32xf32>
    %201 = vector.broadcast %179 : vector<1x32xf32> to vector<16x32xf32>
    %202 = arith.addf %200, %201 : vector<16x32xf32>
    %c1_100 = arith.constant 1 : index
    %c0_101 = arith.constant 0 : index
    %c0_102 = arith.constant 0 : index
    %203 = vector.load %arg4[%c1_100, %c0_101, %c0_102] : memref<2x32x32xf32, #tpu.memory_space<vmem>>, vector<1x32x32xf32>
    %204 = vector.shape_cast %203 : vector<1x32x32xf32> to vector<32x32xf32>
    %cst_103 = arith.constant dense<0.000000e+00> : vector<16x32xf32>
    %205 = tpu.matmul %202, %204, %cst_103 {dimension_numbers = #tpu.dot_dimension_numbers<[1], [0], [0], [1], [0, 0, 1, 1], [], []>} : vector<16x32xf32>, vector<32x32xf32>, vector<16x32xf32> -> vector<16x32xf32>
    %c1_104 = arith.constant 1 : index
    %c0_105 = arith.constant 0 : index
    %c0_106 = arith.constant 0 : index
    %206 = vector.load %arg5[%c1_104, %c0_105, %c0_106] : memref<2x1x32xf32, #tpu.memory_space<vmem>>, vector<1x1x32xf32>
    %207 = vector.shape_cast %206 : vector<1x1x32xf32> to vector<1x32xf32>
    %208 = vector.broadcast %207 : vector<1x32xf32> to vector<16x32xf32>
    %209 = arith.addf %205, %208 : vector<16x32xf32>
    %c1_107 = arith.constant 1 : index
    %c0_108 = arith.constant 0 : index
    %c0_109 = arith.constant 0 : index
    %210 = vector.load %arg6[%c1_107, %c0_108, %c0_109] : memref<2x32x32xf32, #tpu.memory_space<vmem>>, vector<1x32x32xf32>
    %211 = vector.shape_cast %210 : vector<1x32x32xf32> to vector<32x32xf32>
    %cst_110 = arith.constant dense<0.000000e+00> : vector<16x32xf32>
    %212 = tpu.matmul %202, %211, %cst_110 {dimension_numbers = #tpu.dot_dimension_numbers<[1], [0], [0], [1], [0, 0, 1, 1], [], []>} : vector<16x32xf32>, vector<32x32xf32>, vector<16x32xf32> -> vector<16x32xf32>
    %c1_111 = arith.constant 1 : index
    %c0_112 = arith.constant 0 : index
    %c0_113 = arith.constant 0 : index
    %213 = vector.load %arg7[%c1_111, %c0_112, %c0_113] : memref<2x1x32xf32, #tpu.memory_space<vmem>>, vector<1x1x32xf32>
    %214 = vector.shape_cast %213 : vector<1x1x32xf32> to vector<1x32xf32>
    %215 = vector.broadcast %214 : vector<1x32xf32> to vector<16x32xf32>
    %216 = arith.addf %212, %215 : vector<16x32xf32>
    %c1_114 = arith.constant 1 : index
    %c0_115 = arith.constant 0 : index
    %c0_116 = arith.constant 0 : index
    %217 = vector.load %arg8[%c1_114, %c0_115, %c0_116] : memref<2x32x32xf32, #tpu.memory_space<vmem>>, vector<1x32x32xf32>
    %218 = vector.shape_cast %217 : vector<1x32x32xf32> to vector<32x32xf32>
    %cst_117 = arith.constant dense<0.000000e+00> : vector<16x32xf32>
    %219 = tpu.matmul %202, %218, %cst_117 {dimension_numbers = #tpu.dot_dimension_numbers<[1], [0], [0], [1], [0, 0, 1, 1], [], []>} : vector<16x32xf32>, vector<32x32xf32>, vector<16x32xf32> -> vector<16x32xf32>
    %c1_118 = arith.constant 1 : index
    %c0_119 = arith.constant 0 : index
    %c0_120 = arith.constant 0 : index
    %220 = vector.load %arg9[%c1_118, %c0_119, %c0_120] : memref<2x1x32xf32, #tpu.memory_space<vmem>>, vector<1x1x32xf32>
    %221 = vector.shape_cast %220 : vector<1x1x32xf32> to vector<1x32xf32>
    %222 = vector.broadcast %221 : vector<1x32xf32> to vector<16x32xf32>
    %223 = arith.addf %219, %222 : vector<16x32xf32>
    %224 = vector.extract_strided_slice %209 {offsets = [0, 0], sizes = [8, 16], strides = [1, 1]} : vector<16x32xf32> to vector<8x16xf32>
    %225 = vector.extract_strided_slice %216 {offsets = [0, 0], sizes = [8, 16], strides = [1, 1]} : vector<16x32xf32> to vector<8x16xf32>
    %226 = vector.extract_strided_slice %223 {offsets = [0, 0], sizes = [8, 16], strides = [1, 1]} : vector<16x32xf32> to vector<8x16xf32>
    %cst_121 = arith.constant dense<0.000000e+00> : vector<8x8xf32>
    %227 = tpu.matmul %224, %225, %cst_121 {dimension_numbers = #tpu.dot_dimension_numbers<[1], [1], [0], [0], [0, 0, 1, 0], [], []>} : vector<8x16xf32>, vector<8x16xf32>, vector<8x8xf32> -> vector<8x8xf32>
    %cst_122 = arith.constant 2.500000e-01 : f32
    %228 = vector.broadcast %cst_122 : f32 to vector<8x8xf32>
    %229 = arith.mulf %227, %228 : vector<8x8xf32>
    %cst_123 = arith.constant dense<0xFF800000> : vector<8xf32>
    %230 = vector.multi_reduction <maximumf>, %229, %cst_123 [1] : vector<8x8xf32> to vector<8xf32>
    %231 = vector.shape_cast %230 : vector<8xf32> to vector<8x1xf32>
    %232 = vector.broadcast %231 : vector<8x1xf32> to vector<8x8xf32>
    %233 = arith.subf %229, %232 : vector<8x8xf32>
    %234 = math.exp %233 : vector<8x8xf32>
    %cst_124 = arith.constant dense<0.000000e+00> : vector<8xf32>
    %235 = vector.multi_reduction <add>, %234, %cst_124 [1] : vector<8x8xf32> to vector<8xf32>
    %236 = vector.shape_cast %235 : vector<8xf32> to vector<8x1xf32>
    %237 = tpu.reciprocal %236 {approx = true} : vector<8x1xf32> -> vector<8x1xf32>
    %238 = vector.broadcast %237 : vector<8x1xf32> to vector<8x8xf32>
    %239 = arith.mulf %234, %238 : vector<8x8xf32>
    %cst_125 = arith.constant dense<0.000000e+00> : vector<8x16xf32>
    %240 = tpu.matmul %239, %226, %cst_125 {dimension_numbers = #tpu.dot_dimension_numbers<[1], [0], [0], [1], [0, 0, 1, 1], [], []>} : vector<8x8xf32>, vector<8x16xf32>, vector<8x16xf32> -> vector<8x16xf32>
    %241 = vector.extract_strided_slice %209 {offsets = [0, 16], sizes = [8, 16], strides = [1, 1]} : vector<16x32xf32> to vector<8x16xf32>
    %242 = vector.extract_strided_slice %216 {offsets = [0, 16], sizes = [8, 16], strides = [1, 1]} : vector<16x32xf32> to vector<8x16xf32>
    %243 = vector.extract_strided_slice %223 {offsets = [0, 16], sizes = [8, 16], strides = [1, 1]} : vector<16x32xf32> to vector<8x16xf32>
    %cst_126 = arith.constant dense<0.000000e+00> : vector<8x8xf32>
    %244 = tpu.matmul %241, %242, %cst_126 {dimension_numbers = #tpu.dot_dimension_numbers<[1], [1], [0], [0], [0, 0, 1, 0], [], []>} : vector<8x16xf32>, vector<8x16xf32>, vector<8x8xf32> -> vector<8x8xf32>
    %cst_127 = arith.constant 2.500000e-01 : f32
    %245 = vector.broadcast %cst_127 : f32 to vector<8x8xf32>
    %246 = arith.mulf %244, %245 : vector<8x8xf32>
    %cst_128 = arith.constant dense<0xFF800000> : vector<8xf32>
    %247 = vector.multi_reduction <maximumf>, %246, %cst_128 [1] : vector<8x8xf32> to vector<8xf32>
    %248 = vector.shape_cast %247 : vector<8xf32> to vector<8x1xf32>
    %249 = vector.broadcast %248 : vector<8x1xf32> to vector<8x8xf32>
    %250 = arith.subf %246, %249 : vector<8x8xf32>
    %251 = math.exp %250 : vector<8x8xf32>
    %cst_129 = arith.constant dense<0.000000e+00> : vector<8xf32>
    %252 = vector.multi_reduction <add>, %251, %cst_129 [1] : vector<8x8xf32> to vector<8xf32>
    %253 = vector.shape_cast %252 : vector<8xf32> to vector<8x1xf32>
    %254 = tpu.reciprocal %253 {approx = true} : vector<8x1xf32> -> vector<8x1xf32>
    %255 = vector.broadcast %254 : vector<8x1xf32> to vector<8x8xf32>
    %256 = arith.mulf %251, %255 : vector<8x8xf32>
    %cst_130 = arith.constant dense<0.000000e+00> : vector<8x16xf32>
    %257 = tpu.matmul %256, %243, %cst_130 {dimension_numbers = #tpu.dot_dimension_numbers<[1], [0], [0], [1], [0, 0, 1, 1], [], []>} : vector<8x8xf32>, vector<8x16xf32>, vector<8x16xf32> -> vector<8x16xf32>
    %258 = tpu.concatenate %240, %257 in 1 : vector<8x16xf32>, vector<8x16xf32> -> vector<8x32xf32>
    %259 = vector.extract_strided_slice %209 {offsets = [8, 0], sizes = [8, 16], strides = [1, 1]} : vector<16x32xf32> to vector<8x16xf32>
    %260 = vector.extract_strided_slice %216 {offsets = [8, 0], sizes = [8, 16], strides = [1, 1]} : vector<16x32xf32> to vector<8x16xf32>
    %261 = vector.extract_strided_slice %223 {offsets = [8, 0], sizes = [8, 16], strides = [1, 1]} : vector<16x32xf32> to vector<8x16xf32>
    %cst_131 = arith.constant dense<0.000000e+00> : vector<8x8xf32>
    %262 = tpu.matmul %259, %260, %cst_131 {dimension_numbers = #tpu.dot_dimension_numbers<[1], [1], [0], [0], [0, 0, 1, 0], [], []>} : vector<8x16xf32>, vector<8x16xf32>, vector<8x8xf32> -> vector<8x8xf32>
    %cst_132 = arith.constant 2.500000e-01 : f32
    %263 = vector.broadcast %cst_132 : f32 to vector<8x8xf32>
    %264 = arith.mulf %262, %263 : vector<8x8xf32>
    %cst_133 = arith.constant dense<0xFF800000> : vector<8xf32>
    %265 = vector.multi_reduction <maximumf>, %264, %cst_133 [1] : vector<8x8xf32> to vector<8xf32>
    %266 = vector.shape_cast %265 : vector<8xf32> to vector<8x1xf32>
    %267 = vector.broadcast %266 : vector<8x1xf32> to vector<8x8xf32>
    %268 = arith.subf %264, %267 : vector<8x8xf32>
    %269 = math.exp %268 : vector<8x8xf32>
    %cst_134 = arith.constant dense<0.000000e+00> : vector<8xf32>
    %270 = vector.multi_reduction <add>, %269, %cst_134 [1] : vector<8x8xf32> to vector<8xf32>
    %271 = vector.shape_cast %270 : vector<8xf32> to vector<8x1xf32>
    %272 = tpu.reciprocal %271 {approx = true} : vector<8x1xf32> -> vector<8x1xf32>
    %273 = vector.broadcast %272 : vector<8x1xf32> to vector<8x8xf32>
    %274 = arith.mulf %269, %273 : vector<8x8xf32>
    %cst_135 = arith.constant dense<0.000000e+00> : vector<8x16xf32>
    %275 = tpu.matmul %274, %261, %cst_135 {dimension_numbers = #tpu.dot_dimension_numbers<[1], [0], [0], [1], [0, 0, 1, 1], [], []>} : vector<8x8xf32>, vector<8x16xf32>, vector<8x16xf32> -> vector<8x16xf32>
    %276 = vector.extract_strided_slice %209 {offsets = [8, 16], sizes = [8, 16], strides = [1, 1]} : vector<16x32xf32> to vector<8x16xf32>
    %277 = vector.extract_strided_slice %216 {offsets = [8, 16], sizes = [8, 16], strides = [1, 1]} : vector<16x32xf32> to vector<8x16xf32>
    %278 = vector.extract_strided_slice %223 {offsets = [8, 16], sizes = [8, 16], strides = [1, 1]} : vector<16x32xf32> to vector<8x16xf32>
    %cst_136 = arith.constant dense<0.000000e+00> : vector<8x8xf32>
    %279 = tpu.matmul %276, %277, %cst_136 {dimension_numbers = #tpu.dot_dimension_numbers<[1], [1], [0], [0], [0, 0, 1, 0], [], []>} : vector<8x16xf32>, vector<8x16xf32>, vector<8x8xf32> -> vector<8x8xf32>
    %cst_137 = arith.constant 2.500000e-01 : f32
    %280 = vector.broadcast %cst_137 : f32 to vector<8x8xf32>
    %281 = arith.mulf %279, %280 : vector<8x8xf32>
    %cst_138 = arith.constant dense<0xFF800000> : vector<8xf32>
    %282 = vector.multi_reduction <maximumf>, %281, %cst_138 [1] : vector<8x8xf32> to vector<8xf32>
    %283 = vector.shape_cast %282 : vector<8xf32> to vector<8x1xf32>
    %284 = vector.broadcast %283 : vector<8x1xf32> to vector<8x8xf32>
    %285 = arith.subf %281, %284 : vector<8x8xf32>
    %286 = math.exp %285 : vector<8x8xf32>
    %cst_139 = arith.constant dense<0.000000e+00> : vector<8xf32>
    %287 = vector.multi_reduction <add>, %286, %cst_139 [1] : vector<8x8xf32> to vector<8xf32>
    %288 = vector.shape_cast %287 : vector<8xf32> to vector<8x1xf32>
    %289 = tpu.reciprocal %288 {approx = true} : vector<8x1xf32> -> vector<8x1xf32>
    %290 = vector.broadcast %289 : vector<8x1xf32> to vector<8x8xf32>
    %291 = arith.mulf %286, %290 : vector<8x8xf32>
    %cst_140 = arith.constant dense<0.000000e+00> : vector<8x16xf32>
    %292 = tpu.matmul %291, %278, %cst_140 {dimension_numbers = #tpu.dot_dimension_numbers<[1], [0], [0], [1], [0, 0, 1, 1], [], []>} : vector<8x8xf32>, vector<8x16xf32>, vector<8x16xf32> -> vector<8x16xf32>
    %293 = tpu.concatenate %275, %292 in 1 : vector<8x16xf32>, vector<8x16xf32> -> vector<8x32xf32>
    %294 = tpu.concatenate %258, %293 in 0 : vector<8x32xf32>, vector<8x32xf32> -> vector<16x32xf32>
    %c1_141 = arith.constant 1 : index
    %c0_142 = arith.constant 0 : index
    %c0_143 = arith.constant 0 : index
    %295 = vector.load %arg10[%c1_141, %c0_142, %c0_143] : memref<2x32x32xf32, #tpu.memory_space<vmem>>, vector<1x32x32xf32>
    %296 = vector.shape_cast %295 : vector<1x32x32xf32> to vector<32x32xf32>
    %cst_144 = arith.constant dense<0.000000e+00> : vector<16x32xf32>
    %297 = tpu.matmul %294, %296, %cst_144 {dimension_numbers = #tpu.dot_dimension_numbers<[1], [0], [0], [1], [0, 0, 1, 1], [], []>} : vector<16x32xf32>, vector<32x32xf32>, vector<16x32xf32> -> vector<16x32xf32>
    %298 = arith.addf %175, %297 : vector<16x32xf32>
    %c1_145 = arith.constant 1 : index
    %c0_146 = arith.constant 0 : index
    %c0_147 = arith.constant 0 : index
    %299 = vector.load %arg11[%c1_145, %c0_146, %c0_147] : memref<2x1x32xf32, #tpu.memory_space<vmem>>, vector<1x1x32xf32>
    %300 = vector.shape_cast %299 : vector<1x1x32xf32> to vector<1x32xf32>
    %301 = vector.broadcast %300 : vector<1x32xf32> to vector<16x32xf32>
    %302 = arith.addf %298, %301 : vector<16x32xf32>
    %c1_148 = arith.constant 1 : index
    %c0_149 = arith.constant 0 : index
    %c0_150 = arith.constant 0 : index
    %303 = vector.load %arg18[%c1_148, %c0_149, %c0_150] : memref<2x1x32xf32, #tpu.memory_space<vmem>>, vector<1x1x32xf32>
    %304 = vector.shape_cast %303 : vector<1x1x32xf32> to vector<1x32xf32>
    %c1_151 = arith.constant 1 : index
    %c0_152 = arith.constant 0 : index
    %c0_153 = arith.constant 0 : index
    %305 = vector.load %arg19[%c1_151, %c0_152, %c0_153] : memref<2x1x32xf32, #tpu.memory_space<vmem>>, vector<1x1x32xf32>
    %306 = vector.shape_cast %305 : vector<1x1x32xf32> to vector<1x32xf32>
    %cst_154 = arith.constant dense<0.000000e+00> : vector<16xf32>
    %307 = vector.multi_reduction <add>, %302, %cst_154 [1] : vector<16x32xf32> to vector<16xf32>
    %308 = vector.shape_cast %307 : vector<16xf32> to vector<16x1xf32>
    %cst_155 = arith.constant 3.200000e+01 : f32
    %309 = vector.broadcast %cst_155 : f32 to vector<16x1xf32>
    %310 = arith.divf %308, %309 : vector<16x1xf32>
    %311 = vector.broadcast %310 : vector<16x1xf32> to vector<16x32xf32>
    %312 = arith.subf %302, %311 : vector<16x32xf32>
    %313 = arith.mulf %312, %312 : vector<16x32xf32>
    %cst_156 = arith.constant dense<0.000000e+00> : vector<16xf32>
    %314 = vector.multi_reduction <add>, %313, %cst_156 [1] : vector<16x32xf32> to vector<16xf32>
    %315 = vector.shape_cast %314 : vector<16xf32> to vector<16x1xf32>
    %cst_157 = arith.constant 0.0322580636 : f32
    %316 = vector.broadcast %cst_157 : f32 to vector<16x1xf32>
    %317 = arith.mulf %315, %316 : vector<16x1xf32>
    %318 = math.sqrt %317 : vector<16x1xf32>
    %cst_158 = arith.constant 9.99999997E-7 : f32
    %319 = vector.broadcast %cst_158 : f32 to vector<16x1xf32>
    %320 = arith.addf %318, %319 : vector<16x1xf32>
    %321 = tpu.reciprocal %320 {approx = true} : vector<16x1xf32> -> vector<16x1xf32>
    %322 = vector.broadcast %310 : vector<16x1xf32> to vector<16x32xf32>
    %323 = arith.subf %302, %322 : vector<16x32xf32>
    %324 = vector.broadcast %304 : vector<1x32xf32> to vector<16x32xf32>
    %325 = arith.mulf %324, %323 : vector<16x32xf32>
    %326 = vector.broadcast %321 : vector<16x1xf32> to vector<16x32xf32>
    %327 = arith.mulf %325, %326 : vector<16x32xf32>
    %328 = vector.broadcast %306 : vector<1x32xf32> to vector<16x32xf32>
    %329 = arith.addf %327, %328 : vector<16x32xf32>
    %c1_159 = arith.constant 1 : index
    %c0_160 = arith.constant 0 : index
    %c0_161 = arith.constant 0 : index
    %330 = vector.load %arg12[%c1_159, %c0_160, %c0_161] : memref<2x32x64xf32, #tpu.memory_space<vmem>>, vector<1x32x64xf32>
    %331 = vector.shape_cast %330 : vector<1x32x64xf32> to vector<32x64xf32>
    %cst_162 = arith.constant dense<0.000000e+00> : vector<16x64xf32>
    %332 = tpu.matmul %329, %331, %cst_162 {dimension_numbers = #tpu.dot_dimension_numbers<[1], [0], [0], [1], [0, 0, 1, 1], [], []>} : vector<16x32xf32>, vector<32x64xf32>, vector<16x64xf32> -> vector<16x64xf32>
    %c1_163 = arith.constant 1 : index
    %c0_164 = arith.constant 0 : index
    %c0_165 = arith.constant 0 : index
    %333 = vector.load %arg13[%c1_163, %c0_164, %c0_165] : memref<2x1x64xf32, #tpu.memory_space<vmem>>, vector<1x1x64xf32>
    %334 = vector.shape_cast %333 : vector<1x1x64xf32> to vector<1x64xf32>
    %335 = vector.broadcast %334 : vector<1x64xf32> to vector<16x64xf32>
    %336 = arith.addf %332, %335 : vector<16x64xf32>
    %cst_166 = arith.constant 0.000000e+00 : f32
    %337 = vector.broadcast %cst_166 : f32 to vector<16x64xf32>
    %338 = arith.maximumf %336, %337 : vector<16x64xf32>
    %c1_167 = arith.constant 1 : index
    %c0_168 = arith.constant 0 : index
    %c0_169 = arith.constant 0 : index
    %339 = vector.load %arg14[%c1_167, %c0_168, %c0_169] : memref<2x64x32xf32, #tpu.memory_space<vmem>>, vector<1x64x32xf32>
    %340 = vector.shape_cast %339 : vector<1x64x32xf32> to vector<64x32xf32>
    %cst_170 = arith.constant dense<0.000000e+00> : vector<16x32xf32>
    %341 = tpu.matmul %338, %340, %cst_170 {dimension_numbers = #tpu.dot_dimension_numbers<[1], [0], [0], [1], [0, 0, 1, 1], [], []>} : vector<16x64xf32>, vector<64x32xf32>, vector<16x32xf32> -> vector<16x32xf32>
    %342 = arith.addf %302, %341 : vector<16x32xf32>
    %c1_171 = arith.constant 1 : index
    %c0_172 = arith.constant 0 : index
    %c0_173 = arith.constant 0 : index
    %343 = vector.load %arg15[%c1_171, %c0_172, %c0_173] : memref<2x1x32xf32, #tpu.memory_space<vmem>>, vector<1x1x32xf32>
    %344 = vector.shape_cast %343 : vector<1x1x32xf32> to vector<1x32xf32>
    %345 = vector.broadcast %344 : vector<1x32xf32> to vector<16x32xf32>
    %346 = arith.addf %342, %345 : vector<16x32xf32>
    %347 = tpu.concatenate %68, %85, %103, %120, %239, %256, %274, %291 in 1 : vector<8x8xf32>, vector<8x8xf32>, vector<8x8xf32>, vector<8x8xf32>, vector<8x8xf32>, vector<8x8xf32>, vector<8x8xf32>, vector<8x8xf32> -> vector<8x64xf32>
    %c0_174 = arith.constant 0 : index
    %c0_175 = arith.constant 0 : index
    %c0_176 = arith.constant 0 : index
    %348 = vector.load %arg23[%c0_174, %c0_175, %c0_176] : memref<1x8x64xf32, #tpu.memory_space<vmem>>, vector<1x8x64xf32>
    %349 = vector.shape_cast %348 : vector<1x8x64xf32> to vector<8x64xf32>
    %350 = vector.shape_cast %347 : vector<8x64xf32> to vector<1x8x64xf32>
    tpu.vector_store %arg23[%c0_174, %c0_175, %c0_176], %350 {strides = array<i32>} : memref<1x8x64xf32, #tpu.memory_space<vmem>>, vector<1x8x64xf32>,
    %c0_177 = arith.constant 0 : index
    %c0_178 = arith.constant 0 : index
    %351 = vector.load %arg20[%c0_177, %c0_178] : memref<1x32xf32, #tpu.memory_space<vmem>>, vector<1x32xf32>
    %cst_179 = arith.constant dense<0.000000e+00> : vector<1x16xf32>
    %352 = tpu.matmul %351, %346, %cst_179 {dimension_numbers = #tpu.dot_dimension_numbers<[1], [1], [0], [0], [0, 0, 1, 0], [], []>} : vector<1x32xf32>, vector<16x32xf32>, vector<1x16xf32> -> vector<1x16xf32>
    %c0_180 = arith.constant 0 : index
    %c0_181 = arith.constant 0 : index
    %353 = vector.load %arg21[%c0_180, %c0_181] : memref<1x1xf32, #tpu.memory_space<vmem>>, vector<1x1xf32>
    %354 = vector.broadcast %353 : vector<1x1xf32> to vector<1x16xf32>
    %355 = arith.addf %352, %354 : vector<1x16xf32>
    %c0_182 = arith.constant 0 : index
    %c0_183 = arith.constant 0 : index
    %c0_184 = arith.constant 0 : index
    %356 = vector.load %arg22[%c0_182, %c0_183, %c0_184] : memref<1x1x16xf32, #tpu.memory_space<vmem>>, vector<1x1x16xf32>
    %357 = vector.shape_cast %356 : vector<1x1x16xf32> to vector<1x16xf32>
    %358 = vector.shape_cast %355 : vector<1x16xf32> to vector<1x1x16xf32>
    tpu.vector_store %arg22[%c0_182, %c0_183, %c0_184], %358 {strides = array<i32>} : memref<1x1x16xf32, #tpu.memory_space<vmem>>, vector<1x1x16xf32>,
    return
  }
  func.func @transform_0(%arg0: i32) -> (i32, i32) {
    %c0_i32 = arith.constant 0 : i32
    %c0_i32_0 = arith.constant 0 : i32
    return %arg0, %c0_i32 : i32, i32
  }
  func.func @transform_1(%arg0: i32) -> (i32, i32) {
    %c0_i32 = arith.constant 0 : i32
    %c0_i32_0 = arith.constant 0 : i32
    %c0_i32_1 = arith.constant 0 : i32
    return %c0_i32, %c0_i32_0 : i32, i32
  }
  func.func @transform_2(%arg0: i32) -> (i32, i32) {
    %c0_i32 = arith.constant 0 : i32
    %c0_i32_0 = arith.constant 0 : i32
    %c0_i32_1 = arith.constant 0 : i32
    return %c0_i32, %c0_i32_0 : i32, i32
  }
  func.func @transform_3(%arg0: i32) -> (i32, i32, i32) {
    %c0_i32 = arith.constant 0 : i32
    %c0_i32_0 = arith.constant 0 : i32
    %c0_i32_1 = arith.constant 0 : i32
    %c0_i32_2 = arith.constant 0 : i32
    return %c0_i32, %c0_i32_0, %c0_i32_1 : i32, i32, i32
  }
  func.func @transform_4(%arg0: i32) -> (i32, i32, i32) {
    %c0_i32 = arith.constant 0 : i32
    %c0_i32_0 = arith.constant 0 : i32
    %c0_i32_1 = arith.constant 0 : i32
    %c0_i32_2 = arith.constant 0 : i32
    return %c0_i32, %c0_i32_0, %c0_i32_1 : i32, i32, i32
  }
  func.func @transform_5(%arg0: i32) -> (i32, i32, i32) {
    %c0_i32 = arith.constant 0 : i32
    %c0_i32_0 = arith.constant 0 : i32
    %c0_i32_1 = arith.constant 0 : i32
    %c0_i32_2 = arith.constant 0 : i32
    return %c0_i32, %c0_i32_0, %c0_i32_1 : i32, i32, i32
  }
  func.func @transform_6(%arg0: i32) -> (i32, i32, i32) {
    %c0_i32 = arith.constant 0 : i32
    %c0_i32_0 = arith.constant 0 : i32
    %c0_i32_1 = arith.constant 0 : i32
    %c0_i32_2 = arith.constant 0 : i32
    return %c0_i32, %c0_i32_0, %c0_i32_1 : i32, i32, i32
  }
  func.func @transform_7(%arg0: i32) -> (i32, i32, i32) {
    %c0_i32 = arith.constant 0 : i32
    %c0_i32_0 = arith.constant 0 : i32
    %c0_i32_1 = arith.constant 0 : i32
    %c0_i32_2 = arith.constant 0 : i32
    return %c0_i32, %c0_i32_0, %c0_i32_1 : i32, i32, i32
  }
  func.func @transform_8(%arg0: i32) -> (i32, i32, i32) {
    %c0_i32 = arith.constant 0 : i32
    %c0_i32_0 = arith.constant 0 : i32
    %c0_i32_1 = arith.constant 0 : i32
    %c0_i32_2 = arith.constant 0 : i32
    return %c0_i32, %c0_i32_0, %c0_i32_1 : i32, i32, i32
  }
  func.func @transform_9(%arg0: i32) -> (i32, i32, i32) {
    %c0_i32 = arith.constant 0 : i32
    %c0_i32_0 = arith.constant 0 : i32
    %c0_i32_1 = arith.constant 0 : i32
    %c0_i32_2 = arith.constant 0 : i32
    return %c0_i32, %c0_i32_0, %c0_i32_1 : i32, i32, i32
  }
  func.func @transform_10(%arg0: i32) -> (i32, i32, i32) {
    %c0_i32 = arith.constant 0 : i32
    %c0_i32_0 = arith.constant 0 : i32
    %c0_i32_1 = arith.constant 0 : i32
    %c0_i32_2 = arith.constant 0 : i32
    return %c0_i32, %c0_i32_0, %c0_i32_1 : i32, i32, i32
  }
  func.func @transform_11(%arg0: i32) -> (i32, i32, i32) {
    %c0_i32 = arith.constant 0 : i32
    %c0_i32_0 = arith.constant 0 : i32
    %c0_i32_1 = arith.constant 0 : i32
    %c0_i32_2 = arith.constant 0 : i32
    return %c0_i32, %c0_i32_0, %c0_i32_1 : i32, i32, i32
  }
  func.func @transform_12(%arg0: i32) -> (i32, i32, i32) {
    %c0_i32 = arith.constant 0 : i32
    %c0_i32_0 = arith.constant 0 : i32
    %c0_i32_1 = arith.constant 0 : i32
    %c0_i32_2 = arith.constant 0 : i32
    return %c0_i32, %c0_i32_0, %c0_i32_1 : i32, i32, i32
  }
  func.func @transform_13(%arg0: i32) -> (i32, i32, i32) {
    %c0_i32 = arith.constant 0 : i32
    %c0_i32_0 = arith.constant 0 : i32
    %c0_i32_1 = arith.constant 0 : i32
    %c0_i32_2 = arith.constant 0 : i32
    return %c0_i32, %c0_i32_0, %c0_i32_1 : i32, i32, i32
  }
  func.func @transform_14(%arg0: i32) -> (i32, i32, i32) {
    %c0_i32 = arith.constant 0 : i32
    %c0_i32_0 = arith.constant 0 : i32
    %c0_i32_1 = arith.constant 0 : i32
    %c0_i32_2 = arith.constant 0 : i32
    return %c0_i32, %c0_i32_0, %c0_i32_1 : i32, i32, i32
  }
  func.func @transform_15(%arg0: i32) -> (i32, i32, i32) {
    %c0_i32 = arith.constant 0 : i32
    %c0_i32_0 = arith.constant 0 : i32
    %c0_i32_1 = arith.constant 0 : i32
    %c0_i32_2 = arith.constant 0 : i32
    return %c0_i32, %c0_i32_0, %c0_i32_1 : i32, i32, i32
  }
  func.func @transform_16(%arg0: i32) -> (i32, i32, i32) {
    %c0_i32 = arith.constant 0 : i32
    %c0_i32_0 = arith.constant 0 : i32
    %c0_i32_1 = arith.constant 0 : i32
    %c0_i32_2 = arith.constant 0 : i32
    return %c0_i32, %c0_i32_0, %c0_i32_1 : i32, i32, i32
  }
  func.func @transform_17(%arg0: i32) -> (i32, i32, i32) {
    %c0_i32 = arith.constant 0 : i32
    %c0_i32_0 = arith.constant 0 : i32
    %c0_i32_1 = arith.constant 0 : i32
    %c0_i32_2 = arith.constant 0 : i32
    return %c0_i32, %c0_i32_0, %c0_i32_1 : i32, i32, i32
  }
  func.func @transform_18(%arg0: i32) -> (i32, i32, i32) {
    %c0_i32 = arith.constant 0 : i32
    %c0_i32_0 = arith.constant 0 : i32
    %c0_i32_1 = arith.constant 0 : i32
    %c0_i32_2 = arith.constant 0 : i32
    return %c0_i32, %c0_i32_0, %c0_i32_1 : i32, i32, i32
  }
  func.func @transform_19(%arg0: i32) -> (i32, i32) {
    %c0_i32 = arith.constant 0 : i32
    %c0_i32_0 = arith.constant 0 : i32
    %c0_i32_1 = arith.constant 0 : i32
    return %c0_i32, %c0_i32_0 : i32, i32
  }
  func.func @transform_20(%arg0: i32) -> (i32, i32) {
    %c0_i32 = arith.constant 0 : i32
    %c0_i32_0 = arith.constant 0 : i32
    %c0_i32_1 = arith.constant 0 : i32
    return %c0_i32, %c0_i32_0 : i32, i32
  }
  func.func @transform_21(%arg0: i32) -> (i32, i32, i32) {
    %c0_i32 = arith.constant 0 : i32
    %c0_i32_0 = arith.constant 0 : i32
    %c0_i32_1 = arith.constant 0 : i32
    return %arg0, %c0_i32, %c0_i32_0 : i32, i32, i32
  }
  func.func @transform_22(%arg0: i32) -> (i32, i32, i32) {
    %c0_i32 = arith.constant 0 : i32
    %c0_i32_0 = arith.constant 0 : i32
    %c0_i32_1 = arith.constant 0 : i32
    return %arg0, %c0_i32, %c0_i32_0 : i32, i32, i32
  }
}

</mosaic_0001>

<llo_original>
// kernel: decoder_transformer_forward.1
$region0: #{decoder_transformer_forward.1}
  #allocation0 [shape = 'u32[]', space=smem, size = 0x4, offset = 0x4, fixed_abs, tag = 'smem constant byte address 0x4 - core index']
  #allocation1 [shape = 'u32[144,128]{1,0:T(1,128)}', space=vmem, size = 0x12000, scoped, tag = 'internal scratch']
  #allocation2 [shape = 'f32[1,1]{1,0:T(1,128)S(1)}', space=vmem, size = 0x200, scoped, tag = 'scoped memory for decoder_transformer_forward.1']
  %s0 = inlined_call_operand.vmem [shape: f32[16,128], index: 0, kind: input, shape index: {}]
  %s1 = inlined_call_operand.vmem [shape: f32[128,32], index: 1, kind: input, shape index: {}]
  %s2 = inlined_call_operand.vmem [shape: f32[16,32], index: 2, kind: input, shape index: {}]
  %s3 = inlined_call_operand.vmem [shape: f32[2,32,32], index: 3, kind: input, shape index: {}]
  %s4 = inlined_call_operand.vmem [shape: f32[2,1,32], index: 4, kind: input, shape index: {}]
  %s5 = inlined_call_operand.vmem [shape: f32[2,32,32], index: 5, kind: input, shape index: {}]
  %s6 = inlined_call_operand.vmem [shape: f32[2,1,32], index: 6, kind: input, shape index: {}]
  %s7 = inlined_call_operand.vmem [shape: f32[2,32,32], index: 7, kind: input, shape index: {}]
  %s8 = inlined_call_operand.vmem [shape: f32[2,1,32], index: 8, kind: input, shape index: {}]
  %s9 = inlined_call_operand.vmem [shape: f32[2,32,32], index: 9, kind: input, shape index: {}]
  %s10 = inlined_call_operand.vmem [shape: f32[2,1,32], index: 10, kind: input, shape index: {}]
  %s11 = inlined_call_operand.vmem [shape: f32[2,32,64], index: 11, kind: input, shape index: {}]
  %s12 = inlined_call_operand.vmem [shape: f32[2,1,64], index: 12, kind: input, shape index: {}]
  %s13 = inlined_call_operand.vmem [shape: f32[2,64,32], index: 13, kind: input, shape index: {}]
  %s14 = inlined_call_operand.vmem [shape: f32[2,1,32], index: 14, kind: input, shape index: {}]
  %s15 = inlined_call_operand.vmem [shape: f32[2,1,32], index: 15, kind: input, shape index: {}]
  %s16 = inlined_call_operand.vmem [shape: f32[2,1,32], index: 16, kind: input, shape index: {}]
  %s17 = inlined_call_operand.vmem [shape: f32[2,1,32], index: 17, kind: input, shape index: {}]
  %s18 = inlined_call_operand.vmem [shape: f32[2,1,32], index: 18, kind: input, shape index: {}]
  %s19 = inlined_call_operand.vmem [shape: f32[1,32], index: 19, kind: input, shape index: {}]
  %s20 = inlined_call_operand.<no memory space> [shape: f32[1,1], index: 20, kind: input, shape index: {}]
  %s21 = inlined_call_operand.vmem [shape: f32[1,1,16], index: 21, kind: output, shape index: {0}]
  %s22 = inlined_call_operand.vmem [shape: f32[1,8,64], index: 22, kind: output, shape index: {1}]
  %23 = xla_tuple %s21, %s22
  %s24 = sld [smem:[#allocation0]]
  $region102: #{decoder_transformer_forward.1} parent=0
    _
  %s26 = ssub.s32 1, %s24
  %s27 = scalar_select 0, %s26, %s24
  %v28 = vstv %s20
  %29 = vst [vmem:[#allocation2] sm:$0x1] %v28
  // Predicated region
  $region2: #{decoder_transformer_forward.1} parent=0 // pred_check
    _
  $region3: #{decoder_transformer_forward.1} parent=0 // pred_check_branch
    %31 = sbr.rel (0) target = $region5
  $region4: #{decoder_transformer_forward.1} parent=0 // pred_region
    _
  $region5: #{decoder_transformer_forward.1} parent=0 // pred_fallthru
    _
  // Predicated region
  $region6: #{decoder_transformer_forward.1} parent=0 // pred_check
    _
  $region7: #{decoder_transformer_forward.1} parent=0 // pred_check_branch
    %33 = sbr.rel (0) target = $region9
  $region8: #{decoder_transformer_forward.1} parent=0 // pred_region
    _
  $region9: #{decoder_transformer_forward.1} parent=0 // pred_fallthru
    _
  // Predicated region
  $region10: #{decoder_transformer_forward.1} parent=0 // pred_check
    _
  $region11: #{decoder_transformer_forward.1} parent=0 // pred_check_branch
    %35 = sbr.rel (0) target = $region13
  $region12: #{decoder_transformer_forward.1} parent=0 // pred_region
    _
  $region13: #{decoder_transformer_forward.1} parent=0 // pred_fallthru
    _
  // Predicated region
  $region14: #{decoder_transformer_forward.1} parent=0 // pred_check
    _
  $region15: #{decoder_transformer_forward.1} parent=0 // pred_check_branch
    %37 = sbr.rel (0) target = $region17
  $region16: #{decoder_transformer_forward.1} parent=0 // pred_region
    _
  $region17: #{decoder_transformer_forward.1} parent=0 // pred_fallthru
    _
  // Predicated region
  $region18: #{decoder_transformer_forward.1} parent=0 // pred_check
    _
  $region19: #{decoder_transformer_forward.1} parent=0 // pred_check_branch
    %39 = sbr.rel (0) target = $region21
  $region20: #{decoder_transformer_forward.1} parent=0 // pred_region
    _
  $region21: #{decoder_transformer_forward.1} parent=0 // pred_fallthru
    _
  // Predicated region
  $region22: #{decoder_transformer_forward.1} parent=0 // pred_check
    _
  $region23: #{decoder_transformer_forward.1} parent=0 // pred_check_branch
    %41 = sbr.rel (0) target = $region25
  $region24: #{decoder_transformer_forward.1} parent=0 // pred_region
    _
  $region25: #{decoder_transformer_forward.1} parent=0 // pred_fallthru
    _
  // Predicated region
  $region26: #{decoder_transformer_forward.1} parent=0 // pred_check
    _
  $region27: #{decoder_transformer_forward.1} parent=0 // pred_check_branch
    %43 = sbr.rel (0) target = $region29
  $region28: #{decoder_transformer_forward.1} parent=0 // pred_region
    _
  $region29: #{decoder_transformer_forward.1} parent=0 // pred_fallthru
    _
  // Predicated region
  $region30: #{decoder_transformer_forward.1} parent=0 // pred_check
    _
  $region31: #{decoder_transformer_forward.1} parent=0 // pred_check_branch
    %45 = sbr.rel (0) target = $region33
  $region32: #{decoder_transformer_forward.1} parent=0 // pred_region
    _
  $region33: #{decoder_transformer_forward.1} parent=0 // pred_fallthru
    _
  // Predicated region
  $region34: #{decoder_transformer_forward.1} parent=0 // pred_check
    _
  $region35: #{decoder_transformer_forward.1} parent=0 // pred_check_branch
    %47 = sbr.rel (0) target = $region37
  $region36: #{decoder_transformer_forward.1} parent=0 // pred_region
    _
  $region37: #{decoder_transformer_forward.1} parent=0 // pred_fallthru
    _
  // Predicated region
  $region38: #{decoder_transformer_forward.1} parent=0 // pred_check
    _
  $region39: #{decoder_transformer_forward.1} parent=0 // pred_check_branch
    %49 = sbr.rel (0) target = $region41
  $region40: #{decoder_transformer_forward.1} parent=0 // pred_region
    _
  $region41: #{decoder_transformer_forward.1} parent=0 // pred_fallthru
    _
  // Predicated region
  $region42: #{decoder_transformer_forward.1} parent=0 // pred_check
    _
  $region43: #{decoder_transformer_forward.1} parent=0 // pred_check_branch
    %51 = sbr.rel (0) target = $region45
  $region44: #{decoder_transformer_forward.1} parent=0 // pred_region
    _
  $region45: #{decoder_transformer_forward.1} parent=0 // pred_fallthru
    _
  // Predicated region
  $region46: #{decoder_transformer_forward.1} parent=0 // pred_check
    _
  $region47: #{decoder_transformer_forward.1} parent=0 // pred_check_branch
    %53 = sbr.rel (0) target = $region49
  $region48: #{decoder_transformer_forward.1} parent=0 // pred_region
    _
  $region49: #{decoder_transformer_forward.1} parent=0 // pred_fallthru
    _
  // Predicated region
  $region50: #{decoder_transformer_forward.1} parent=0 // pred_check
    _
  $region51: #{decoder_transformer_forward.1} parent=0 // pred_check_branch
    %55 = sbr.rel (0) target = $region53
  $region52: #{decoder_transformer_forward.1} parent=0 // pred_region
    _
  $region53: #{decoder_transformer_forward.1} parent=0 // pred_fallthru
    _
  // Predicated region
  $region54: #{decoder_transformer_forward.1} parent=0 // pred_check
    _
  $region55: #{decoder_transformer_forward.1} parent=0 // pred_check_branch
    %57 = sbr.rel (0) target = $region57
  $region56: #{decoder_transformer_forward.1} parent=0 // pred_region
    _
  $region57: #{decoder_transformer_forward.1} parent=0 // pred_fallthru
    _
  // Predicated region
  $region58: #{decoder_transformer_forward.1} parent=0 // pred_check
    _
  $region59: #{decoder_transformer_forward.1} parent=0 // pred_check_branch
    %59 = sbr.rel (0) target = $region61
  $region60: #{decoder_transformer_forward.1} parent=0 // pred_region
    _
  $region61: #{decoder_transformer_forward.1} parent=0 // pred_fallthru
    _
  // Predicated region
  $region62: #{decoder_transformer_forward.1} parent=0 // pred_check
    _
  $region63: #{decoder_transformer_forward.1} parent=0 // pred_check_branch
    %61 = sbr.rel (0) target = $region65
  $region64: #{decoder_transformer_forward.1} parent=0 // pred_region
    _
  $region65: #{decoder_transformer_forward.1} parent=0 // pred_fallthru
    _
  // Predicated region
  $region66: #{decoder_transformer_forward.1} parent=0 // pred_check
    _
  $region67: #{decoder_transformer_forward.1} parent=0 // pred_check_branch
    %63 = sbr.rel (0) target = $region69
  $region68: #{decoder_transformer_forward.1} parent=0 // pred_region
    _
  $region69: #{decoder_transformer_forward.1} parent=0 // pred_fallthru
    _
  // Predicated region
  $region70: #{decoder_transformer_forward.1} parent=0 // pred_check
    _
  $region71: #{decoder_transformer_forward.1} parent=0 // pred_check_branch
    %65 = sbr.rel (0) target = $region73
  $region72: #{decoder_transformer_forward.1} parent=0 // pred_region
    _
  $region73: #{decoder_transformer_forward.1} parent=0 // pred_fallthru
    _
  // Predicated region
  $region74: #{decoder_transformer_forward.1} parent=0 // pred_check
    _
  $region75: #{decoder_transformer_forward.1} parent=0 // pred_check_branch
    %67 = sbr.rel (0) target = $region77
  $region76: #{decoder_transformer_forward.1} parent=0 // pred_region
    _
  $region77: #{decoder_transformer_forward.1} parent=0 // pred_fallthru
    _
  // Predicated region
  $region78: #{decoder_transformer_forward.1} parent=0 // pred_check
    _
  $region79: #{decoder_transformer_forward.1} parent=0 // pred_check_branch
    %69 = sbr.rel (0) target = $region81
  $region80: #{decoder_transformer_forward.1} parent=0 // pred_region
    _
  $region81: #{decoder_transformer_forward.1} parent=0 // pred_fallthru
    _
  // Predicated region
  $region82: #{decoder_transformer_forward.1} parent=0 // pred_check
    _
  $region83: #{decoder_transformer_forward.1} parent=0 // pred_check_branch
    %71 = sbr.rel (0) target = $region85
  $region84: #{decoder_transformer_forward.1} parent=0 // pred_region
    _
  $region85: #{decoder_transformer_forward.1} parent=0 // pred_fallthru
    _
  %v72 = vld [vmem:[%s0] sm:$0xff]
  %v73 = vld [vmem:[%s0 + $0x8] sm:$0xff]
  %v74 = vld [vmem:[%s1] sm:$0xff]
  %v75 = vld [vmem:[%s1 + $0x8] sm:$0xff]
  %v76 = vld [vmem:[%s1 + $0x10] sm:$0xff]
  %v77 = vld [vmem:[%s1 + $0x18] sm:$0xff]
  %v78 = vld [vmem:[%s1 + $0x20] sm:$0xff]
  %v79 = vld [vmem:[%s1 + $0x28] sm:$0xff]
  %v80 = vld [vmem:[%s1 + $0x30] sm:$0xff]
  %v81 = vld [vmem:[%s1 + $0x38] sm:$0xff]
  %v82 = vld [vmem:[%s1 + $0x40] sm:$0xff]
  %v83 = vld [vmem:[%s1 + $0x48] sm:$0xff]
  %v84 = vld [vmem:[%s1 + $0x50] sm:$0xff]
  %v85 = vld [vmem:[%s1 + $0x58] sm:$0xff]
  %v86 = vld [vmem:[%s1 + $0x60] sm:$0xff]
  %v87 = vld [vmem:[%s1 + $0x68] sm:$0xff]
  %v88 = vld [vmem:[%s1 + $0x70] sm:$0xff]
  %v89 = vld [vmem:[%s1 + $0x78] sm:$0xff]
  %v90 = vld [vmem:[%s2] sm:$0xff]
  %v91 = vld [vmem:[%s2 + $0x8] sm:$0xff]
  %92 = vmatprep.subr.mxu0 0.0
  %93 = vmatpush1.msra.mxu0 %v89
  %94 = vmatprep.subr.mxu0 0.0
  %95 = vmatpush1.msra.mxu0 %v88
  %96 = vmatprep.subr.mxu0 0.0
  %97 = vmatpush1.msra.mxu0 %v87
  %98 = vmatprep.subr.mxu0 0.0
  %99 = vmatpush1.msra.mxu0 %v86
  %100 = vmatprep.subr.mxu0 0.0
  %101 = vmatpush1.msra.mxu0 %v85
  %102 = vmatprep.subr.mxu0 0.0
  %103 = vmatpush1.msra.mxu0 %v84
  %104 = vmatprep.subr.mxu0 0.0
  %105 = vmatpush1.msra.mxu0 %v83
  %106 = vmatprep.subr.mxu0 0.0
  %107 = vmatpush1.msra.mxu0 %v82
  %108 = vmatprep.subr.mxu0 0.0
  %109 = vmatpush1.msra.mxu0 %v81
  %110 = vmatprep.subr.mxu0 0.0
  %111 = vmatpush1.msra.mxu0 %v80
  %112 = vmatprep.subr.mxu0 0.0
  %113 = vmatpush1.msra.mxu0 %v79
  %114 = vmatprep.subr.mxu0 0.0
  %115 = vmatpush1.msra.mxu0 %v78
  %116 = vmatprep.subr.mxu0 0.0
  %117 = vmatpush1.msra.mxu0 %v77
  %118 = vmatprep.subr.mxu0 0.0
  %119 = vmatpush1.msra.mxu0 %v76
  %120 = vmatprep.subr.mxu0 0.0
  %121 = vmatpush1.msra.mxu0 %v75
  %122 = vmatprep.subr.mxu0 0.0
  %123 = vmatpush1.msra.mxu0 %v74
  %124 = vmatprep.subr.mxu0 0.0
  %125 = vmatpush2.msra.mxu0 0.0
  %126 = vmatprep.subr.mxu0 0.0
  %127 = vmatpush2.msra.mxu0 0.0
  %128 = vmatprep.subr.mxu0 0.0
  %129 = vmatpush2.msra.mxu0 0.0
  %130 = vmatprep.subr.mxu0 0.0
  %131 = vmatpush2.msra.mxu0 0.0
  %132 = vmatprep.subr.mxu0 0.0
  %133 = vmatpush2.msra.mxu0 0.0
  %134 = vmatprep.subr.mxu0 0.0
  %135 = vmatpush2.msra.mxu0 0.0
  %136 = vmatprep.subr.mxu0 0.0
  %137 = vmatpush2.msra.mxu0 0.0
  %138 = vmatprep.subr.mxu0 0.0
  %139 = vmatpush2.msra.mxu0 0.0
  %140 = vmatprep.subr.mxu0 0.0
  %141 = vmatpush2.msra.mxu0 0.0
  %142 = vmatprep.subr.mxu0 0.0
  %143 = vmatpush2.msra.mxu0 0.0
  %144 = vmatprep.subr.mxu0 0.0
  %145 = vmatpush2.msra.mxu0 0.0
  %146 = vmatprep.subr.mxu0 0.0
  %147 = vmatpush2.msra.mxu0 0.0
  %148 = vmatprep.subr.mxu0 0.0
  %149 = vmatpush2.msra.mxu0 0.0
  %150 = vmatprep.subr.mxu0 0.0
  %151 = vmatpush2.msra.mxu0 0.0
  %152 = vmatprep.subr.mxu0 0.0
  %153 = vmatpush2.msra.mxu0 0.0
  %154 = vmatprep.subr.mxu0 0.0
  %155 = vmatpush2.msra.mxu0 0.0
  %156 = vmatprep.mubr.f32.mxu0 0.0
  %157 = vmatmul.mubr.f32.gmra.mxu0 %v72
  %v158 = vpop.f32.mrf.mxu0
  %v159 = vadd.f32 %v90, %v158
  %v160 = vpop.f32.mrf.mxu0
  %161 = vmatprep.mubr.f32.mxu0 0.0
  %162 = vmatmul.mubr.f32.gmra.mxu0 %v73
  %v163 = vpop.f32.mrf.mxu0
  %v164 = vadd.f32 %v91, %v163
  %v165 = vpop.f32.mrf.mxu0
  %166 = vdwg.mxu0
  %v167 = vld [vmem:[%s15] sm:$0x1]
  %v168 = vld [vmem:[%s16] sm:$0x1]
  %vm169 = vcmask 261120
  %v170 = vsel %vm169, %v159, 0.0
  %171 = vadd.xlane.f32.xlu0 %v170
  %v172 = vpop.xlane.xlu0 %171
  %v173 = vsel %vm169, %v164, 0.0
  %174 = vadd.xlane.f32.xlu0 %v173
  %v175 = vpop.xlane.xlu0 %174
  %v176 = vrcp.pop 32.0
  %v177 = vmul.f32 %v172, %v176
  %v178 = vmul.f32 %v175, %v176
  %v179 = vsub.f32 %v159, %v177
  %v180 = vsub.f32 %v164, %v178
  %v181 = vmul.f32 %v179, %v179
  %v182 = vmul.f32 %v180, %v180
  %v183 = vsel %vm169, %v181, 0.0
  %184 = vadd.xlane.f32.xlu0 %v183
  %v185 = vpop.xlane.xlu0 %184
  %v186 = vsel %vm169, %v182, 0.0
  %187 = vadd.xlane.f32.xlu0 %v186
  %v188 = vpop.xlane.xlu0 %187
  %v189 = vmul.f32 %v185, 0.032258064
  %v190 = vmul.f32 %v188, 0.032258064
  %v191 = vrsqrt.pop %v189
  %v192 = vmul.f32 %v189, %v191
  %vm193 = vcmp.eq.f32.partialorder %v189, inf
  %v194 = vsel %vm193, %v189, %v192
  %vm195 = vcmp.eq.f32.partialorder %v189, 0.0
  %v196 = vand.u32 %v189, 2147483648
  %v197 = vsel %vm195, %v196, %v194
  %v198 = vrsqrt.pop %v190
  %v199 = vmul.f32 %v190, %v198
  %vm200 = vcmp.eq.f32.partialorder %v190, inf
  %v201 = vsel %vm200, %v190, %v199
  %vm202 = vcmp.eq.f32.partialorder %v190, 0.0
  %v203 = vand.u32 %v190, 2147483648
  %v204 = vsel %vm202, %v203, %v201
  %v205 = vadd.f32 %v197, 1e-06
  %v206 = vadd.f32 %v204, 1e-06
  %v207 = vrcp.pop %v205
  %v208 = vrcp.pop %v206
  %v210 = vlaneseq
  %v211 = vshrl.u32 %v210, 7
  %v212 = vsub.s32 0, %v211
  %v213 = vrot.slane %v167, %v212
  %v215 = vmul.f32 %v213, %v179
  %v216 = vmul.f32 %v213, %v180
  %v217 = vmul.f32 %v215, %v207
  %v218 = vmul.f32 %v216, %v208
  %v220 = vlaneseq
  %v221 = vshrl.u32 %v220, 7
  %v222 = vsub.s32 0, %v221
  %v223 = vrot.slane %v168, %v222
  %v225 = vadd.f32 %v217, %v223
  %v226 = vadd.f32 %v218, %v223
  %v227 = vld [vmem:[%s3] sm:$0xff]
  %v228 = vld [vmem:[%s3 + $0x8] sm:$0xff]
  %v229 = vld [vmem:[%s3 + $0x10] sm:$0xff]
  %v230 = vld [vmem:[%s3 + $0x18] sm:$0xff]
  %v231 = vld [vmem:[%s4] sm:$0x1]
  %v233 = vlaneseq
  %v234 = vshrl.u32 %v233, 7
  %v235 = vsub.s32 0, %v234
  %v236 = vrot.slane %v231, %v235
  %v239 = vsel %vm169, %v225, 0
  %v242 = vsel %vm169, %v226, 0
  %244 = vmatprep.subr.mxu0 0.0
  %245 = vmatpush1.msra.mxu0 0.0
  %246 = vmatprep.subr.mxu0 0.0
  %247 = vmatpush1.msra.mxu0 0.0
  %248 = vmatprep.subr.mxu0 0.0
  %249 = vmatpush1.msra.mxu0 0.0
  %250 = vmatprep.subr.mxu0 0.0
  %251 = vmatpush1.msra.mxu0 0.0
  %252 = vmatprep.subr.mxu0 0.0
  %253 = vmatpush1.msra.mxu0 0.0
  %254 = vmatprep.subr.mxu0 0.0
  %255 = vmatpush1.msra.mxu0 0.0
  %256 = vmatprep.subr.mxu0 0.0
  %257 = vmatpush1.msra.mxu0 0.0
  %258 = vmatprep.subr.mxu0 0.0
  %259 = vmatpush1.msra.mxu0 0.0
  %260 = vmatprep.subr.mxu0 0.0
  %261 = vmatpush1.msra.mxu0 0.0
  %262 = vmatprep.subr.mxu0 0.0
  %263 = vmatpush1.msra.mxu0 0.0
  %264 = vmatprep.subr.mxu0 0.0
  %265 = vmatpush1.msra.mxu0 0.0
  %266 = vmatprep.subr.mxu0 0.0
  %267 = vmatpush1.msra.mxu0 0.0
  %268 = vmatprep.subr.mxu0 0.0
  %269 = vmatpush1.msra.mxu0 %v230
  %270 = vmatprep.subr.mxu0 0.0
  %271 = vmatpush1.msra.mxu0 %v229
  %272 = vmatprep.subr.mxu0 0.0
  %273 = vmatpush1.msra.mxu0 %v228
  %274 = vmatprep.subr.mxu0 0.0
  %275 = vmatpush1.msra.mxu0 %v227
  %276 = vmatprep.subr.mxu0 0.0
  %277 = vmatpush2.msra.mxu0 0.0
  %278 = vmatprep.subr.mxu0 0.0
  %279 = vmatpush2.msra.mxu0 0.0
  %280 = vmatprep.subr.mxu0 0.0
  %281 = vmatpush2.msra.mxu0 0.0
  %282 = vmatprep.subr.mxu0 0.0
  %283 = vmatpush2.msra.mxu0 0.0
  %284 = vmatprep.subr.mxu0 0.0
  %285 = vmatpush2.msra.mxu0 0.0
  %286 = vmatprep.subr.mxu0 0.0
  %287 = vmatpush2.msra.mxu0 0.0
  %288 = vmatprep.subr.mxu0 0.0
  %289 = vmatpush2.msra.mxu0 0.0
  %290 = vmatprep.subr.mxu0 0.0
  %291 = vmatpush2.msra.mxu0 0.0
  %292 = vmatprep.subr.mxu0 0.0
  %293 = vmatpush2.msra.mxu0 0.0
  %294 = vmatprep.subr.mxu0 0.0
  %295 = vmatpush2.msra.mxu0 0.0
  %296 = vmatprep.subr.mxu0 0.0
  %297 = vmatpush2.msra.mxu0 0.0
  %298 = vmatprep.subr.mxu0 0.0
  %299 = vmatpush2.msra.mxu0 0.0
  %300 = vmatprep.subr.mxu0 0.0
  %301 = vmatpush2.msra.mxu0 0.0
  %302 = vmatprep.subr.mxu0 0.0
  %303 = vmatpush2.msra.mxu0 0.0
  %304 = vmatprep.subr.mxu0 0.0
  %305 = vmatpush2.msra.mxu0 0.0
  %306 = vmatprep.subr.mxu0 0.0
  %307 = vmatpush2.msra.mxu0 0.0
  %308 = vmatprep.mubr.f32.mxu0 0.0
  %309 = vmatmul.mubr.f32.gmra.mxu0 %v239
  %v310 = vpop.f32.mrf.mxu0
  %v311 = vadd.f32 %v236, %v310
  %v312 = vpop.f32.mrf.mxu0
  %313 = vmatprep.mubr.f32.mxu0 0.0
  %314 = vmatmul.mubr.f32.gmra.mxu0 %v242
  %v315 = vpop.f32.mrf.mxu0
  %v316 = vadd.f32 %v236, %v315
  %v317 = vpop.f32.mrf.mxu0
  %318 = vdwg.mxu0
  %v319 = vld [vmem:[%s5] sm:$0xff]
  %v320 = vld [vmem:[%s5 + $0x8] sm:$0xff]
  %v321 = vld [vmem:[%s5 + $0x10] sm:$0xff]
  %v322 = vld [vmem:[%s5 + $0x18] sm:$0xff]
  %v323 = vld [vmem:[%s6] sm:$0x1]
  %v325 = vlaneseq
  %v326 = vshrl.u32 %v325, 7
  %v327 = vsub.s32 0, %v326
  %v328 = vrot.slane %v323, %v327
  %330 = vmatprep.subr.mxu0 0.0
  %331 = vmatpush1.msra.mxu0 0.0
  %332 = vmatprep.subr.mxu0 0.0
  %333 = vmatpush1.msra.mxu0 0.0
  %334 = vmatprep.subr.mxu0 0.0
  %335 = vmatpush1.msra.mxu0 0.0
  %336 = vmatprep.subr.mxu0 0.0
  %337 = vmatpush1.msra.mxu0 0.0
  %338 = vmatprep.subr.mxu0 0.0
  %339 = vmatpush1.msra.mxu0 0.0
  %340 = vmatprep.subr.mxu0 0.0
  %341 = vmatpush1.msra.mxu0 0.0
  %342 = vmatprep.subr.mxu0 0.0
  %343 = vmatpush1.msra.mxu0 0.0
  %344 = vmatprep.subr.mxu0 0.0
  %345 = vmatpush1.msra.mxu0 0.0
  %346 = vmatprep.subr.mxu0 0.0
  %347 = vmatpush1.msra.mxu0 0.0
  %348 = vmatprep.subr.mxu0 0.0
  %349 = vmatpush1.msra.mxu0 0.0
  %350 = vmatprep.subr.mxu0 0.0
  %351 = vmatpush1.msra.mxu0 0.0
  %352 = vmatprep.subr.mxu0 0.0
  %353 = vmatpush1.msra.mxu0 0.0
  %354 = vmatprep.subr.mxu0 0.0
  %355 = vmatpush1.msra.mxu0 %v322
  %356 = vmatprep.subr.mxu0 0.0
  %357 = vmatpush1.msra.mxu0 %v321
  %358 = vmatprep.subr.mxu0 0.0
  %359 = vmatpush1.msra.mxu0 %v320
  %360 = vmatprep.subr.mxu0 0.0
  %361 = vmatpush1.msra.mxu0 %v319
  %362 = vmatprep.subr.mxu0 0.0
  %363 = vmatpush2.msra.mxu0 0.0
  %364 = vmatprep.subr.mxu0 0.0
  %365 = vmatpush2.msra.mxu0 0.0
  %366 = vmatprep.subr.mxu0 0.0
  %367 = vmatpush2.msra.mxu0 0.0
  %368 = vmatprep.subr.mxu0 0.0
  %369 = vmatpush2.msra.mxu0 0.0
  %370 = vmatprep.subr.mxu0 0.0
  %371 = vmatpush2.msra.mxu0 0.0
  %372 = vmatprep.subr.mxu0 0.0
  %373 = vmatpush2.msra.mxu0 0.0
  %374 = vmatprep.subr.mxu0 0.0
  %375 = vmatpush2.msra.mxu0 0.0
  %376 = vmatprep.subr.mxu0 0.0
  %377 = vmatpush2.msra.mxu0 0.0
  %378 = vmatprep.subr.mxu0 0.0
  %379 = vmatpush2.msra.mxu0 0.0
  %380 = vmatprep.subr.mxu0 0.0
  %381 = vmatpush2.msra.mxu0 0.0
  %382 = vmatprep.subr.mxu0 0.0
  %383 = vmatpush2.msra.mxu0 0.0
  %384 = vmatprep.subr.mxu0 0.0
  %385 = vmatpush2.msra.mxu0 0.0
  %386 = vmatprep.subr.mxu0 0.0
  %387 = vmatpush2.msra.mxu0 0.0
  %388 = vmatprep.subr.mxu0 0.0
  %389 = vmatpush2.msra.mxu0 0.0
  %390 = vmatprep.subr.mxu0 0.0
  %391 = vmatpush2.msra.mxu0 0.0
  %392 = vmatprep.subr.mxu0 0.0
  %393 = vmatpush2.msra.mxu0 0.0
  %394 = vmatprep.mubr.f32.mxu0 0.0
  %395 = vmatmul.mubr.f32.gmra.mxu0 %v239
  %v396 = vpop.f32.mrf.mxu0
  %v397 = vadd.f32 %v328, %v396
  %v398 = vpop.f32.mrf.mxu0
  %399 = vmatprep.mubr.f32.mxu0 0.0
  %400 = vmatmul.mubr.f32.gmra.mxu0 %v242
  %v401 = vpop.f32.mrf.mxu0
  %v402 = vadd.f32 %v328, %v401
  %v403 = vpop.f32.mrf.mxu0
  %404 = vdwg.mxu0
  %v405 = vld [vmem:[%s7] sm:$0xff]
  %v406 = vld [vmem:[%s7 + $0x8] sm:$0xff]
  %v407 = vld [vmem:[%s7 + $0x10] sm:$0xff]
  %v408 = vld [vmem:[%s7 + $0x18] sm:$0xff]
  %v409 = vld [vmem:[%s8] sm:$0x1]
  %v411 = vlaneseq
  %v412 = vshrl.u32 %v411, 7
  %v413 = vsub.s32 0, %v412
  %v414 = vrot.slane %v409, %v413
  %416 = vmatprep.subr.mxu0 0.0
  %417 = vmatpush1.msra.mxu0 0.0
  %418 = vmatprep.subr.mxu0 0.0
  %419 = vmatpush1.msra.mxu0 0.0
  %420 = vmatprep.subr.mxu0 0.0
  %421 = vmatpush1.msra.mxu0 0.0
  %422 = vmatprep.subr.mxu0 0.0
  %423 = vmatpush1.msra.mxu0 0.0
  %424 = vmatprep.subr.mxu0 0.0
  %425 = vmatpush1.msra.mxu0 0.0
  %426 = vmatprep.subr.mxu0 0.0
  %427 = vmatpush1.msra.mxu0 0.0
  %428 = vmatprep.subr.mxu0 0.0
  %429 = vmatpush1.msra.mxu0 0.0
  %430 = vmatprep.subr.mxu0 0.0
  %431 = vmatpush1.msra.mxu0 0.0
  %432 = vmatprep.subr.mxu0 0.0
  %433 = vmatpush1.msra.mxu0 0.0
  %434 = vmatprep.subr.mxu0 0.0
  %435 = vmatpush1.msra.mxu0 0.0
  %436 = vmatprep.subr.mxu0 0.0
  %437 = vmatpush1.msra.mxu0 0.0
  %438 = vmatprep.subr.mxu0 0.0
  %439 = vmatpush1.msra.mxu0 0.0
  %440 = vmatprep.subr.mxu0 0.0
  %441 = vmatpush1.msra.mxu0 %v408
  %442 = vmatprep.subr.mxu0 0.0
  %443 = vmatpush1.msra.mxu0 %v407
  %444 = vmatprep.subr.mxu0 0.0
  %445 = vmatpush1.msra.mxu0 %v406
  %446 = vmatprep.subr.mxu0 0.0
  %447 = vmatpush1.msra.mxu0 %v405
  %448 = vmatprep.subr.mxu0 0.0
  %449 = vmatpush2.msra.mxu0 0.0
  %450 = vmatprep.subr.mxu0 0.0
  %451 = vmatpush2.msra.mxu0 0.0
  %452 = vmatprep.subr.mxu0 0.0
  %453 = vmatpush2.msra.mxu0 0.0
  %454 = vmatprep.subr.mxu0 0.0
  %455 = vmatpush2.msra.mxu0 0.0
  %456 = vmatprep.subr.mxu0 0.0
  %457 = vmatpush2.msra.mxu0 0.0
  %458 = vmatprep.subr.mxu0 0.0
  %459 = vmatpush2.msra.mxu0 0.0
  %460 = vmatprep.subr.mxu0 0.0
  %461 = vmatpush2.msra.mxu0 0.0
  %462 = vmatprep.subr.mxu0 0.0
  %463 = vmatpush2.msra.mxu0 0.0
  %464 = vmatprep.subr.mxu0 0.0
  %465 = vmatpush2.msra.mxu0 0.0
  %466 = vmatprep.subr.mxu0 0.0
  %467 = vmatpush2.msra.mxu0 0.0
  %468 = vmatprep.subr.mxu0 0.0
  %469 = vmatpush2.msra.mxu0 0.0
  %470 = vmatprep.subr.mxu0 0.0
  %471 = vmatpush2.msra.mxu0 0.0
  %472 = vmatprep.subr.mxu0 0.0
  %473 = vmatpush2.msra.mxu0 0.0
  %474 = vmatprep.subr.mxu0 0.0
  %475 = vmatpush2.msra.mxu0 0.0
  %476 = vmatprep.subr.mxu0 0.0
  %477 = vmatpush2.msra.mxu0 0.0
  %478 = vmatprep.subr.mxu0 0.0
  %479 = vmatpush2.msra.mxu0 0.0
  %480 = vmatprep.mubr.f32.mxu0 0.0
  %481 = vmatmul.mubr.f32.gmra.mxu0 %v239
  %v482 = vpop.f32.mrf.mxu0
  %v483 = vadd.f32 %v414, %v482
  %v484 = vpop.f32.mrf.mxu0
  %485 = vmatprep.mubr.f32.mxu0 0.0
  %486 = vmatmul.mubr.f32.gmra.mxu0 %v242
  %v487 = vpop.f32.mrf.mxu0
  %v488 = vadd.f32 %v414, %v487
  %v489 = vpop.f32.mrf.mxu0
  %490 = vdwg.mxu0
  %vm491 = vcmask 130048
  %v493 = vsel %vm491, %v311, 0
  %v496 = vsel %vm491, %v397, 0
  %498 = vmatprep.subr.mxu0 0.0
  %499 = vmatpush1.xpose.msra.mxu0 0.0
  %500 = vmatprep.subr.mxu0 0.0
  %501 = vmatpush1.xpose.msra.mxu0 0.0
  %502 = vmatprep.subr.mxu0 0.0
  %503 = vmatpush1.xpose.msra.mxu0 0.0
  %504 = vmatprep.subr.mxu0 0.0
  %505 = vmatpush1.xpose.msra.mxu0 0.0
  %506 = vmatprep.subr.mxu0 0.0
  %507 = vmatpush1.xpose.msra.mxu0 0.0
  %508 = vmatprep.subr.mxu0 0.0
  %509 = vmatpush1.xpose.msra.mxu0 0.0
  %510 = vmatprep.subr.mxu0 0.0
  %511 = vmatpush1.xpose.msra.mxu0 0.0
  %512 = vmatprep.subr.mxu0 0.0
  %513 = vmatpush1.xpose.msra.mxu0 0.0
  %514 = vmatprep.subr.mxu0 0.0
  %515 = vmatpush1.xpose.msra.mxu0 0.0
  %516 = vmatprep.subr.mxu0 0.0
  %517 = vmatpush1.xpose.msra.mxu0 0.0
  %518 = vmatprep.subr.mxu0 0.0
  %519 = vmatpush1.xpose.msra.mxu0 0.0
  %520 = vmatprep.subr.mxu0 0.0
  %521 = vmatpush1.xpose.msra.mxu0 0.0
  %522 = vmatprep.subr.mxu0 0.0
  %523 = vmatpush1.xpose.msra.mxu0 0.0
  %524 = vmatprep.subr.mxu0 0.0
  %525 = vmatpush1.xpose.msra.mxu0 0.0
  %526 = vmatprep.subr.mxu0 0.0
  %527 = vmatpush1.xpose.msra.mxu0 0.0
  %528 = vmatprep.subr.mxu0 0.0
  %529 = vmatpush1.xpose.msra.mxu0 %v496
  %530 = vmatprep.subr.mxu0 0.0
  %531 = vmatpush2.xpose.msra.mxu0 0.0
  %532 = vmatprep.subr.mxu0 0.0
  %533 = vmatpush2.xpose.msra.mxu0 0.0
  %534 = vmatprep.subr.mxu0 0.0
  %535 = vmatpush2.xpose.msra.mxu0 0.0
  %536 = vmatprep.subr.mxu0 0.0
  %537 = vmatpush2.xpose.msra.mxu0 0.0
  %538 = vmatprep.subr.mxu0 0.0
  %539 = vmatpush2.xpose.msra.mxu0 0.0
  %540 = vmatprep.subr.mxu0 0.0
  %541 = vmatpush2.xpose.msra.mxu0 0.0
  %542 = vmatprep.subr.mxu0 0.0
  %543 = vmatpush2.xpose.msra.mxu0 0.0
  %544 = vmatprep.subr.mxu0 0.0
  %545 = vmatpush2.xpose.msra.mxu0 0.0
  %546 = vmatprep.subr.mxu0 0.0
  %547 = vmatpush2.xpose.msra.mxu0 0.0
  %548 = vmatprep.subr.mxu0 0.0
  %549 = vmatpush2.xpose.msra.mxu0 0.0
  %550 = vmatprep.subr.mxu0 0.0
  %551 = vmatpush2.xpose.msra.mxu0 0.0
  %552 = vmatprep.subr.mxu0 0.0
  %553 = vmatpush2.xpose.msra.mxu0 0.0
  %554 = vmatprep.subr.mxu0 0.0
  %555 = vmatpush2.xpose.msra.mxu0 0.0
  %556 = vmatprep.subr.mxu0 0.0
  %557 = vmatpush2.xpose.msra.mxu0 0.0
  %558 = vmatprep.subr.mxu0 0.0
  %559 = vmatpush2.xpose.msra.mxu0 0.0
  %560 = vmatprep.subr.mxu0 0.0
  %561 = vmatpush2.xpose.msra.mxu0 0.0
  %562 = vmatprep.mubr.f32.mxu0 0.0
  %563 = vmatmul.mubr.f32.gmra.mxu0 %v493
  %v564 = vpop.f32.mrf.mxu0
  %v565 = vadd.f32 0.0, %v564
  %v566 = vpop.f32.mrf.mxu0
  %567 = vdwg.mxu0
  %v568 = vmul.f32 %v565, 0.25
  %vm569 = vcmask 64512
  %v570 = vsel %vm569, %v568, -inf
  %571 = vmax.xlane.f32.xlu0 %v570
  %v572 = vpop.xlane.xlu0 %571
  %v573 = vsub.f32 %v568, %v572
  %v574 = vmul.f32 %v573, 1.442695
  %v575 = vpow.pop %v574
  %v576 = vsel %vm569, %v575, 0.0
  %577 = vadd.xlane.f32.xlu0 %v576
  %v578 = vpop.xlane.xlu0 %577
  %v579 = vrcp.pop %v578
  %v580 = vmul.f32 %v575, %v579
  %v582 = vsel %vm569, %v580, 0
  %584 = vmatprep.subr.mxu0 0.0
  %585 = vmatpush1.msra.mxu0 0.0
  %586 = vmatprep.subr.mxu0 0.0
  %587 = vmatpush1.msra.mxu0 0.0
  %588 = vmatprep.subr.mxu0 0.0
  %589 = vmatpush1.msra.mxu0 0.0
  %590 = vmatprep.subr.mxu0 0.0
  %591 = vmatpush1.msra.mxu0 0.0
  %592 = vmatprep.subr.mxu0 0.0
  %593 = vmatpush1.msra.mxu0 0.0
  %594 = vmatprep.subr.mxu0 0.0
  %595 = vmatpush1.msra.mxu0 0.0
  %596 = vmatprep.subr.mxu0 0.0
  %597 = vmatpush1.msra.mxu0 0.0
  %598 = vmatprep.subr.mxu0 0.0
  %599 = vmatpush1.msra.mxu0 0.0
  %600 = vmatprep.subr.mxu0 0.0
  %601 = vmatpush1.msra.mxu0 0.0
  %602 = vmatprep.subr.mxu0 0.0
  %603 = vmatpush1.msra.mxu0 0.0
  %604 = vmatprep.subr.mxu0 0.0
  %605 = vmatpush1.msra.mxu0 0.0
  %606 = vmatprep.subr.mxu0 0.0
  %607 = vmatpush1.msra.mxu0 0.0
  %608 = vmatprep.subr.mxu0 0.0
  %609 = vmatpush1.msra.mxu0 0.0
  %610 = vmatprep.subr.mxu0 0.0
  %611 = vmatpush1.msra.mxu0 0.0
  %612 = vmatprep.subr.mxu0 0.0
  %613 = vmatpush1.msra.mxu0 0.0
  %614 = vmatprep.subr.mxu0 0.0
  %615 = vmatpush1.msra.mxu0 %v483
  %616 = vmatprep.subr.mxu0 0.0
  %617 = vmatpush2.msra.mxu0 0.0
  %618 = vmatprep.subr.mxu0 0.0
  %619 = vmatpush2.msra.mxu0 0.0
  %620 = vmatprep.subr.mxu0 0.0
  %621 = vmatpush2.msra.mxu0 0.0
  %622 = vmatprep.subr.mxu0 0.0
  %623 = vmatpush2.msra.mxu0 0.0
  %624 = vmatprep.subr.mxu0 0.0
  %625 = vmatpush2.msra.mxu0 0.0
  %626 = vmatprep.subr.mxu0 0.0
  %627 = vmatpush2.msra.mxu0 0.0
  %628 = vmatprep.subr.mxu0 0.0
  %629 = vmatpush2.msra.mxu0 0.0
  %630 = vmatprep.subr.mxu0 0.0
  %631 = vmatpush2.msra.mxu0 0.0
  %632 = vmatprep.subr.mxu0 0.0
  %633 = vmatpush2.msra.mxu0 0.0
  %634 = vmatprep.subr.mxu0 0.0
  %635 = vmatpush2.msra.mxu0 0.0
  %636 = vmatprep.subr.mxu0 0.0
  %637 = vmatpush2.msra.mxu0 0.0
  %638 = vmatprep.subr.mxu0 0.0
  %639 = vmatpush2.msra.mxu0 0.0
  %640 = vmatprep.subr.mxu0 0.0
  %641 = vmatpush2.msra.mxu0 0.0
  %642 = vmatprep.subr.mxu0 0.0
  %643 = vmatpush2.msra.mxu0 0.0
  %644 = vmatprep.subr.mxu0 0.0
  %645 = vmatpush2.msra.mxu0 0.0
  %646 = vmatprep.subr.mxu0 0.0
  %647 = vmatpush2.msra.mxu0 0.0
  %648 = vmatprep.mubr.f32.mxu0 0.0
  %649 = vmatmul.mubr.f32.gmra.mxu0 %v582
  %v650 = vpop.f32.mrf.mxu0
  %v651 = vadd.f32 0.0, %v650
  %v652 = vpop.f32.mrf.mxu0
  %653 = vdwg.mxu0
  %654 = vrot.lane.b32.xlu0 %v311, 112
  %v655 = vpop.permute.xlu0 %654
  %656 = vrot.lane.b32.xlu0 %v397, 112
  %v657 = vpop.permute.xlu0 %656
  %v658 = vsel %vm491, %v655, 0
  %v660 = vsel %vm491, %v657, 0
  %662 = vmatprep.subr.mxu0 0.0
  %663 = vmatpush1.xpose.msra.mxu0 0.0
  %664 = vmatprep.subr.mxu0 0.0
  %665 = vmatpush1.xpose.msra.mxu0 0.0
  %666 = vmatprep.subr.mxu0 0.0
  %667 = vmatpush1.xpose.msra.mxu0 0.0
  %668 = vmatprep.subr.mxu0 0.0
  %669 = vmatpush1.xpose.msra.mxu0 0.0
  %670 = vmatprep.subr.mxu0 0.0
  %671 = vmatpush1.xpose.msra.mxu0 0.0
  %672 = vmatprep.subr.mxu0 0.0
  %673 = vmatpush1.xpose.msra.mxu0 0.0
  %674 = vmatprep.subr.mxu0 0.0
  %675 = vmatpush1.xpose.msra.mxu0 0.0
  %676 = vmatprep.subr.mxu0 0.0
  %677 = vmatpush1.xpose.msra.mxu0 0.0
  %678 = vmatprep.subr.mxu0 0.0
  %679 = vmatpush1.xpose.msra.mxu0 0.0
  %680 = vmatprep.subr.mxu0 0.0
  %681 = vmatpush1.xpose.msra.mxu0 0.0
  %682 = vmatprep.subr.mxu0 0.0
  %683 = vmatpush1.xpose.msra.mxu0 0.0
  %684 = vmatprep.subr.mxu0 0.0
  %685 = vmatpush1.xpose.msra.mxu0 0.0
  %686 = vmatprep.subr.mxu0 0.0
  %687 = vmatpush1.xpose.msra.mxu0 0.0
  %688 = vmatprep.subr.mxu0 0.0
  %689 = vmatpush1.xpose.msra.mxu0 0.0
  %690 = vmatprep.subr.mxu0 0.0
  %691 = vmatpush1.xpose.msra.mxu0 0.0
  %692 = vmatprep.subr.mxu0 0.0
  %693 = vmatpush1.xpose.msra.mxu0 %v660
  %694 = vmatprep.subr.mxu0 0.0
  %695 = vmatpush2.xpose.msra.mxu0 0.0
  %696 = vmatprep.subr.mxu0 0.0
  %697 = vmatpush2.xpose.msra.mxu0 0.0
  %698 = vmatprep.subr.mxu0 0.0
  %699 = vmatpush2.xpose.msra.mxu0 0.0
  %700 = vmatprep.subr.mxu0 0.0
  %701 = vmatpush2.xpose.msra.mxu0 0.0
  %702 = vmatprep.subr.mxu0 0.0
  %703 = vmatpush2.xpose.msra.mxu0 0.0
  %704 = vmatprep.subr.mxu0 0.0
  %705 = vmatpush2.xpose.msra.mxu0 0.0
  %706 = vmatprep.subr.mxu0 0.0
  %707 = vmatpush2.xpose.msra.mxu0 0.0
  %708 = vmatprep.subr.mxu0 0.0
  %709 = vmatpush2.xpose.msra.mxu0 0.0
  %710 = vmatprep.subr.mxu0 0.0
  %711 = vmatpush2.xpose.msra.mxu0 0.0
  %712 = vmatprep.subr.mxu0 0.0
  %713 = vmatpush2.xpose.msra.mxu0 0.0
  %714 = vmatprep.subr.mxu0 0.0
  %715 = vmatpush2.xpose.msra.mxu0 0.0
  %716 = vmatprep.subr.mxu0 0.0
  %717 = vmatpush2.xpose.msra.mxu0 0.0
  %718 = vmatprep.subr.mxu0 0.0
  %719 = vmatpush2.xpose.msra.mxu0 0.0
  %720 = vmatprep.subr.mxu0 0.0
  %721 = vmatpush2.xpose.msra.mxu0 0.0
  %722 = vmatprep.subr.mxu0 0.0
  %723 = vmatpush2.xpose.msra.mxu0 0.0
  %724 = vmatprep.subr.mxu0 0.0
  %725 = vmatpush2.xpose.msra.mxu0 0.0
  %726 = vmatprep.mubr.f32.mxu0 0.0
  %727 = vmatmul.mubr.f32.gmra.mxu0 %v658
  %v728 = vpop.f32.mrf.mxu0
  %v729 = vadd.f32 0.0, %v728
  %v730 = vpop.f32.mrf.mxu0
  %731 = vdwg.mxu0
  %v732 = vmul.f32 %v729, 0.25
  %v733 = vsel %vm569, %v732, -inf
  %734 = vmax.xlane.f32.xlu0 %v733
  %v735 = vpop.xlane.xlu0 %734
  %v736 = vsub.f32 %v732, %v735
  %v737 = vmul.f32 %v736, 1.442695
  %v738 = vpow.pop %v737
  %v739 = vsel %vm569, %v738, 0.0
  %740 = vadd.xlane.f32.xlu0 %v739
  %v741 = vpop.xlane.xlu0 %740
  %v742 = vrcp.pop %v741
  %v743 = vmul.f32 %v738, %v742
  %745 = vrot.lane.b32.xlu0 %v483, 112
  %v746 = vpop.permute.xlu0 %745
  %v749 = vsel %vm569, %v743, 0
  %751 = vmatprep.subr.mxu0 0.0
  %752 = vmatpush1.msra.mxu0 0.0
  %753 = vmatprep.subr.mxu0 0.0
  %754 = vmatpush1.msra.mxu0 0.0
  %755 = vmatprep.subr.mxu0 0.0
  %756 = vmatpush1.msra.mxu0 0.0
  %757 = vmatprep.subr.mxu0 0.0
  %758 = vmatpush1.msra.mxu0 0.0
  %759 = vmatprep.subr.mxu0 0.0
  %760 = vmatpush1.msra.mxu0 0.0
  %761 = vmatprep.subr.mxu0 0.0
  %762 = vmatpush1.msra.mxu0 0.0
  %763 = vmatprep.subr.mxu0 0.0
  %764 = vmatpush1.msra.mxu0 0.0
  %765 = vmatprep.subr.mxu0 0.0
  %766 = vmatpush1.msra.mxu0 0.0
  %767 = vmatprep.subr.mxu0 0.0
  %768 = vmatpush1.msra.mxu0 0.0
  %769 = vmatprep.subr.mxu0 0.0
  %770 = vmatpush1.msra.mxu0 0.0
  %771 = vmatprep.subr.mxu0 0.0
  %772 = vmatpush1.msra.mxu0 0.0
  %773 = vmatprep.subr.mxu0 0.0
  %774 = vmatpush1.msra.mxu0 0.0
  %775 = vmatprep.subr.mxu0 0.0
  %776 = vmatpush1.msra.mxu0 0.0
  %777 = vmatprep.subr.mxu0 0.0
  %778 = vmatpush1.msra.mxu0 0.0
  %779 = vmatprep.subr.mxu0 0.0
  %780 = vmatpush1.msra.mxu0 0.0
  %781 = vmatprep.subr.mxu0 0.0
  %782 = vmatpush1.msra.mxu0 %v746
  %783 = vmatprep.subr.mxu0 0.0
  %784 = vmatpush2.msra.mxu0 0.0
  %785 = vmatprep.subr.mxu0 0.0
  %786 = vmatpush2.msra.mxu0 0.0
  %787 = vmatprep.subr.mxu0 0.0
  %788 = vmatpush2.msra.mxu0 0.0
  %789 = vmatprep.subr.mxu0 0.0
  %790 = vmatpush2.msra.mxu0 0.0
  %791 = vmatprep.subr.mxu0 0.0
  %792 = vmatpush2.msra.mxu0 0.0
  %793 = vmatprep.subr.mxu0 0.0
  %794 = vmatpush2.msra.mxu0 0.0
  %795 = vmatprep.subr.mxu0 0.0
  %796 = vmatpush2.msra.mxu0 0.0
  %797 = vmatprep.subr.mxu0 0.0
  %798 = vmatpush2.msra.mxu0 0.0
  %799 = vmatprep.subr.mxu0 0.0
  %800 = vmatpush2.msra.mxu0 0.0
  %801 = vmatprep.subr.mxu0 0.0
  %802 = vmatpush2.msra.mxu0 0.0
  %803 = vmatprep.subr.mxu0 0.0
  %804 = vmatpush2.msra.mxu0 0.0
  %805 = vmatprep.subr.mxu0 0.0
  %806 = vmatpush2.msra.mxu0 0.0
  %807 = vmatprep.subr.mxu0 0.0
  %808 = vmatpush2.msra.mxu0 0.0
  %809 = vmatprep.subr.mxu0 0.0
  %810 = vmatpush2.msra.mxu0 0.0
  %811 = vmatprep.subr.mxu0 0.0
  %812 = vmatpush2.msra.mxu0 0.0
  %813 = vmatprep.subr.mxu0 0.0
  %814 = vmatpush2.msra.mxu0 0.0
  %815 = vmatprep.mubr.f32.mxu0 0.0
  %816 = vmatmul.mubr.f32.gmra.mxu0 %v749
  %v817 = vpop.f32.mrf.mxu0
  %v818 = vadd.f32 0.0, %v817
  %v819 = vpop.f32.mrf.mxu0
  %820 = vdwg.mxu0
  %822 = vrot.lane.b32.xlu0 %v818, 16
  %v823 = vpop.permute.xlu0 %822
  %v825 = vsel %vm491, %v651, %v823
  %v827 = vsel %vm491, %v316, 0
  %v830 = vsel %vm491, %v402, 0
  %832 = vmatprep.subr.mxu0 0.0
  %833 = vmatpush1.xpose.msra.mxu0 0.0
  %834 = vmatprep.subr.mxu0 0.0
  %835 = vmatpush1.xpose.msra.mxu0 0.0
  %836 = vmatprep.subr.mxu0 0.0
  %837 = vmatpush1.xpose.msra.mxu0 0.0
  %838 = vmatprep.subr.mxu0 0.0
  %839 = vmatpush1.xpose.msra.mxu0 0.0
  %840 = vmatprep.subr.mxu0 0.0
  %841 = vmatpush1.xpose.msra.mxu0 0.0
  %842 = vmatprep.subr.mxu0 0.0
  %843 = vmatpush1.xpose.msra.mxu0 0.0
  %844 = vmatprep.subr.mxu0 0.0
  %845 = vmatpush1.xpose.msra.mxu0 0.0
  %846 = vmatprep.subr.mxu0 0.0
  %847 = vmatpush1.xpose.msra.mxu0 0.0
  %848 = vmatprep.subr.mxu0 0.0
  %849 = vmatpush1.xpose.msra.mxu0 0.0
  %850 = vmatprep.subr.mxu0 0.0
  %851 = vmatpush1.xpose.msra.mxu0 0.0
  %852 = vmatprep.subr.mxu0 0.0
  %853 = vmatpush1.xpose.msra.mxu0 0.0
  %854 = vmatprep.subr.mxu0 0.0
  %855 = vmatpush1.xpose.msra.mxu0 0.0
  %856 = vmatprep.subr.mxu0 0.0
  %857 = vmatpush1.xpose.msra.mxu0 0.0
  %858 = vmatprep.subr.mxu0 0.0
  %859 = vmatpush1.xpose.msra.mxu0 0.0
  %860 = vmatprep.subr.mxu0 0.0
  %861 = vmatpush1.xpose.msra.mxu0 0.0
  %862 = vmatprep.subr.mxu0 0.0
  %863 = vmatpush1.xpose.msra.mxu0 %v830
  %864 = vmatprep.subr.mxu0 0.0
  %865 = vmatpush2.xpose.msra.mxu0 0.0
  %866 = vmatprep.subr.mxu0 0.0
  %867 = vmatpush2.xpose.msra.mxu0 0.0
  %868 = vmatprep.subr.mxu0 0.0
  %869 = vmatpush2.xpose.msra.mxu0 0.0
  %870 = vmatprep.subr.mxu0 0.0
  %871 = vmatpush2.xpose.msra.mxu0 0.0
  %872 = vmatprep.subr.mxu0 0.0
  %873 = vmatpush2.xpose.msra.mxu0 0.0
  %874 = vmatprep.subr.mxu0 0.0
  %875 = vmatpush2.xpose.msra.mxu0 0.0
  %876 = vmatprep.subr.mxu0 0.0
  %877 = vmatpush2.xpose.msra.mxu0 0.0
  %878 = vmatprep.subr.mxu0 0.0
  %879 = vmatpush2.xpose.msra.mxu0 0.0
  %880 = vmatprep.subr.mxu0 0.0
  %881 = vmatpush2.xpose.msra.mxu0 0.0
  %882 = vmatprep.subr.mxu0 0.0
  %883 = vmatpush2.xpose.msra.mxu0 0.0
  %884 = vmatprep.subr.mxu0 0.0
  %885 = vmatpush2.xpose.msra.mxu0 0.0
  %886 = vmatprep.subr.mxu0 0.0
  %887 = vmatpush2.xpose.msra.mxu0 0.0
  %888 = vmatprep.subr.mxu0 0.0
  %889 = vmatpush2.xpose.msra.mxu0 0.0
  %890 = vmatprep.subr.mxu0 0.0
  %891 = vmatpush2.xpose.msra.mxu0 0.0
  %892 = vmatprep.subr.mxu0 0.0
  %893 = vmatpush2.xpose.msra.mxu0 0.0
  %894 = vmatprep.subr.mxu0 0.0
  %895 = vmatpush2.xpose.msra.mxu0 0.0
  %896 = vmatprep.mubr.f32.mxu0 0.0
  %897 = vmatmul.mubr.f32.gmra.mxu0 %v827
  %v898 = vpop.f32.mrf.mxu0
  %v899 = vadd.f32 0.0, %v898
  %v900 = vpop.f32.mrf.mxu0
  %901 = vdwg.mxu0
  %v902 = vmul.f32 %v899, 0.25
  %v903 = vsel %vm569, %v902, -inf
  %904 = vmax.xlane.f32.xlu0 %v903
  %v905 = vpop.xlane.xlu0 %904
  %v906 = vsub.f32 %v902, %v905
  %v907 = vmul.f32 %v906, 1.442695
  %v908 = vpow.pop %v907
  %v909 = vsel %vm569, %v908, 0.0
  %910 = vadd.xlane.f32.xlu0 %v909
  %v911 = vpop.xlane.xlu0 %910
  %v912 = vrcp.pop %v911
  %v913 = vmul.f32 %v908, %v912
  %v915 = vsel %vm569, %v913, 0
  %917 = vmatprep.subr.mxu0 0.0
  %918 = vmatpush1.msra.mxu0 0.0
  %919 = vmatprep.subr.mxu0 0.0
  %920 = vmatpush1.msra.mxu0 0.0
  %921 = vmatprep.subr.mxu0 0.0
  %922 = vmatpush1.msra.mxu0 0.0
  %923 = vmatprep.subr.mxu0 0.0
  %924 = vmatpush1.msra.mxu0 0.0
  %925 = vmatprep.subr.mxu0 0.0
  %926 = vmatpush1.msra.mxu0 0.0
  %927 = vmatprep.subr.mxu0 0.0
  %928 = vmatpush1.msra.mxu0 0.0
  %929 = vmatprep.subr.mxu0 0.0
  %930 = vmatpush1.msra.mxu0 0.0
  %931 = vmatprep.subr.mxu0 0.0
  %932 = vmatpush1.msra.mxu0 0.0
  %933 = vmatprep.subr.mxu0 0.0
  %934 = vmatpush1.msra.mxu0 0.0
  %935 = vmatprep.subr.mxu0 0.0
  %936 = vmatpush1.msra.mxu0 0.0
  %937 = vmatprep.subr.mxu0 0.0
  %938 = vmatpush1.msra.mxu0 0.0
  %939 = vmatprep.subr.mxu0 0.0
  %940 = vmatpush1.msra.mxu0 0.0
  %941 = vmatprep.subr.mxu0 0.0
  %942 = vmatpush1.msra.mxu0 0.0
  %943 = vmatprep.subr.mxu0 0.0
  %944 = vmatpush1.msra.mxu0 0.0
  %945 = vmatprep.subr.mxu0 0.0
  %946 = vmatpush1.msra.mxu0 0.0
  %947 = vmatprep.subr.mxu0 0.0
  %948 = vmatpush1.msra.mxu0 %v488
  %949 = vmatprep.subr.mxu0 0.0
  %950 = vmatpush2.msra.mxu0 0.0
  %951 = vmatprep.subr.mxu0 0.0
  %952 = vmatpush2.msra.mxu0 0.0
  %953 = vmatprep.subr.mxu0 0.0
  %954 = vmatpush2.msra.mxu0 0.0
  %955 = vmatprep.subr.mxu0 0.0
  %956 = vmatpush2.msra.mxu0 0.0
  %957 = vmatprep.subr.mxu0 0.0
  %958 = vmatpush2.msra.mxu0 0.0
  %959 = vmatprep.subr.mxu0 0.0
  %960 = vmatpush2.msra.mxu0 0.0
  %961 = vmatprep.subr.mxu0 0.0
  %962 = vmatpush2.msra.mxu0 0.0
  %963 = vmatprep.subr.mxu0 0.0
  %964 = vmatpush2.msra.mxu0 0.0
  %965 = vmatprep.subr.mxu0 0.0
  %966 = vmatpush2.msra.mxu0 0.0
  %967 = vmatprep.subr.mxu0 0.0
  %968 = vmatpush2.msra.mxu0 0.0
  %969 = vmatprep.subr.mxu0 0.0
  %970 = vmatpush2.msra.mxu0 0.0
  %971 = vmatprep.subr.mxu0 0.0
  %972 = vmatpush2.msra.mxu0 0.0
  %973 = vmatprep.subr.mxu0 0.0
  %974 = vmatpush2.msra.mxu0 0.0
  %975 = vmatprep.subr.mxu0 0.0
  %976 = vmatpush2.msra.mxu0 0.0
  %977 = vmatprep.subr.mxu0 0.0
  %978 = vmatpush2.msra.mxu0 0.0
  %979 = vmatprep.subr.mxu0 0.0
  %980 = vmatpush2.msra.mxu0 0.0
  %981 = vmatprep.mubr.f32.mxu0 0.0
  %982 = vmatmul.mubr.f32.gmra.mxu0 %v915
  %v983 = vpop.f32.mrf.mxu0
  %v984 = vadd.f32 0.0, %v983
  %v985 = vpop.f32.mrf.mxu0
  %986 = vdwg.mxu0
  %987 = vrot.lane.b32.xlu0 %v316, 112
  %v988 = vpop.permute.xlu0 %987
  %989 = vrot.lane.b32.xlu0 %v402, 112
  %v990 = vpop.permute.xlu0 %989
  %v991 = vsel %vm491, %v988, 0
  %v993 = vsel %vm491, %v990, 0
  %995 = vmatprep.subr.mxu0 0.0
  %996 = vmatpush1.xpose.msra.mxu0 0.0
  %997 = vmatprep.subr.mxu0 0.0
  %998 = vmatpush1.xpose.msra.mxu0 0.0
  %999 = vmatprep.subr.mxu0 0.0
  %1000 = vmatpush1.xpose.msra.mxu0 0.0
  %1001 = vmatprep.subr.mxu0 0.0
  %1002 = vmatpush1.xpose.msra.mxu0 0.0
  %1003 = vmatprep.subr.mxu0 0.0
  %1004 = vmatpush1.xpose.msra.mxu0 0.0
  %1005 = vmatprep.subr.mxu0 0.0
  %1006 = vmatpush1.xpose.msra.mxu0 0.0
  %1007 = vmatprep.subr.mxu0 0.0
  %1008 = vmatpush1.xpose.msra.mxu0 0.0
  %1009 = vmatprep.subr.mxu0 0.0
  %1010 = vmatpush1.xpose.msra.mxu0 0.0
  %1011 = vmatprep.subr.mxu0 0.0
  %1012 = vmatpush1.xpose.msra.mxu0 0.0
  %1013 = vmatprep.subr.mxu0 0.0
  %1014 = vmatpush1.xpose.msra.mxu0 0.0
  %1015 = vmatprep.subr.mxu0 0.0
  %1016 = vmatpush1.xpose.msra.mxu0 0.0
  %1017 = vmatprep.subr.mxu0 0.0
  %1018 = vmatpush1.xpose.msra.mxu0 0.0
  %1019 = vmatprep.subr.mxu0 0.0
  %1020 = vmatpush1.xpose.msra.mxu0 0.0
  %1021 = vmatprep.subr.mxu0 0.0
  %1022 = vmatpush1.xpose.msra.mxu0 0.0
  %1023 = vmatprep.subr.mxu0 0.0
  %1024 = vmatpush1.xpose.msra.mxu0 0.0
  %1025 = vmatprep.subr.mxu0 0.0
  %1026 = vmatpush1.xpose.msra.mxu0 %v993
  %1027 = vmatprep.subr.mxu0 0.0
  %1028 = vmatpush2.xpose.msra.mxu0 0.0
  %1029 = vmatprep.subr.mxu0 0.0
  %1030 = vmatpush2.xpose.msra.mxu0 0.0
  %1031 = vmatprep.subr.mxu0 0.0
  %1032 = vmatpush2.xpose.msra.mxu0 0.0
  %1033 = vmatprep.subr.mxu0 0.0
  %1034 = vmatpush2.xpose.msra.mxu0 0.0
  %1035 = vmatprep.subr.mxu0 0.0
  %1036 = vmatpush2.xpose.msra.mxu0 0.0
  %1037 = vmatprep.subr.mxu0 0.0
  %1038 = vmatpush2.xpose.msra.mxu0 0.0
  %1039 = vmatprep.subr.mxu0 0.0
  %1040 = vmatpush2.xpose.msra.mxu0 0.0
  %1041 = vmatprep.subr.mxu0 0.0
  %1042 = vmatpush2.xpose.msra.mxu0 0.0
  %1043 = vmatprep.subr.mxu0 0.0
  %1044 = vmatpush2.xpose.msra.mxu0 0.0
  %1045 = vmatprep.subr.mxu0 0.0
  %1046 = vmatpush2.xpose.msra.mxu0 0.0
  %1047 = vmatprep.subr.mxu0 0.0
  %1048 = vmatpush2.xpose.msra.mxu0 0.0
  %1049 = vmatprep.subr.mxu0 0.0
  %1050 = vmatpush2.xpose.msra.mxu0 0.0
  %1051 = vmatprep.subr.mxu0 0.0
  %1052 = vmatpush2.xpose.msra.mxu0 0.0
  %1053 = vmatprep.subr.mxu0 0.0
  %1054 = vmatpush2.xpose.msra.mxu0 0.0
  %1055 = vmatprep.subr.mxu0 0.0
  %1056 = vmatpush2.xpose.msra.mxu0 0.0
  %1057 = vmatprep.subr.mxu0 0.0
  %1058 = vmatpush2.xpose.msra.mxu0 0.0
  %1059 = vmatprep.mubr.f32.mxu0 0.0
  %1060 = vmatmul.mubr.f32.gmra.mxu0 %v991
  %v1061 = vpop.f32.mrf.mxu0
  %v1062 = vadd.f32 0.0, %v1061
  %v1063 = vpop.f32.mrf.mxu0
  %1064 = vdwg.mxu0
  %v1065 = vmul.f32 %v1062, 0.25
  %v1066 = vsel %vm569, %v1065, -inf
  %1067 = vmax.xlane.f32.xlu0 %v1066
  %v1068 = vpop.xlane.xlu0 %1067
  %v1069 = vsub.f32 %v1065, %v1068
  %v1070 = vmul.f32 %v1069, 1.442695
  %v1071 = vpow.pop %v1070
  %v1072 = vsel %vm569, %v1071, 0.0
  %1073 = vadd.xlane.f32.xlu0 %v1072
  %v1074 = vpop.xlane.xlu0 %1073
  %v1075 = vrcp.pop %v1074
  %v1076 = vmul.f32 %v1071, %v1075
  %1078 = vrot.lane.b32.xlu0 %v488, 112
  %v1079 = vpop.permute.xlu0 %1078
  %v1082 = vsel %vm569, %v1076, 0
  %1084 = vmatprep.subr.mxu0 0.0
  %1085 = vmatpush1.msra.mxu0 0.0
  %1086 = vmatprep.subr.mxu0 0.0
  %1087 = vmatpush1.msra.mxu0 0.0
  %1088 = vmatprep.subr.mxu0 0.0
  %1089 = vmatpush1.msra.mxu0 0.0
  %1090 = vmatprep.subr.mxu0 0.0
  %1091 = vmatpush1.msra.mxu0 0.0
  %1092 = vmatprep.subr.mxu0 0.0
  %1093 = vmatpush1.msra.mxu0 0.0
  %1094 = vmatprep.subr.mxu0 0.0
  %1095 = vmatpush1.msra.mxu0 0.0
  %1096 = vmatprep.subr.mxu0 0.0
  %1097 = vmatpush1.msra.mxu0 0.0
  %1098 = vmatprep.subr.mxu0 0.0
  %1099 = vmatpush1.msra.mxu0 0.0
  %1100 = vmatprep.subr.mxu0 0.0
  %1101 = vmatpush1.msra.mxu0 0.0
  %1102 = vmatprep.subr.mxu0 0.0
  %1103 = vmatpush1.msra.mxu0 0.0
  %1104 = vmatprep.subr.mxu0 0.0
  %1105 = vmatpush1.msra.mxu0 0.0
  %1106 = vmatprep.subr.mxu0 0.0
  %1107 = vmatpush1.msra.mxu0 0.0
  %1108 = vmatprep.subr.mxu0 0.0
  %1109 = vmatpush1.msra.mxu0 0.0
  %1110 = vmatprep.subr.mxu0 0.0
  %1111 = vmatpush1.msra.mxu0 0.0
  %1112 = vmatprep.subr.mxu0 0.0
  %1113 = vmatpush1.msra.mxu0 0.0
  %1114 = vmatprep.subr.mxu0 0.0
  %1115 = vmatpush1.msra.mxu0 %v1079
  %1116 = vmatprep.subr.mxu0 0.0
  %1117 = vmatpush2.msra.mxu0 0.0
  %1118 = vmatprep.subr.mxu0 0.0
  %1119 = vmatpush2.msra.mxu0 0.0
  %1120 = vmatprep.subr.mxu0 0.0
  %1121 = vmatpush2.msra.mxu0 0.0
  %1122 = vmatprep.subr.mxu0 0.0
  %1123 = vmatpush2.msra.mxu0 0.0
  %1124 = vmatprep.subr.mxu0 0.0
  %1125 = vmatpush2.msra.mxu0 0.0
  %1126 = vmatprep.subr.mxu0 0.0
  %1127 = vmatpush2.msra.mxu0 0.0
  %1128 = vmatprep.subr.mxu0 0.0
  %1129 = vmatpush2.msra.mxu0 0.0
  %1130 = vmatprep.subr.mxu0 0.0
  %1131 = vmatpush2.msra.mxu0 0.0
  %1132 = vmatprep.subr.mxu0 0.0
  %1133 = vmatpush2.msra.mxu0 0.0
  %1134 = vmatprep.subr.mxu0 0.0
  %1135 = vmatpush2.msra.mxu0 0.0
  %1136 = vmatprep.subr.mxu0 0.0
  %1137 = vmatpush2.msra.mxu0 0.0
  %1138 = vmatprep.subr.mxu0 0.0
  %1139 = vmatpush2.msra.mxu0 0.0
  %1140 = vmatprep.subr.mxu0 0.0
  %1141 = vmatpush2.msra.mxu0 0.0
  %1142 = vmatprep.subr.mxu0 0.0
  %1143 = vmatpush2.msra.mxu0 0.0
  %1144 = vmatprep.subr.mxu0 0.0
  %1145 = vmatpush2.msra.mxu0 0.0
  %1146 = vmatprep.subr.mxu0 0.0
  %1147 = vmatpush2.msra.mxu0 0.0
  %1148 = vmatprep.mubr.f32.mxu0 0.0
  %1149 = vmatmul.mubr.f32.gmra.mxu0 %v1082
  %v1150 = vpop.f32.mrf.mxu0
  %v1151 = vadd.f32 0.0, %v1150
  %v1152 = vpop.f32.mrf.mxu0
  %1153 = vdwg.mxu0
  %1155 = vrot.lane.b32.xlu0 %v1151, 16
  %v1156 = vpop.permute.xlu0 %1155
  %v1158 = vsel %vm491, %v984, %v1156
  %v1159 = vld [vmem:[%s9] sm:$0xff]
  %v1160 = vld [vmem:[%s9 + $0x8] sm:$0xff]
  %v1161 = vld [vmem:[%s9 + $0x10] sm:$0xff]
  %v1162 = vld [vmem:[%s9 + $0x18] sm:$0xff]
  %v1164 = vsel %vm169, %v825, 0
  %v1167 = vsel %vm169, %v1158, 0
  %1169 = vmatprep.subr.mxu0 0.0
  %1170 = vmatpush1.msra.mxu0 0.0
  %1171 = vmatprep.subr.mxu0 0.0
  %1172 = vmatpush1.msra.mxu0 0.0
  %1173 = vmatprep.subr.mxu0 0.0
  %1174 = vmatpush1.msra.mxu0 0.0
  %1175 = vmatprep.subr.mxu0 0.0
  %1176 = vmatpush1.msra.mxu0 0.0
  %1177 = vmatprep.subr.mxu0 0.0
  %1178 = vmatpush1.msra.mxu0 0.0
  %1179 = vmatprep.subr.mxu0 0.0
  %1180 = vmatpush1.msra.mxu0 0.0
  %1181 = vmatprep.subr.mxu0 0.0
  %1182 = vmatpush1.msra.mxu0 0.0
  %1183 = vmatprep.subr.mxu0 0.0
  %1184 = vmatpush1.msra.mxu0 0.0
  %1185 = vmatprep.subr.mxu0 0.0
  %1186 = vmatpush1.msra.mxu0 0.0
  %1187 = vmatprep.subr.mxu0 0.0
  %1188 = vmatpush1.msra.mxu0 0.0
  %1189 = vmatprep.subr.mxu0 0.0
  %1190 = vmatpush1.msra.mxu0 0.0
  %1191 = vmatprep.subr.mxu0 0.0
  %1192 = vmatpush1.msra.mxu0 0.0
  %1193 = vmatprep.subr.mxu0 0.0
  %1194 = vmatpush1.msra.mxu0 %v1162
  %1195 = vmatprep.subr.mxu0 0.0
  %1196 = vmatpush1.msra.mxu0 %v1161
  %1197 = vmatprep.subr.mxu0 0.0
  %1198 = vmatpush1.msra.mxu0 %v1160
  %1199 = vmatprep.subr.mxu0 0.0
  %1200 = vmatpush1.msra.mxu0 %v1159
  %1201 = vmatprep.subr.mxu0 0.0
  %1202 = vmatpush2.msra.mxu0 0.0
  %1203 = vmatprep.subr.mxu0 0.0
  %1204 = vmatpush2.msra.mxu0 0.0
  %1205 = vmatprep.subr.mxu0 0.0
  %1206 = vmatpush2.msra.mxu0 0.0
  %1207 = vmatprep.subr.mxu0 0.0
  %1208 = vmatpush2.msra.mxu0 0.0
  %1209 = vmatprep.subr.mxu0 0.0
  %1210 = vmatpush2.msra.mxu0 0.0
  %1211 = vmatprep.subr.mxu0 0.0
  %1212 = vmatpush2.msra.mxu0 0.0
  %1213 = vmatprep.subr.mxu0 0.0
  %1214 = vmatpush2.msra.mxu0 0.0
  %1215 = vmatprep.subr.mxu0 0.0
  %1216 = vmatpush2.msra.mxu0 0.0
  %1217 = vmatprep.subr.mxu0 0.0
  %1218 = vmatpush2.msra.mxu0 0.0
  %1219 = vmatprep.subr.mxu0 0.0
  %1220 = vmatpush2.msra.mxu0 0.0
  %1221 = vmatprep.subr.mxu0 0.0
  %1222 = vmatpush2.msra.mxu0 0.0
  %1223 = vmatprep.subr.mxu0 0.0
  %1224 = vmatpush2.msra.mxu0 0.0
  %1225 = vmatprep.subr.mxu0 0.0
  %1226 = vmatpush2.msra.mxu0 0.0
  %1227 = vmatprep.subr.mxu0 0.0
  %1228 = vmatpush2.msra.mxu0 0.0
  %1229 = vmatprep.subr.mxu0 0.0
  %1230 = vmatpush2.msra.mxu0 0.0
  %1231 = vmatprep.subr.mxu0 0.0
  %1232 = vmatpush2.msra.mxu0 0.0
  %1233 = vmatprep.mubr.f32.mxu0 0.0
  %1234 = vmatmul.mubr.f32.gmra.mxu0 %v1164
  %v1235 = vpop.f32.mrf.mxu0
  %v1236 = vadd.f32 0.0, %v1235
  %v1237 = vpop.f32.mrf.mxu0
  %1238 = vmatprep.mubr.f32.mxu0 0.0
  %1239 = vmatmul.mubr.f32.gmra.mxu0 %v1167
  %v1240 = vpop.f32.mrf.mxu0
  %v1241 = vadd.f32 0.0, %v1240
  %v1242 = vpop.f32.mrf.mxu0
  %1243 = vdwg.mxu0
  %v1244 = vadd.f32 %v159, %v1236
  %v1245 = vadd.f32 %v164, %v1241
  %v1246 = vld [vmem:[%s10] sm:$0x1]
  %v1248 = vlaneseq
  %v1249 = vshrl.u32 %v1248, 7
  %v1250 = vsub.s32 0, %v1249
  %v1251 = vrot.slane %v1246, %v1250
  %v1253 = vadd.f32 %v1244, %v1251
  %v1254 = vadd.f32 %v1245, %v1251
  %v1255 = vld [vmem:[%s17] sm:$0x1]
  %v1256 = vld [vmem:[%s18] sm:$0x1]
  %v1257 = vsel %vm169, %v1253, 0.0
  %1258 = vadd.xlane.f32.xlu0 %v1257
  %v1259 = vpop.xlane.xlu0 %1258
  %v1260 = vsel %vm169, %v1254, 0.0
  %1261 = vadd.xlane.f32.xlu0 %v1260
  %v1262 = vpop.xlane.xlu0 %1261
  %v1263 = vmul.f32 %v1259, %v176
  %v1264 = vmul.f32 %v1262, %v176
  %v1265 = vsub.f32 %v1253, %v1263
  %v1266 = vsub.f32 %v1254, %v1264
  %v1267 = vmul.f32 %v1265, %v1265
  %v1268 = vmul.f32 %v1266, %v1266
  %v1269 = vsel %vm169, %v1267, 0.0
  %1270 = vadd.xlane.f32.xlu0 %v1269
  %v1271 = vpop.xlane.xlu0 %1270
  %v1272 = vsel %vm169, %v1268, 0.0
  %1273 = vadd.xlane.f32.xlu0 %v1272
  %v1274 = vpop.xlane.xlu0 %1273
  %v1275 = vmul.f32 %v1271, 0.032258064
  %v1276 = vmul.f32 %v1274, 0.032258064
  %v1277 = vrsqrt.pop %v1275
  %v1278 = vmul.f32 %v1275, %v1277
  %vm1279 = vcmp.eq.f32.partialorder %v1275, inf
  %v1280 = vsel %vm1279, %v1275, %v1278
  %vm1281 = vcmp.eq.f32.partialorder %v1275, 0.0
  %v1282 = vand.u32 %v1275, 2147483648
  %v1283 = vsel %vm1281, %v1282, %v1280
  %v1284 = vrsqrt.pop %v1276
  %v1285 = vmul.f32 %v1276, %v1284
  %vm1286 = vcmp.eq.f32.partialorder %v1276, inf
  %v1287 = vsel %vm1286, %v1276, %v1285
  %vm1288 = vcmp.eq.f32.partialorder %v1276, 0.0
  %v1289 = vand.u32 %v1276, 2147483648
  %v1290 = vsel %vm1288, %v1289, %v1287
  %v1291 = vadd.f32 %v1283, 1e-06
  %v1292 = vadd.f32 %v1290, 1e-06
  %v1293 = vrcp.pop %v1291
  %v1294 = vrcp.pop %v1292
  %v1296 = vlaneseq
  %v1297 = vshrl.u32 %v1296, 7
  %v1298 = vsub.s32 0, %v1297
  %v1299 = vrot.slane %v1255, %v1298
  %v1301 = vmul.f32 %v1299, %v1265
  %v1302 = vmul.f32 %v1299, %v1266
  %v1303 = vmul.f32 %v1301, %v1293
  %v1304 = vmul.f32 %v1302, %v1294
  %v1306 = vlaneseq
  %v1307 = vshrl.u32 %v1306, 7
  %v1308 = vsub.s32 0, %v1307
  %v1309 = vrot.slane %v1256, %v1308
  %v1311 = vadd.f32 %v1303, %v1309
  %v1312 = vadd.f32 %v1304, %v1309
  %v1313 = vld [vmem:[%s11] sm:$0xff]
  %v1314 = vld [vmem:[%s11 + $0x8] sm:$0xff]
  %v1315 = vld [vmem:[%s11 + $0x10] sm:$0xff]
  %v1316 = vld [vmem:[%s11 + $0x18] sm:$0xff]
  %v1317 = vld [vmem:[%s12] sm:$0x1]
  %v1319 = vlaneseq
  %v1320 = vshrl.u32 %v1319, 7
  %v1321 = vsub.s32 0, %v1320
  %v1322 = vrot.slane %v1317, %v1321
  %v1325 = vsel %vm169, %v1311, 0
  %v1328 = vsel %vm169, %v1312, 0
  %1330 = vmatprep.subr.mxu0 0.0
  %1331 = vmatpush1.msra.mxu0 0.0
  %1332 = vmatprep.subr.mxu0 0.0
  %1333 = vmatpush1.msra.mxu0 0.0
  %1334 = vmatprep.subr.mxu0 0.0
  %1335 = vmatpush1.msra.mxu0 0.0
  %1336 = vmatprep.subr.mxu0 0.0
  %1337 = vmatpush1.msra.mxu0 0.0
  %1338 = vmatprep.subr.mxu0 0.0
  %1339 = vmatpush1.msra.mxu0 0.0
  %1340 = vmatprep.subr.mxu0 0.0
  %1341 = vmatpush1.msra.mxu0 0.0
  %1342 = vmatprep.subr.mxu0 0.0
  %1343 = vmatpush1.msra.mxu0 0.0
  %1344 = vmatprep.subr.mxu0 0.0
  %1345 = vmatpush1.msra.mxu0 0.0
  %1346 = vmatprep.subr.mxu0 0.0
  %1347 = vmatpush1.msra.mxu0 0.0
  %1348 = vmatprep.subr.mxu0 0.0
  %1349 = vmatpush1.msra.mxu0 0.0
  %1350 = vmatprep.subr.mxu0 0.0
  %1351 = vmatpush1.msra.mxu0 0.0
  %1352 = vmatprep.subr.mxu0 0.0
  %1353 = vmatpush1.msra.mxu0 0.0
  %1354 = vmatprep.subr.mxu0 0.0
  %1355 = vmatpush1.msra.mxu0 %v1316
  %1356 = vmatprep.subr.mxu0 0.0
  %1357 = vmatpush1.msra.mxu0 %v1315
  %1358 = vmatprep.subr.mxu0 0.0
  %1359 = vmatpush1.msra.mxu0 %v1314
  %1360 = vmatprep.subr.mxu0 0.0
  %1361 = vmatpush1.msra.mxu0 %v1313
  %1362 = vmatprep.subr.mxu0 0.0
  %1363 = vmatpush2.msra.mxu0 0.0
  %1364 = vmatprep.subr.mxu0 0.0
  %1365 = vmatpush2.msra.mxu0 0.0
  %1366 = vmatprep.subr.mxu0 0.0
  %1367 = vmatpush2.msra.mxu0 0.0
  %1368 = vmatprep.subr.mxu0 0.0
  %1369 = vmatpush2.msra.mxu0 0.0
  %1370 = vmatprep.subr.mxu0 0.0
  %1371 = vmatpush2.msra.mxu0 0.0
  %1372 = vmatprep.subr.mxu0 0.0
  %1373 = vmatpush2.msra.mxu0 0.0
  %1374 = vmatprep.subr.mxu0 0.0
  %1375 = vmatpush2.msra.mxu0 0.0
  %1376 = vmatprep.subr.mxu0 0.0
  %1377 = vmatpush2.msra.mxu0 0.0
  %1378 = vmatprep.subr.mxu0 0.0
  %1379 = vmatpush2.msra.mxu0 0.0
  %1380 = vmatprep.subr.mxu0 0.0
  %1381 = vmatpush2.msra.mxu0 0.0
  %1382 = vmatprep.subr.mxu0 0.0
  %1383 = vmatpush2.msra.mxu0 0.0
  %1384 = vmatprep.subr.mxu0 0.0
  %1385 = vmatpush2.msra.mxu0 0.0
  %1386 = vmatprep.subr.mxu0 0.0
  %1387 = vmatpush2.msra.mxu0 0.0
  %1388 = vmatprep.subr.mxu0 0.0
  %1389 = vmatpush2.msra.mxu0 0.0
  %1390 = vmatprep.subr.mxu0 0.0
  %1391 = vmatpush2.msra.mxu0 0.0
  %1392 = vmatprep.subr.mxu0 0.0
  %1393 = vmatpush2.msra.mxu0 0.0
  %1394 = vmatprep.mubr.f32.mxu0 0.0
  %1395 = vmatmul.mubr.f32.gmra.mxu0 %v1325
  %v1396 = vpop.f32.mrf.mxu0
  %v1397 = vadd.f32 %v1322, %v1396
  %v1398 = vpop.f32.mrf.mxu0
  %1399 = vmatprep.mubr.f32.mxu0 0.0
  %1400 = vmatmul.mubr.f32.gmra.mxu0 %v1328
  %v1401 = vpop.f32.mrf.mxu0
  %v1402 = vadd.f32 %v1322, %v1401
  %v1403 = vpop.f32.mrf.mxu0
  %1404 = vdwg.mxu0
  %v1405 = vmax.f32 %v1397, 0.0
  %v1406 = vmax.f32 %v1402, 0.0
  %v1407 = vld [vmem:[%s13] sm:$0xff]
  %v1408 = vld [vmem:[%s13 + $0x8] sm:$0xff]
  %v1409 = vld [vmem:[%s13 + $0x10] sm:$0xff]
  %v1410 = vld [vmem:[%s13 + $0x18] sm:$0xff]
  %v1411 = vld [vmem:[%s13 + $0x20] sm:$0xff]
  %v1412 = vld [vmem:[%s13 + $0x28] sm:$0xff]
  %v1413 = vld [vmem:[%s13 + $0x30] sm:$0xff]
  %v1414 = vld [vmem:[%s13 + $0x38] sm:$0xff]
  %vm1415 = vcmask 523264
  %v1417 = vsel %vm1415, %v1405, 0
  %v1420 = vsel %vm1415, %v1406, 0
  %1422 = vmatprep.subr.mxu0 0.0
  %1423 = vmatpush1.msra.mxu0 0.0
  %1424 = vmatprep.subr.mxu0 0.0
  %1425 = vmatpush1.msra.mxu0 0.0
  %1426 = vmatprep.subr.mxu0 0.0
  %1427 = vmatpush1.msra.mxu0 0.0
  %1428 = vmatprep.subr.mxu0 0.0
  %1429 = vmatpush1.msra.mxu0 0.0
  %1430 = vmatprep.subr.mxu0 0.0
  %1431 = vmatpush1.msra.mxu0 0.0
  %1432 = vmatprep.subr.mxu0 0.0
  %1433 = vmatpush1.msra.mxu0 0.0
  %1434 = vmatprep.subr.mxu0 0.0
  %1435 = vmatpush1.msra.mxu0 0.0
  %1436 = vmatprep.subr.mxu0 0.0
  %1437 = vmatpush1.msra.mxu0 0.0
  %1438 = vmatprep.subr.mxu0 0.0
  %1439 = vmatpush1.msra.mxu0 %v1414
  %1440 = vmatprep.subr.mxu0 0.0
  %1441 = vmatpush1.msra.mxu0 %v1413
  %1442 = vmatprep.subr.mxu0 0.0
  %1443 = vmatpush1.msra.mxu0 %v1412
  %1444 = vmatprep.subr.mxu0 0.0
  %1445 = vmatpush1.msra.mxu0 %v1411
  %1446 = vmatprep.subr.mxu0 0.0
  %1447 = vmatpush1.msra.mxu0 %v1410
  %1448 = vmatprep.subr.mxu0 0.0
  %1449 = vmatpush1.msra.mxu0 %v1409
  %1450 = vmatprep.subr.mxu0 0.0
  %1451 = vmatpush1.msra.mxu0 %v1408
  %1452 = vmatprep.subr.mxu0 0.0
  %1453 = vmatpush1.msra.mxu0 %v1407
  %1454 = vmatprep.subr.mxu0 0.0
  %1455 = vmatpush2.msra.mxu0 0.0
  %1456 = vmatprep.subr.mxu0 0.0
  %1457 = vmatpush2.msra.mxu0 0.0
  %1458 = vmatprep.subr.mxu0 0.0
  %1459 = vmatpush2.msra.mxu0 0.0
  %1460 = vmatprep.subr.mxu0 0.0
  %1461 = vmatpush2.msra.mxu0 0.0
  %1462 = vmatprep.subr.mxu0 0.0
  %1463 = vmatpush2.msra.mxu0 0.0
  %1464 = vmatprep.subr.mxu0 0.0
  %1465 = vmatpush2.msra.mxu0 0.0
  %1466 = vmatprep.subr.mxu0 0.0
  %1467 = vmatpush2.msra.mxu0 0.0
  %1468 = vmatprep.subr.mxu0 0.0
  %1469 = vmatpush2.msra.mxu0 0.0
  %1470 = vmatprep.subr.mxu0 0.0
  %1471 = vmatpush2.msra.mxu0 0.0
  %1472 = vmatprep.subr.mxu0 0.0
  %1473 = vmatpush2.msra.mxu0 0.0
  %1474 = vmatprep.subr.mxu0 0.0
  %1475 = vmatpush2.msra.mxu0 0.0
  %1476 = vmatprep.subr.mxu0 0.0
  %1477 = vmatpush2.msra.mxu0 0.0
  %1478 = vmatprep.subr.mxu0 0.0
  %1479 = vmatpush2.msra.mxu0 0.0
  %1480 = vmatprep.subr.mxu0 0.0
  %1481 = vmatpush2.msra.mxu0 0.0
  %1482 = vmatprep.subr.mxu0 0.0
  %1483 = vmatpush2.msra.mxu0 0.0
  %1484 = vmatprep.subr.mxu0 0.0
  %1485 = vmatpush2.msra.mxu0 0.0
  %1486 = vmatprep.mubr.f32.mxu0 0.0
  %1487 = vmatmul.mubr.f32.gmra.mxu0 %v1417
  %v1488 = vpop.f32.mrf.mxu0
  %v1489 = vadd.f32 0.0, %v1488
  %v1490 = vpop.f32.mrf.mxu0
  %1491 = vmatprep.mubr.f32.mxu0 0.0
  %1492 = vmatmul.mubr.f32.gmra.mxu0 %v1420
  %v1493 = vpop.f32.mrf.mxu0
  %v1494 = vadd.f32 0.0, %v1493
  %v1495 = vpop.f32.mrf.mxu0
  %1496 = vdwg.mxu0
  %v1497 = vadd.f32 %v1253, %v1489
  %v1498 = vadd.f32 %v1254, %v1494
  %v1499 = vld [vmem:[%s14] sm:$0x1]
  %v1501 = vlaneseq
  %v1502 = vshrl.u32 %v1501, 7
  %v1503 = vsub.s32 0, %v1502
  %v1504 = vrot.slane %v1499, %v1503
  %v1506 = vadd.f32 %v1497, %v1504
  %v1507 = vadd.f32 %v1498, %v1504
  %s1508 = scalar_lea.vmem %s15, 1
  %v1509 = vld [vmem:[%s1508] sm:$0x1]
  %s1510 = scalar_lea.vmem %s16, 1
  %v1511 = vld [vmem:[%s1510] sm:$0x1]
  %v1512 = vsel %vm169, %v1506, 0.0
  %1513 = vadd.xlane.f32.xlu0 %v1512
  %v1514 = vpop.xlane.xlu0 %1513
  %v1515 = vsel %vm169, %v1507, 0.0
  %1516 = vadd.xlane.f32.xlu0 %v1515
  %v1517 = vpop.xlane.xlu0 %1516
  %v1518 = vmul.f32 %v1514, %v176
  %v1519 = vmul.f32 %v1517, %v176
  %v1520 = vsub.f32 %v1506, %v1518
  %v1521 = vsub.f32 %v1507, %v1519
  %v1522 = vmul.f32 %v1520, %v1520
  %v1523 = vmul.f32 %v1521, %v1521
  %v1524 = vsel %vm169, %v1522, 0.0
  %1525 = vadd.xlane.f32.xlu0 %v1524
  %v1526 = vpop.xlane.xlu0 %1525
  %v1527 = vsel %vm169, %v1523, 0.0
  %1528 = vadd.xlane.f32.xlu0 %v1527
  %v1529 = vpop.xlane.xlu0 %1528
  %v1530 = vmul.f32 %v1526, 0.032258064
  %v1531 = vmul.f32 %v1529, 0.032258064
  %v1532 = vrsqrt.pop %v1530
  %v1533 = vmul.f32 %v1530, %v1532
  %vm1534 = vcmp.eq.f32.partialorder %v1530, inf
  %v1535 = vsel %vm1534, %v1530, %v1533
  %vm1536 = vcmp.eq.f32.partialorder %v1530, 0.0
  %v1537 = vand.u32 %v1530, 2147483648
  %v1538 = vsel %vm1536, %v1537, %v1535
  %v1539 = vrsqrt.pop %v1531
  %v1540 = vmul.f32 %v1531, %v1539
  %vm1541 = vcmp.eq.f32.partialorder %v1531, inf
  %v1542 = vsel %vm1541, %v1531, %v1540
  %vm1543 = vcmp.eq.f32.partialorder %v1531, 0.0
  %v1544 = vand.u32 %v1531, 2147483648
  %v1545 = vsel %vm1543, %v1544, %v1542
  %v1546 = vadd.f32 %v1538, 1e-06
  %v1547 = vadd.f32 %v1545, 1e-06
  %v1548 = vrcp.pop %v1546
  %v1549 = vrcp.pop %v1547
  %v1551 = vlaneseq
  %v1552 = vshrl.u32 %v1551, 7
  %v1553 = vsub.s32 0, %v1552
  %v1554 = vrot.slane %v1509, %v1553
  %v1556 = vmul.f32 %v1554, %v1520
  %v1557 = vmul.f32 %v1554, %v1521
  %v1558 = vmul.f32 %v1556, %v1548
  %v1559 = vmul.f32 %v1557, %v1549
  %v1561 = vlaneseq
  %v1562 = vshrl.u32 %v1561, 7
  %v1563 = vsub.s32 0, %v1562
  %v1564 = vrot.slane %v1511, %v1563
  %v1566 = vadd.f32 %v1558, %v1564
  %v1567 = vadd.f32 %v1559, %v1564
  %s1568 = scalar_lea.vmem %s3, 32
  %v1569 = vld [vmem:[%s1568] sm:$0xff]
  %v1570 = vld [vmem:[%s1568 + $0x8] sm:$0xff]
  %v1571 = vld [vmem:[%s1568 + $0x10] sm:$0xff]
  %v1572 = vld [vmem:[%s1568 + $0x18] sm:$0xff]
  %s1573 = scalar_lea.vmem %s4, 1
  %v1574 = vld [vmem:[%s1573] sm:$0x1]
  %v1576 = vlaneseq
  %v1577 = vshrl.u32 %v1576, 7
  %v1578 = vsub.s32 0, %v1577
  %v1579 = vrot.slane %v1574, %v1578
  %v1582 = vsel %vm169, %v1566, 0
  %v1585 = vsel %vm169, %v1567, 0
  %1587 = vmatprep.subr.mxu0 0.0
  %1588 = vmatpush1.msra.mxu0 0.0
  %1589 = vmatprep.subr.mxu0 0.0
  %1590 = vmatpush1.msra.mxu0 0.0
  %1591 = vmatprep.subr.mxu0 0.0
  %1592 = vmatpush1.msra.mxu0 0.0
  %1593 = vmatprep.subr.mxu0 0.0
  %1594 = vmatpush1.msra.mxu0 0.0
  %1595 = vmatprep.subr.mxu0 0.0
  %1596 = vmatpush1.msra.mxu0 0.0
  %1597 = vmatprep.subr.mxu0 0.0
  %1598 = vmatpush1.msra.mxu0 0.0
  %1599 = vmatprep.subr.mxu0 0.0
  %1600 = vmatpush1.msra.mxu0 0.0
  %1601 = vmatprep.subr.mxu0 0.0
  %1602 = vmatpush1.msra.mxu0 0.0
  %1603 = vmatprep.subr.mxu0 0.0
  %1604 = vmatpush1.msra.mxu0 0.0
  %1605 = vmatprep.subr.mxu0 0.0
  %1606 = vmatpush1.msra.mxu0 0.0
  %1607 = vmatprep.subr.mxu0 0.0
  %1608 = vmatpush1.msra.mxu0 0.0
  %1609 = vmatprep.subr.mxu0 0.0
  %1610 = vmatpush1.msra.mxu0 0.0
  %1611 = vmatprep.subr.mxu0 0.0
  %1612 = vmatpush1.msra.mxu0 %v1572
  %1613 = vmatprep.subr.mxu0 0.0
  %1614 = vmatpush1.msra.mxu0 %v1571
  %1615 = vmatprep.subr.mxu0 0.0
  %1616 = vmatpush1.msra.mxu0 %v1570
  %1617 = vmatprep.subr.mxu0 0.0
  %1618 = vmatpush1.msra.mxu0 %v1569
  %1619 = vmatprep.subr.mxu0 0.0
  %1620 = vmatpush2.msra.mxu0 0.0
  %1621 = vmatprep.subr.mxu0 0.0
  %1622 = vmatpush2.msra.mxu0 0.0
  %1623 = vmatprep.subr.mxu0 0.0
  %1624 = vmatpush2.msra.mxu0 0.0
  %1625 = vmatprep.subr.mxu0 0.0
  %1626 = vmatpush2.msra.mxu0 0.0
  %1627 = vmatprep.subr.mxu0 0.0
  %1628 = vmatpush2.msra.mxu0 0.0
  %1629 = vmatprep.subr.mxu0 0.0
  %1630 = vmatpush2.msra.mxu0 0.0
  %1631 = vmatprep.subr.mxu0 0.0
  %1632 = vmatpush2.msra.mxu0 0.0
  %1633 = vmatprep.subr.mxu0 0.0
  %1634 = vmatpush2.msra.mxu0 0.0
  %1635 = vmatprep.subr.mxu0 0.0
  %1636 = vmatpush2.msra.mxu0 0.0
  %1637 = vmatprep.subr.mxu0 0.0
  %1638 = vmatpush2.msra.mxu0 0.0
  %1639 = vmatprep.subr.mxu0 0.0
  %1640 = vmatpush2.msra.mxu0 0.0
  %1641 = vmatprep.subr.mxu0 0.0
  %1642 = vmatpush2.msra.mxu0 0.0
  %1643 = vmatprep.subr.mxu0 0.0
  %1644 = vmatpush2.msra.mxu0 0.0
  %1645 = vmatprep.subr.mxu0 0.0
  %1646 = vmatpush2.msra.mxu0 0.0
  %1647 = vmatprep.subr.mxu0 0.0
  %1648 = vmatpush2.msra.mxu0 0.0
  %1649 = vmatprep.subr.mxu0 0.0
  %1650 = vmatpush2.msra.mxu0 0.0
  %1651 = vmatprep.mubr.f32.mxu0 0.0
  %1652 = vmatmul.mubr.f32.gmra.mxu0 %v1582
  %v1653 = vpop.f32.mrf.mxu0
  %v1654 = vadd.f32 %v1579, %v1653
  %v1655 = vpop.f32.mrf.mxu0
  %1656 = vmatprep.mubr.f32.mxu0 0.0
  %1657 = vmatmul.mubr.f32.gmra.mxu0 %v1585
  %v1658 = vpop.f32.mrf.mxu0
  %v1659 = vadd.f32 %v1579, %v1658
  %v1660 = vpop.f32.mrf.mxu0
  %1661 = vdwg.mxu0
  %s1662 = scalar_lea.vmem %s5, 32
  %v1663 = vld [vmem:[%s1662] sm:$0xff]
  %v1664 = vld [vmem:[%s1662 + $0x8] sm:$0xff]
  %v1665 = vld [vmem:[%s1662 + $0x10] sm:$0xff]
  %v1666 = vld [vmem:[%s1662 + $0x18] sm:$0xff]
  %s1667 = scalar_lea.vmem %s6, 1
  %v1668 = vld [vmem:[%s1667] sm:$0x1]
  %v1670 = vlaneseq
  %v1671 = vshrl.u32 %v1670, 7
  %v1672 = vsub.s32 0, %v1671
  %v1673 = vrot.slane %v1668, %v1672
  %1675 = vmatprep.subr.mxu0 0.0
  %1676 = vmatpush1.msra.mxu0 0.0
  %1677 = vmatprep.subr.mxu0 0.0
  %1678 = vmatpush1.msra.mxu0 0.0
  %1679 = vmatprep.subr.mxu0 0.0
  %1680 = vmatpush1.msra.mxu0 0.0
  %1681 = vmatprep.subr.mxu0 0.0
  %1682 = vmatpush1.msra.mxu0 0.0
  %1683 = vmatprep.subr.mxu0 0.0
  %1684 = vmatpush1.msra.mxu0 0.0
  %1685 = vmatprep.subr.mxu0 0.0
  %1686 = vmatpush1.msra.mxu0 0.0
  %1687 = vmatprep.subr.mxu0 0.0
  %1688 = vmatpush1.msra.mxu0 0.0
  %1689 = vmatprep.subr.mxu0 0.0
  %1690 = vmatpush1.msra.mxu0 0.0
  %1691 = vmatprep.subr.mxu0 0.0
  %1692 = vmatpush1.msra.mxu0 0.0
  %1693 = vmatprep.subr.mxu0 0.0
  %1694 = vmatpush1.msra.mxu0 0.0
  %1695 = vmatprep.subr.mxu0 0.0
  %1696 = vmatpush1.msra.mxu0 0.0
  %1697 = vmatprep.subr.mxu0 0.0
  %1698 = vmatpush1.msra.mxu0 0.0
  %1699 = vmatprep.subr.mxu0 0.0
  %1700 = vmatpush1.msra.mxu0 %v1666
  %1701 = vmatprep.subr.mxu0 0.0
  %1702 = vmatpush1.msra.mxu0 %v1665
  %1703 = vmatprep.subr.mxu0 0.0
  %1704 = vmatpush1.msra.mxu0 %v1664
  %1705 = vmatprep.subr.mxu0 0.0
  %1706 = vmatpush1.msra.mxu0 %v1663
  %1707 = vmatprep.subr.mxu0 0.0
  %1708 = vmatpush2.msra.mxu0 0.0
  %1709 = vmatprep.subr.mxu0 0.0
  %1710 = vmatpush2.msra.mxu0 0.0
  %1711 = vmatprep.subr.mxu0 0.0
  %1712 = vmatpush2.msra.mxu0 0.0
  %1713 = vmatprep.subr.mxu0 0.0
  %1714 = vmatpush2.msra.mxu0 0.0
  %1715 = vmatprep.subr.mxu0 0.0
  %1716 = vmatpush2.msra.mxu0 0.0
  %1717 = vmatprep.subr.mxu0 0.0
  %1718 = vmatpush2.msra.mxu0 0.0
  %1719 = vmatprep.subr.mxu0 0.0
  %1720 = vmatpush2.msra.mxu0 0.0
  %1721 = vmatprep.subr.mxu0 0.0
  %1722 = vmatpush2.msra.mxu0 0.0
  %1723 = vmatprep.subr.mxu0 0.0
  %1724 = vmatpush2.msra.mxu0 0.0
  %1725 = vmatprep.subr.mxu0 0.0
  %1726 = vmatpush2.msra.mxu0 0.0
  %1727 = vmatprep.subr.mxu0 0.0
  %1728 = vmatpush2.msra.mxu0 0.0
  %1729 = vmatprep.subr.mxu0 0.0
  %1730 = vmatpush2.msra.mxu0 0.0
  %1731 = vmatprep.subr.mxu0 0.0
  %1732 = vmatpush2.msra.mxu0 0.0
  %1733 = vmatprep.subr.mxu0 0.0
  %1734 = vmatpush2.msra.mxu0 0.0
  %1735 = vmatprep.subr.mxu0 0.0
  %1736 = vmatpush2.msra.mxu0 0.0
  %1737 = vmatprep.subr.mxu0 0.0
  %1738 = vmatpush2.msra.mxu0 0.0
  %1739 = vmatprep.mubr.f32.mxu0 0.0
  %1740 = vmatmul.mubr.f32.gmra.mxu0 %v1582
  %v1741 = vpop.f32.mrf.mxu0
  %v1742 = vadd.f32 %v1673, %v1741
  %v1743 = vpop.f32.mrf.mxu0
  %1744 = vmatprep.mubr.f32.mxu0 0.0
  %1745 = vmatmul.mubr.f32.gmra.mxu0 %v1585
  %v1746 = vpop.f32.mrf.mxu0
  %v1747 = vadd.f32 %v1673, %v1746
  %v1748 = vpop.f32.mrf.mxu0
  %1749 = vdwg.mxu0
  %s1750 = scalar_lea.vmem %s7, 32
  %v1751 = vld [vmem:[%s1750] sm:$0xff]
  %v1752 = vld [vmem:[%s1750 + $0x8] sm:$0xff]
  %v1753 = vld [vmem:[%s1750 + $0x10] sm:$0xff]
  %v1754 = vld [vmem:[%s1750 + $0x18] sm:$0xff]
  %s1755 = scalar_lea.vmem %s8, 1
  %v1756 = vld [vmem:[%s1755] sm:$0x1]
  %v1758 = vlaneseq
  %v1759 = vshrl.u32 %v1758, 7
  %v1760 = vsub.s32 0, %v1759
  %v1761 = vrot.slane %v1756, %v1760
  %1763 = vmatprep.subr.mxu0 0.0
  %1764 = vmatpush1.msra.mxu0 0.0
  %1765 = vmatprep.subr.mxu0 0.0
  %1766 = vmatpush1.msra.mxu0 0.0
  %1767 = vmatprep.subr.mxu0 0.0
  %1768 = vmatpush1.msra.mxu0 0.0
  %1769 = vmatprep.subr.mxu0 0.0
  %1770 = vmatpush1.msra.mxu0 0.0
  %1771 = vmatprep.subr.mxu0 0.0
  %1772 = vmatpush1.msra.mxu0 0.0
  %1773 = vmatprep.subr.mxu0 0.0
  %1774 = vmatpush1.msra.mxu0 0.0
  %1775 = vmatprep.subr.mxu0 0.0
  %1776 = vmatpush1.msra.mxu0 0.0
  %1777 = vmatprep.subr.mxu0 0.0
  %1778 = vmatpush1.msra.mxu0 0.0
  %1779 = vmatprep.subr.mxu0 0.0
  %1780 = vmatpush1.msra.mxu0 0.0
  %1781 = vmatprep.subr.mxu0 0.0
  %1782 = vmatpush1.msra.mxu0 0.0
  %1783 = vmatprep.subr.mxu0 0.0
  %1784 = vmatpush1.msra.mxu0 0.0
  %1785 = vmatprep.subr.mxu0 0.0
  %1786 = vmatpush1.msra.mxu0 0.0
  %1787 = vmatprep.subr.mxu0 0.0
  %1788 = vmatpush1.msra.mxu0 %v1754
  %1789 = vmatprep.subr.mxu0 0.0
  %1790 = vmatpush1.msra.mxu0 %v1753
  %1791 = vmatprep.subr.mxu0 0.0
  %1792 = vmatpush1.msra.mxu0 %v1752
  %1793 = vmatprep.subr.mxu0 0.0
  %1794 = vmatpush1.msra.mxu0 %v1751
  %1795 = vmatprep.subr.mxu0 0.0
  %1796 = vmatpush2.msra.mxu0 0.0
  %1797 = vmatprep.subr.mxu0 0.0
  %1798 = vmatpush2.msra.mxu0 0.0
  %1799 = vmatprep.subr.mxu0 0.0
  %1800 = vmatpush2.msra.mxu0 0.0
  %1801 = vmatprep.subr.mxu0 0.0
  %1802 = vmatpush2.msra.mxu0 0.0
  %1803 = vmatprep.subr.mxu0 0.0
  %1804 = vmatpush2.msra.mxu0 0.0
  %1805 = vmatprep.subr.mxu0 0.0
  %1806 = vmatpush2.msra.mxu0 0.0
  %1807 = vmatprep.subr.mxu0 0.0
  %1808 = vmatpush2.msra.mxu0 0.0
  %1809 = vmatprep.subr.mxu0 0.0
  %1810 = vmatpush2.msra.mxu0 0.0
  %1811 = vmatprep.subr.mxu0 0.0
  %1812 = vmatpush2.msra.mxu0 0.0
  %1813 = vmatprep.subr.mxu0 0.0
  %1814 = vmatpush2.msra.mxu0 0.0
  %1815 = vmatprep.subr.mxu0 0.0
  %1816 = vmatpush2.msra.mxu0 0.0
  %1817 = vmatprep.subr.mxu0 0.0
  %1818 = vmatpush2.msra.mxu0 0.0
  %1819 = vmatprep.subr.mxu0 0.0
  %1820 = vmatpush2.msra.mxu0 0.0
  %1821 = vmatprep.subr.mxu0 0.0
  %1822 = vmatpush2.msra.mxu0 0.0
  %1823 = vmatprep.subr.mxu0 0.0
  %1824 = vmatpush2.msra.mxu0 0.0
  %1825 = vmatprep.subr.mxu0 0.0
  %1826 = vmatpush2.msra.mxu0 0.0
  %1827 = vmatprep.mubr.f32.mxu0 0.0
  %1828 = vmatmul.mubr.f32.gmra.mxu0 %v1582
  %v1829 = vpop.f32.mrf.mxu0
  %v1830 = vadd.f32 %v1761, %v1829
  %v1831 = vpop.f32.mrf.mxu0
  %1832 = vmatprep.mubr.f32.mxu0 0.0
  %1833 = vmatmul.mubr.f32.gmra.mxu0 %v1585
  %v1834 = vpop.f32.mrf.mxu0
  %v1835 = vadd.f32 %v1761, %v1834
  %v1836 = vpop.f32.mrf.mxu0
  %1837 = vdwg.mxu0
  %v1839 = vsel %vm491, %v1654, 0
  %v1842 = vsel %vm491, %v1742, 0
  %1844 = vmatprep.subr.mxu0 0.0
  %1845 = vmatpush1.xpose.msra.mxu0 0.0
  %1846 = vmatprep.subr.mxu0 0.0
  %1847 = vmatpush1.xpose.msra.mxu0 0.0
  %1848 = vmatprep.subr.mxu0 0.0
  %1849 = vmatpush1.xpose.msra.mxu0 0.0
  %1850 = vmatprep.subr.mxu0 0.0
  %1851 = vmatpush1.xpose.msra.mxu0 0.0
  %1852 = vmatprep.subr.mxu0 0.0
  %1853 = vmatpush1.xpose.msra.mxu0 0.0
  %1854 = vmatprep.subr.mxu0 0.0
  %1855 = vmatpush1.xpose.msra.mxu0 0.0
  %1856 = vmatprep.subr.mxu0 0.0
  %1857 = vmatpush1.xpose.msra.mxu0 0.0
  %1858 = vmatprep.subr.mxu0 0.0
  %1859 = vmatpush1.xpose.msra.mxu0 0.0
  %1860 = vmatprep.subr.mxu0 0.0
  %1861 = vmatpush1.xpose.msra.mxu0 0.0
  %1862 = vmatprep.subr.mxu0 0.0
  %1863 = vmatpush1.xpose.msra.mxu0 0.0
  %1864 = vmatprep.subr.mxu0 0.0
  %1865 = vmatpush1.xpose.msra.mxu0 0.0
  %1866 = vmatprep.subr.mxu0 0.0
  %1867 = vmatpush1.xpose.msra.mxu0 0.0
  %1868 = vmatprep.subr.mxu0 0.0
  %1869 = vmatpush1.xpose.msra.mxu0 0.0
  %1870 = vmatprep.subr.mxu0 0.0
  %1871 = vmatpush1.xpose.msra.mxu0 0.0
  %1872 = vmatprep.subr.mxu0 0.0
  %1873 = vmatpush1.xpose.msra.mxu0 0.0
  %1874 = vmatprep.subr.mxu0 0.0
  %1875 = vmatpush1.xpose.msra.mxu0 %v1842
  %1876 = vmatprep.subr.mxu0 0.0
  %1877 = vmatpush2.xpose.msra.mxu0 0.0
  %1878 = vmatprep.subr.mxu0 0.0
  %1879 = vmatpush2.xpose.msra.mxu0 0.0
  %1880 = vmatprep.subr.mxu0 0.0
  %1881 = vmatpush2.xpose.msra.mxu0 0.0
  %1882 = vmatprep.subr.mxu0 0.0
  %1883 = vmatpush2.xpose.msra.mxu0 0.0
  %1884 = vmatprep.subr.mxu0 0.0
  %1885 = vmatpush2.xpose.msra.mxu0 0.0
  %1886 = vmatprep.subr.mxu0 0.0
  %1887 = vmatpush2.xpose.msra.mxu0 0.0
  %1888 = vmatprep.subr.mxu0 0.0
  %1889 = vmatpush2.xpose.msra.mxu0 0.0
  %1890 = vmatprep.subr.mxu0 0.0
  %1891 = vmatpush2.xpose.msra.mxu0 0.0
  %1892 = vmatprep.subr.mxu0 0.0
  %1893 = vmatpush2.xpose.msra.mxu0 0.0
  %1894 = vmatprep.subr.mxu0 0.0
  %1895 = vmatpush2.xpose.msra.mxu0 0.0
  %1896 = vmatprep.subr.mxu0 0.0
  %1897 = vmatpush2.xpose.msra.mxu0 0.0
  %1898 = vmatprep.subr.mxu0 0.0
  %1899 = vmatpush2.xpose.msra.mxu0 0.0
  %1900 = vmatprep.subr.mxu0 0.0
  %1901 = vmatpush2.xpose.msra.mxu0 0.0
  %1902 = vmatprep.subr.mxu0 0.0
  %1903 = vmatpush2.xpose.msra.mxu0 0.0
  %1904 = vmatprep.subr.mxu0 0.0
  %1905 = vmatpush2.xpose.msra.mxu0 0.0
  %1906 = vmatprep.subr.mxu0 0.0
  %1907 = vmatpush2.xpose.msra.mxu0 0.0
  %1908 = vmatprep.mubr.f32.mxu0 0.0
  %1909 = vmatmul.mubr.f32.gmra.mxu0 %v1839
  %v1910 = vpop.f32.mrf.mxu0
  %v1911 = vadd.f32 0.0, %v1910
  %v1912 = vpop.f32.mrf.mxu0
  %1913 = vdwg.mxu0
  %v1914 = vmul.f32 %v1911, 0.25
  %v1915 = vsel %vm569, %v1914, -inf
  %1916 = vmax.xlane.f32.xlu0 %v1915
  %v1917 = vpop.xlane.xlu0 %1916
  %v1918 = vsub.f32 %v1914, %v1917
  %v1919 = vmul.f32 %v1918, 1.442695
  %v1920 = vpow.pop %v1919
  %v1921 = vsel %vm569, %v1920, 0.0
  %1922 = vadd.xlane.f32.xlu0 %v1921
  %v1923 = vpop.xlane.xlu0 %1922
  %v1924 = vrcp.pop %v1923
  %v1925 = vmul.f32 %v1920, %v1924
  %v1927 = vsel %vm569, %v1925, 0
  %1929 = vmatprep.subr.mxu0 0.0
  %1930 = vmatpush1.msra.mxu0 0.0
  %1931 = vmatprep.subr.mxu0 0.0
  %1932 = vmatpush1.msra.mxu0 0.0
  %1933 = vmatprep.subr.mxu0 0.0
  %1934 = vmatpush1.msra.mxu0 0.0
  %1935 = vmatprep.subr.mxu0 0.0
  %1936 = vmatpush1.msra.mxu0 0.0
  %1937 = vmatprep.subr.mxu0 0.0
  %1938 = vmatpush1.msra.mxu0 0.0
  %1939 = vmatprep.subr.mxu0 0.0
  %1940 = vmatpush1.msra.mxu0 0.0
  %1941 = vmatprep.subr.mxu0 0.0
  %1942 = vmatpush1.msra.mxu0 0.0
  %1943 = vmatprep.subr.mxu0 0.0
  %1944 = vmatpush1.msra.mxu0 0.0
  %1945 = vmatprep.subr.mxu0 0.0
  %1946 = vmatpush1.msra.mxu0 0.0
  %1947 = vmatprep.subr.mxu0 0.0
  %1948 = vmatpush1.msra.mxu0 0.0
  %1949 = vmatprep.subr.mxu0 0.0
  %1950 = vmatpush1.msra.mxu0 0.0
  %1951 = vmatprep.subr.mxu0 0.0
  %1952 = vmatpush1.msra.mxu0 0.0
  %1953 = vmatprep.subr.mxu0 0.0
  %1954 = vmatpush1.msra.mxu0 0.0
  %1955 = vmatprep.subr.mxu0 0.0
  %1956 = vmatpush1.msra.mxu0 0.0
  %1957 = vmatprep.subr.mxu0 0.0
  %1958 = vmatpush1.msra.mxu0 0.0
  %1959 = vmatprep.subr.mxu0 0.0
  %1960 = vmatpush1.msra.mxu0 %v1830
  %1961 = vmatprep.subr.mxu0 0.0
  %1962 = vmatpush2.msra.mxu0 0.0
  %1963 = vmatprep.subr.mxu0 0.0
  %1964 = vmatpush2.msra.mxu0 0.0
  %1965 = vmatprep.subr.mxu0 0.0
  %1966 = vmatpush2.msra.mxu0 0.0
  %1967 = vmatprep.subr.mxu0 0.0
  %1968 = vmatpush2.msra.mxu0 0.0
  %1969 = vmatprep.subr.mxu0 0.0
  %1970 = vmatpush2.msra.mxu0 0.0
  %1971 = vmatprep.subr.mxu0 0.0
  %1972 = vmatpush2.msra.mxu0 0.0
  %1973 = vmatprep.subr.mxu0 0.0
  %1974 = vmatpush2.msra.mxu0 0.0
  %1975 = vmatprep.subr.mxu0 0.0
  %1976 = vmatpush2.msra.mxu0 0.0
  %1977 = vmatprep.subr.mxu0 0.0
  %1978 = vmatpush2.msra.mxu0 0.0
  %1979 = vmatprep.subr.mxu0 0.0
  %1980 = vmatpush2.msra.mxu0 0.0
  %1981 = vmatprep.subr.mxu0 0.0
  %1982 = vmatpush2.msra.mxu0 0.0
  %1983 = vmatprep.subr.mxu0 0.0
  %1984 = vmatpush2.msra.mxu0 0.0
  %1985 = vmatprep.subr.mxu0 0.0
  %1986 = vmatpush2.msra.mxu0 0.0
  %1987 = vmatprep.subr.mxu0 0.0
  %1988 = vmatpush2.msra.mxu0 0.0
  %1989 = vmatprep.subr.mxu0 0.0
  %1990 = vmatpush2.msra.mxu0 0.0
  %1991 = vmatprep.subr.mxu0 0.0
  %1992 = vmatpush2.msra.mxu0 0.0
  %1993 = vmatprep.mubr.f32.mxu0 0.0
  %1994 = vmatmul.mubr.f32.gmra.mxu0 %v1927
  %v1995 = vpop.f32.mrf.mxu0
  %v1996 = vadd.f32 0.0, %v1995
  %v1997 = vpop.f32.mrf.mxu0
  %1998 = vdwg.mxu0
  %1999 = vrot.lane.b32.xlu0 %v1654, 112
  %v2000 = vpop.permute.xlu0 %1999
  %2001 = vrot.lane.b32.xlu0 %v1742, 112
  %v2002 = vpop.permute.xlu0 %2001
  %v2003 = vsel %vm491, %v2000, 0
  %v2005 = vsel %vm491, %v2002, 0
  %2007 = vmatprep.subr.mxu0 0.0
  %2008 = vmatpush1.xpose.msra.mxu0 0.0
  %2009 = vmatprep.subr.mxu0 0.0
  %2010 = vmatpush1.xpose.msra.mxu0 0.0
  %2011 = vmatprep.subr.mxu0 0.0
  %2012 = vmatpush1.xpose.msra.mxu0 0.0
  %2013 = vmatprep.subr.mxu0 0.0
  %2014 = vmatpush1.xpose.msra.mxu0 0.0
  %2015 = vmatprep.subr.mxu0 0.0
  %2016 = vmatpush1.xpose.msra.mxu0 0.0
  %2017 = vmatprep.subr.mxu0 0.0
  %2018 = vmatpush1.xpose.msra.mxu0 0.0
  %2019 = vmatprep.subr.mxu0 0.0
  %2020 = vmatpush1.xpose.msra.mxu0 0.0
  %2021 = vmatprep.subr.mxu0 0.0
  %2022 = vmatpush1.xpose.msra.mxu0 0.0
  %2023 = vmatprep.subr.mxu0 0.0
  %2024 = vmatpush1.xpose.msra.mxu0 0.0
  %2025 = vmatprep.subr.mxu0 0.0
  %2026 = vmatpush1.xpose.msra.mxu0 0.0
  %2027 = vmatprep.subr.mxu0 0.0
  %2028 = vmatpush1.xpose.msra.mxu0 0.0
  %2029 = vmatprep.subr.mxu0 0.0
  %2030 = vmatpush1.xpose.msra.mxu0 0.0
  %2031 = vmatprep.subr.mxu0 0.0
  %2032 = vmatpush1.xpose.msra.mxu0 0.0
  %2033 = vmatprep.subr.mxu0 0.0
  %2034 = vmatpush1.xpose.msra.mxu0 0.0
  %2035 = vmatprep.subr.mxu0 0.0
  %2036 = vmatpush1.xpose.msra.mxu0 0.0
  %2037 = vmatprep.subr.mxu0 0.0
  %2038 = vmatpush1.xpose.msra.mxu0 %v2005
  %2039 = vmatprep.subr.mxu0 0.0
  %2040 = vmatpush2.xpose.msra.mxu0 0.0
  %2041 = vmatprep.subr.mxu0 0.0
  %2042 = vmatpush2.xpose.msra.mxu0 0.0
  %2043 = vmatprep.subr.mxu0 0.0
  %2044 = vmatpush2.xpose.msra.mxu0 0.0
  %2045 = vmatprep.subr.mxu0 0.0
  %2046 = vmatpush2.xpose.msra.mxu0 0.0
  %2047 = vmatprep.subr.mxu0 0.0
  %2048 = vmatpush2.xpose.msra.mxu0 0.0
  %2049 = vmatprep.subr.mxu0 0.0
  %2050 = vmatpush2.xpose.msra.mxu0 0.0
  %2051 = vmatprep.subr.mxu0 0.0
  %2052 = vmatpush2.xpose.msra.mxu0 0.0
  %2053 = vmatprep.subr.mxu0 0.0
  %2054 = vmatpush2.xpose.msra.mxu0 0.0
  %2055 = vmatprep.subr.mxu0 0.0
  %2056 = vmatpush2.xpose.msra.mxu0 0.0
  %2057 = vmatprep.subr.mxu0 0.0
  %2058 = vmatpush2.xpose.msra.mxu0 0.0
  %2059 = vmatprep.subr.mxu0 0.0
  %2060 = vmatpush2.xpose.msra.mxu0 0.0
  %2061 = vmatprep.subr.mxu0 0.0
  %2062 = vmatpush2.xpose.msra.mxu0 0.0
  %2063 = vmatprep.subr.mxu0 0.0
  %2064 = vmatpush2.xpose.msra.mxu0 0.0
  %2065 = vmatprep.subr.mxu0 0.0
  %2066 = vmatpush2.xpose.msra.mxu0 0.0
  %2067 = vmatprep.subr.mxu0 0.0
  %2068 = vmatpush2.xpose.msra.mxu0 0.0
  %2069 = vmatprep.subr.mxu0 0.0
  %2070 = vmatpush2.xpose.msra.mxu0 0.0
  %2071 = vmatprep.mubr.f32.mxu0 0.0
  %2072 = vmatmul.mubr.f32.gmra.mxu0 %v2003
  %v2073 = vpop.f32.mrf.mxu0
  %v2074 = vadd.f32 0.0, %v2073
  %v2075 = vpop.f32.mrf.mxu0
  %2076 = vdwg.mxu0
  %v2077 = vmul.f32 %v2074, 0.25
  %v2078 = vsel %vm569, %v2077, -inf
  %2079 = vmax.xlane.f32.xlu0 %v2078
  %v2080 = vpop.xlane.xlu0 %2079
  %v2081 = vsub.f32 %v2077, %v2080
  %v2082 = vmul.f32 %v2081, 1.442695
  %v2083 = vpow.pop %v2082
  %v2084 = vsel %vm569, %v2083, 0.0
  %2085 = vadd.xlane.f32.xlu0 %v2084
  %v2086 = vpop.xlane.xlu0 %2085
  %v2087 = vrcp.pop %v2086
  %v2088 = vmul.f32 %v2083, %v2087
  %2090 = vrot.lane.b32.xlu0 %v1830, 112
  %v2091 = vpop.permute.xlu0 %2090
  %v2094 = vsel %vm569, %v2088, 0
  %2096 = vmatprep.subr.mxu0 0.0
  %2097 = vmatpush1.msra.mxu0 0.0
  %2098 = vmatprep.subr.mxu0 0.0
  %2099 = vmatpush1.msra.mxu0 0.0
  %2100 = vmatprep.subr.mxu0 0.0
  %2101 = vmatpush1.msra.mxu0 0.0
  %2102 = vmatprep.subr.mxu0 0.0
  %2103 = vmatpush1.msra.mxu0 0.0
  %2104 = vmatprep.subr.mxu0 0.0
  %2105 = vmatpush1.msra.mxu0 0.0
  %2106 = vmatprep.subr.mxu0 0.0
  %2107 = vmatpush1.msra.mxu0 0.0
  %2108 = vmatprep.subr.mxu0 0.0
  %2109 = vmatpush1.msra.mxu0 0.0
  %2110 = vmatprep.subr.mxu0 0.0
  %2111 = vmatpush1.msra.mxu0 0.0
  %2112 = vmatprep.subr.mxu0 0.0
  %2113 = vmatpush1.msra.mxu0 0.0
  %2114 = vmatprep.subr.mxu0 0.0
  %2115 = vmatpush1.msra.mxu0 0.0
  %2116 = vmatprep.subr.mxu0 0.0
  %2117 = vmatpush1.msra.mxu0 0.0
  %2118 = vmatprep.subr.mxu0 0.0
  %2119 = vmatpush1.msra.mxu0 0.0
  %2120 = vmatprep.subr.mxu0 0.0
  %2121 = vmatpush1.msra.mxu0 0.0
  %2122 = vmatprep.subr.mxu0 0.0
  %2123 = vmatpush1.msra.mxu0 0.0
  %2124 = vmatprep.subr.mxu0 0.0
  %2125 = vmatpush1.msra.mxu0 0.0
  %2126 = vmatprep.subr.mxu0 0.0
  %2127 = vmatpush1.msra.mxu0 %v2091
  %2128 = vmatprep.subr.mxu0 0.0
  %2129 = vmatpush2.msra.mxu0 0.0
  %2130 = vmatprep.subr.mxu0 0.0
  %2131 = vmatpush2.msra.mxu0 0.0
  %2132 = vmatprep.subr.mxu0 0.0
  %2133 = vmatpush2.msra.mxu0 0.0
  %2134 = vmatprep.subr.mxu0 0.0
  %2135 = vmatpush2.msra.mxu0 0.0
  %2136 = vmatprep.subr.mxu0 0.0
  %2137 = vmatpush2.msra.mxu0 0.0
  %2138 = vmatprep.subr.mxu0 0.0
  %2139 = vmatpush2.msra.mxu0 0.0
  %2140 = vmatprep.subr.mxu0 0.0
  %2141 = vmatpush2.msra.mxu0 0.0
  %2142 = vmatprep.subr.mxu0 0.0
  %2143 = vmatpush2.msra.mxu0 0.0
  %2144 = vmatprep.subr.mxu0 0.0
  %2145 = vmatpush2.msra.mxu0 0.0
  %2146 = vmatprep.subr.mxu0 0.0
  %2147 = vmatpush2.msra.mxu0 0.0
  %2148 = vmatprep.subr.mxu0 0.0
  %2149 = vmatpush2.msra.mxu0 0.0
  %2150 = vmatprep.subr.mxu0 0.0
  %2151 = vmatpush2.msra.mxu0 0.0
  %2152 = vmatprep.subr.mxu0 0.0
  %2153 = vmatpush2.msra.mxu0 0.0
  %2154 = vmatprep.subr.mxu0 0.0
  %2155 = vmatpush2.msra.mxu0 0.0
  %2156 = vmatprep.subr.mxu0 0.0
  %2157 = vmatpush2.msra.mxu0 0.0
  %2158 = vmatprep.subr.mxu0 0.0
  %2159 = vmatpush2.msra.mxu0 0.0
  %2160 = vmatprep.mubr.f32.mxu0 0.0
  %2161 = vmatmul.mubr.f32.gmra.mxu0 %v2094
  %v2162 = vpop.f32.mrf.mxu0
  %v2163 = vadd.f32 0.0, %v2162
  %v2164 = vpop.f32.mrf.mxu0
  %2165 = vdwg.mxu0
  %2167 = vrot.lane.b32.xlu0 %v2163, 16
  %v2168 = vpop.permute.xlu0 %2167
  %v2170 = vsel %vm491, %v1996, %v2168
  %v2172 = vsel %vm491, %v1659, 0
  %v2175 = vsel %vm491, %v1747, 0
  %2177 = vmatprep.subr.mxu0 0.0
  %2178 = vmatpush1.xpose.msra.mxu0 0.0
  %2179 = vmatprep.subr.mxu0 0.0
  %2180 = vmatpush1.xpose.msra.mxu0 0.0
  %2181 = vmatprep.subr.mxu0 0.0
  %2182 = vmatpush1.xpose.msra.mxu0 0.0
  %2183 = vmatprep.subr.mxu0 0.0
  %2184 = vmatpush1.xpose.msra.mxu0 0.0
  %2185 = vmatprep.subr.mxu0 0.0
  %2186 = vmatpush1.xpose.msra.mxu0 0.0
  %2187 = vmatprep.subr.mxu0 0.0
  %2188 = vmatpush1.xpose.msra.mxu0 0.0
  %2189 = vmatprep.subr.mxu0 0.0
  %2190 = vmatpush1.xpose.msra.mxu0 0.0
  %2191 = vmatprep.subr.mxu0 0.0
  %2192 = vmatpush1.xpose.msra.mxu0 0.0
  %2193 = vmatprep.subr.mxu0 0.0
  %2194 = vmatpush1.xpose.msra.mxu0 0.0
  %2195 = vmatprep.subr.mxu0 0.0
  %2196 = vmatpush1.xpose.msra.mxu0 0.0
  %2197 = vmatprep.subr.mxu0 0.0
  %2198 = vmatpush1.xpose.msra.mxu0 0.0
  %2199 = vmatprep.subr.mxu0 0.0
  %2200 = vmatpush1.xpose.msra.mxu0 0.0
  %2201 = vmatprep.subr.mxu0 0.0
  %2202 = vmatpush1.xpose.msra.mxu0 0.0
  %2203 = vmatprep.subr.mxu0 0.0
  %2204 = vmatpush1.xpose.msra.mxu0 0.0
  %2205 = vmatprep.subr.mxu0 0.0
  %2206 = vmatpush1.xpose.msra.mxu0 0.0
  %2207 = vmatprep.subr.mxu0 0.0
  %2208 = vmatpush1.xpose.msra.mxu0 %v2175
  %2209 = vmatprep.subr.mxu0 0.0
  %2210 = vmatpush2.xpose.msra.mxu0 0.0
  %2211 = vmatprep.subr.mxu0 0.0
  %2212 = vmatpush2.xpose.msra.mxu0 0.0
  %2213 = vmatprep.subr.mxu0 0.0
  %2214 = vmatpush2.xpose.msra.mxu0 0.0
  %2215 = vmatprep.subr.mxu0 0.0
  %2216 = vmatpush2.xpose.msra.mxu0 0.0
  %2217 = vmatprep.subr.mxu0 0.0
  %2218 = vmatpush2.xpose.msra.mxu0 0.0
  %2219 = vmatprep.subr.mxu0 0.0
  %2220 = vmatpush2.xpose.msra.mxu0 0.0
  %2221 = vmatprep.subr.mxu0 0.0
  %2222 = vmatpush2.xpose.msra.mxu0 0.0
  %2223 = vmatprep.subr.mxu0 0.0
  %2224 = vmatpush2.xpose.msra.mxu0 0.0
  %2225 = vmatprep.subr.mxu0 0.0
  %2226 = vmatpush2.xpose.msra.mxu0 0.0
  %2227 = vmatprep.subr.mxu0 0.0
  %2228 = vmatpush2.xpose.msra.mxu0 0.0
  %2229 = vmatprep.subr.mxu0 0.0
  %2230 = vmatpush2.xpose.msra.mxu0 0.0
  %2231 = vmatprep.subr.mxu0 0.0
  %2232 = vmatpush2.xpose.msra.mxu0 0.0
  %2233 = vmatprep.subr.mxu0 0.0
  %2234 = vmatpush2.xpose.msra.mxu0 0.0
  %2235 = vmatprep.subr.mxu0 0.0
  %2236 = vmatpush2.xpose.msra.mxu0 0.0
  %2237 = vmatprep.subr.mxu0 0.0
  %2238 = vmatpush2.xpose.msra.mxu0 0.0
  %2239 = vmatprep.subr.mxu0 0.0
  %2240 = vmatpush2.xpose.msra.mxu0 0.0
  %2241 = vmatprep.mubr.f32.mxu0 0.0
  %2242 = vmatmul.mubr.f32.gmra.mxu0 %v2172
  %v2243 = vpop.f32.mrf.mxu0
  %v2244 = vadd.f32 0.0, %v2243
  %v2245 = vpop.f32.mrf.mxu0
  %2246 = vdwg.mxu0
  %v2247 = vmul.f32 %v2244, 0.25
  %v2248 = vsel %vm569, %v2247, -inf
  %2249 = vmax.xlane.f32.xlu0 %v2248
  %v2250 = vpop.xlane.xlu0 %2249
  %v2251 = vsub.f32 %v2247, %v2250
  %v2252 = vmul.f32 %v2251, 1.442695
  %v2253 = vpow.pop %v2252
  %v2254 = vsel %vm569, %v2253, 0.0
  %2255 = vadd.xlane.f32.xlu0 %v2254
  %v2256 = vpop.xlane.xlu0 %2255
  %v2257 = vrcp.pop %v2256
  %v2258 = vmul.f32 %v2253, %v2257
  %v2260 = vsel %vm569, %v2258, 0
  %2262 = vmatprep.subr.mxu0 0.0
  %2263 = vmatpush1.msra.mxu0 0.0
  %2264 = vmatprep.subr.mxu0 0.0
  %2265 = vmatpush1.msra.mxu0 0.0
  %2266 = vmatprep.subr.mxu0 0.0
  %2267 = vmatpush1.msra.mxu0 0.0
  %2268 = vmatprep.subr.mxu0 0.0
  %2269 = vmatpush1.msra.mxu0 0.0
  %2270 = vmatprep.subr.mxu0 0.0
  %2271 = vmatpush1.msra.mxu0 0.0
  %2272 = vmatprep.subr.mxu0 0.0
  %2273 = vmatpush1.msra.mxu0 0.0
  %2274 = vmatprep.subr.mxu0 0.0
  %2275 = vmatpush1.msra.mxu0 0.0
  %2276 = vmatprep.subr.mxu0 0.0
  %2277 = vmatpush1.msra.mxu0 0.0
  %2278 = vmatprep.subr.mxu0 0.0
  %2279 = vmatpush1.msra.mxu0 0.0
  %2280 = vmatprep.subr.mxu0 0.0
  %2281 = vmatpush1.msra.mxu0 0.0
  %2282 = vmatprep.subr.mxu0 0.0
  %2283 = vmatpush1.msra.mxu0 0.0
  %2284 = vmatprep.subr.mxu0 0.0
  %2285 = vmatpush1.msra.mxu0 0.0
  %2286 = vmatprep.subr.mxu0 0.0
  %2287 = vmatpush1.msra.mxu0 0.0
  %2288 = vmatprep.subr.mxu0 0.0
  %2289 = vmatpush1.msra.mxu0 0.0
  %2290 = vmatprep.subr.mxu0 0.0
  %2291 = vmatpush1.msra.mxu0 0.0
  %2292 = vmatprep.subr.mxu0 0.0
  %2293 = vmatpush1.msra.mxu0 %v1835
  %2294 = vmatprep.subr.mxu0 0.0
  %2295 = vmatpush2.msra.mxu0 0.0
  %2296 = vmatprep.subr.mxu0 0.0
  %2297 = vmatpush2.msra.mxu0 0.0
  %2298 = vmatprep.subr.mxu0 0.0
  %2299 = vmatpush2.msra.mxu0 0.0
  %2300 = vmatprep.subr.mxu0 0.0
  %2301 = vmatpush2.msra.mxu0 0.0
  %2302 = vmatprep.subr.mxu0 0.0
  %2303 = vmatpush2.msra.mxu0 0.0
  %2304 = vmatprep.subr.mxu0 0.0
  %2305 = vmatpush2.msra.mxu0 0.0
  %2306 = vmatprep.subr.mxu0 0.0
  %2307 = vmatpush2.msra.mxu0 0.0
  %2308 = vmatprep.subr.mxu0 0.0
  %2309 = vmatpush2.msra.mxu0 0.0
  %2310 = vmatprep.subr.mxu0 0.0
  %2311 = vmatpush2.msra.mxu0 0.0
  %2312 = vmatprep.subr.mxu0 0.0
  %2313 = vmatpush2.msra.mxu0 0.0
  %2314 = vmatprep.subr.mxu0 0.0
  %2315 = vmatpush2.msra.mxu0 0.0
  %2316 = vmatprep.subr.mxu0 0.0
  %2317 = vmatpush2.msra.mxu0 0.0
  %2318 = vmatprep.subr.mxu0 0.0
  %2319 = vmatpush2.msra.mxu0 0.0
  %2320 = vmatprep.subr.mxu0 0.0
  %2321 = vmatpush2.msra.mxu0 0.0
  %2322 = vmatprep.subr.mxu0 0.0
  %2323 = vmatpush2.msra.mxu0 0.0
  %2324 = vmatprep.subr.mxu0 0.0
  %2325 = vmatpush2.msra.mxu0 0.0
  %2326 = vmatprep.mubr.f32.mxu0 0.0
  %2327 = vmatmul.mubr.f32.gmra.mxu0 %v2260
  %v2328 = vpop.f32.mrf.mxu0
  %v2329 = vadd.f32 0.0, %v2328
  %v2330 = vpop.f32.mrf.mxu0
  %2331 = vdwg.mxu0
  %2332 = vrot.lane.b32.xlu0 %v1659, 112
  %v2333 = vpop.permute.xlu0 %2332
  %2334 = vrot.lane.b32.xlu0 %v1747, 112
  %v2335 = vpop.permute.xlu0 %2334
  %v2336 = vsel %vm491, %v2333, 0
  %v2338 = vsel %vm491, %v2335, 0
  %2340 = vmatprep.subr.mxu0 0.0
  %2341 = vmatpush1.xpose.msra.mxu0 0.0
  %2342 = vmatprep.subr.mxu0 0.0
  %2343 = vmatpush1.xpose.msra.mxu0 0.0
  %2344 = vmatprep.subr.mxu0 0.0
  %2345 = vmatpush1.xpose.msra.mxu0 0.0
  %2346 = vmatprep.subr.mxu0 0.0
  %2347 = vmatpush1.xpose.msra.mxu0 0.0
  %2348 = vmatprep.subr.mxu0 0.0
  %2349 = vmatpush1.xpose.msra.mxu0 0.0
  %2350 = vmatprep.subr.mxu0 0.0
  %2351 = vmatpush1.xpose.msra.mxu0 0.0
  %2352 = vmatprep.subr.mxu0 0.0
  %2353 = vmatpush1.xpose.msra.mxu0 0.0
  %2354 = vmatprep.subr.mxu0 0.0
  %2355 = vmatpush1.xpose.msra.mxu0 0.0
  %2356 = vmatprep.subr.mxu0 0.0
  %2357 = vmatpush1.xpose.msra.mxu0 0.0
  %2358 = vmatprep.subr.mxu0 0.0
  %2359 = vmatpush1.xpose.msra.mxu0 0.0
  %2360 = vmatprep.subr.mxu0 0.0
  %2361 = vmatpush1.xpose.msra.mxu0 0.0
  %2362 = vmatprep.subr.mxu0 0.0
  %2363 = vmatpush1.xpose.msra.mxu0 0.0
  %2364 = vmatprep.subr.mxu0 0.0
  %2365 = vmatpush1.xpose.msra.mxu0 0.0
  %2366 = vmatprep.subr.mxu0 0.0
  %2367 = vmatpush1.xpose.msra.mxu0 0.0
  %2368 = vmatprep.subr.mxu0 0.0
  %2369 = vmatpush1.xpose.msra.mxu0 0.0
  %2370 = vmatprep.subr.mxu0 0.0
  %2371 = vmatpush1.xpose.msra.mxu0 %v2338
  %2372 = vmatprep.subr.mxu0 0.0
  %2373 = vmatpush2.xpose.msra.mxu0 0.0
  %2374 = vmatprep.subr.mxu0 0.0
  %2375 = vmatpush2.xpose.msra.mxu0 0.0
  %2376 = vmatprep.subr.mxu0 0.0
  %2377 = vmatpush2.xpose.msra.mxu0 0.0
  %2378 = vmatprep.subr.mxu0 0.0
  %2379 = vmatpush2.xpose.msra.mxu0 0.0
  %2380 = vmatprep.subr.mxu0 0.0
  %2381 = vmatpush2.xpose.msra.mxu0 0.0
  %2382 = vmatprep.subr.mxu0 0.0
  %2383 = vmatpush2.xpose.msra.mxu0 0.0
  %2384 = vmatprep.subr.mxu0 0.0
  %2385 = vmatpush2.xpose.msra.mxu0 0.0
  %2386 = vmatprep.subr.mxu0 0.0
  %2387 = vmatpush2.xpose.msra.mxu0 0.0
  %2388 = vmatprep.subr.mxu0 0.0
  %2389 = vmatpush2.xpose.msra.mxu0 0.0
  %2390 = vmatprep.subr.mxu0 0.0
  %2391 = vmatpush2.xpose.msra.mxu0 0.0
  %2392 = vmatprep.subr.mxu0 0.0
  %2393 = vmatpush2.xpose.msra.mxu0 0.0
  %2394 = vmatprep.subr.mxu0 0.0
  %2395 = vmatpush2.xpose.msra.mxu0 0.0
  %2396 = vmatprep.subr.mxu0 0.0
  %2397 = vmatpush2.xpose.msra.mxu0 0.0
  %2398 = vmatprep.subr.mxu0 0.0
  %2399 = vmatpush2.xpose.msra.mxu0 0.0
  %2400 = vmatprep.subr.mxu0 0.0
  %2401 = vmatpush2.xpose.msra.mxu0 0.0
  %2402 = vmatprep.subr.mxu0 0.0
  %2403 = vmatpush2.xpose.msra.mxu0 0.0
  %2404 = vmatprep.mubr.f32.mxu0 0.0
  %2405 = vmatmul.mubr.f32.gmra.mxu0 %v2336
  %v2406 = vpop.f32.mrf.mxu0
  %v2407 = vadd.f32 0.0, %v2406
  %v2408 = vpop.f32.mrf.mxu0
  %2409 = vdwg.mxu0
  %v2410 = vmul.f32 %v2407, 0.25
  %v2411 = vsel %vm569, %v2410, -inf
  %2412 = vmax.xlane.f32.xlu0 %v2411
  %v2413 = vpop.xlane.xlu0 %2412
  %v2414 = vsub.f32 %v2410, %v2413
  %v2415 = vmul.f32 %v2414, 1.442695
  %v2416 = vpow.pop %v2415
  %v2417 = vsel %vm569, %v2416, 0.0
  %2418 = vadd.xlane.f32.xlu0 %v2417
  %v2419 = vpop.xlane.xlu0 %2418
  %v2420 = vrcp.pop %v2419
  %v2421 = vmul.f32 %v2416, %v2420
  %2423 = vrot.lane.b32.xlu0 %v1835, 112
  %v2424 = vpop.permute.xlu0 %2423
  %v2427 = vsel %vm569, %v2421, 0
  %2429 = vmatprep.subr.mxu0 0.0
  %2430 = vmatpush1.msra.mxu0 0.0
  %2431 = vmatprep.subr.mxu0 0.0
  %2432 = vmatpush1.msra.mxu0 0.0
  %2433 = vmatprep.subr.mxu0 0.0
  %2434 = vmatpush1.msra.mxu0 0.0
  %2435 = vmatprep.subr.mxu0 0.0
  %2436 = vmatpush1.msra.mxu0 0.0
  %2437 = vmatprep.subr.mxu0 0.0
  %2438 = vmatpush1.msra.mxu0 0.0
  %2439 = vmatprep.subr.mxu0 0.0
  %2440 = vmatpush1.msra.mxu0 0.0
  %2441 = vmatprep.subr.mxu0 0.0
  %2442 = vmatpush1.msra.mxu0 0.0
  %2443 = vmatprep.subr.mxu0 0.0
  %2444 = vmatpush1.msra.mxu0 0.0
  %2445 = vmatprep.subr.mxu0 0.0
  %2446 = vmatpush1.msra.mxu0 0.0
  %2447 = vmatprep.subr.mxu0 0.0
  %2448 = vmatpush1.msra.mxu0 0.0
  %2449 = vmatprep.subr.mxu0 0.0
  %2450 = vmatpush1.msra.mxu0 0.0
  %2451 = vmatprep.subr.mxu0 0.0
  %2452 = vmatpush1.msra.mxu0 0.0
  %2453 = vmatprep.subr.mxu0 0.0
  %2454 = vmatpush1.msra.mxu0 0.0
  %2455 = vmatprep.subr.mxu0 0.0
  %2456 = vmatpush1.msra.mxu0 0.0
  %2457 = vmatprep.subr.mxu0 0.0
  %2458 = vmatpush1.msra.mxu0 0.0
  %2459 = vmatprep.subr.mxu0 0.0
  %2460 = vmatpush1.msra.mxu0 %v2424
  %2461 = vmatprep.subr.mxu0 0.0
  %2462 = vmatpush2.msra.mxu0 0.0
  %2463 = vmatprep.subr.mxu0 0.0
  %2464 = vmatpush2.msra.mxu0 0.0
  %2465 = vmatprep.subr.mxu0 0.0
  %2466 = vmatpush2.msra.mxu0 0.0
  %2467 = vmatprep.subr.mxu0 0.0
  %2468 = vmatpush2.msra.mxu0 0.0
  %2469 = vmatprep.subr.mxu0 0.0
  %2470 = vmatpush2.msra.mxu0 0.0
  %2471 = vmatprep.subr.mxu0 0.0
  %2472 = vmatpush2.msra.mxu0 0.0
  %2473 = vmatprep.subr.mxu0 0.0
  %2474 = vmatpush2.msra.mxu0 0.0
  %2475 = vmatprep.subr.mxu0 0.0
  %2476 = vmatpush2.msra.mxu0 0.0
  %2477 = vmatprep.subr.mxu0 0.0
  %2478 = vmatpush2.msra.mxu0 0.0
  %2479 = vmatprep.subr.mxu0 0.0
  %2480 = vmatpush2.msra.mxu0 0.0
  %2481 = vmatprep.subr.mxu0 0.0
  %2482 = vmatpush2.msra.mxu0 0.0
  %2483 = vmatprep.subr.mxu0 0.0
  %2484 = vmatpush2.msra.mxu0 0.0
  %2485 = vmatprep.subr.mxu0 0.0
  %2486 = vmatpush2.msra.mxu0 0.0
  %2487 = vmatprep.subr.mxu0 0.0
  %2488 = vmatpush2.msra.mxu0 0.0
  %2489 = vmatprep.subr.mxu0 0.0
  %2490 = vmatpush2.msra.mxu0 0.0
  %2491 = vmatprep.subr.mxu0 0.0
  %2492 = vmatpush2.msra.mxu0 0.0
  %2493 = vmatprep.mubr.f32.mxu0 0.0
  %2494 = vmatmul.mubr.f32.gmra.mxu0 %v2427
  %v2495 = vpop.f32.mrf.mxu0
  %v2496 = vadd.f32 0.0, %v2495
  %v2497 = vpop.f32.mrf.mxu0
  %2498 = vdwg.mxu0
  %2500 = vrot.lane.b32.xlu0 %v2496, 16
  %v2501 = vpop.permute.xlu0 %2500
  %v2503 = vsel %vm491, %v2329, %v2501
  %s2504 = scalar_lea.vmem %s9, 32
  %v2505 = vld [vmem:[%s2504] sm:$0xff]
  %v2506 = vld [vmem:[%s2504 + $0x8] sm:$0xff]
  %v2507 = vld [vmem:[%s2504 + $0x10] sm:$0xff]
  %v2508 = vld [vmem:[%s2504 + $0x18] sm:$0xff]
  %v2510 = vsel %vm169, %v2170, 0
  %v2513 = vsel %vm169, %v2503, 0
  %2515 = vmatprep.subr.mxu0 0.0
  %2516 = vmatpush1.msra.mxu0 0.0
  %2517 = vmatprep.subr.mxu0 0.0
  %2518 = vmatpush1.msra.mxu0 0.0
  %2519 = vmatprep.subr.mxu0 0.0
  %2520 = vmatpush1.msra.mxu0 0.0
  %2521 = vmatprep.subr.mxu0 0.0
  %2522 = vmatpush1.msra.mxu0 0.0
  %2523 = vmatprep.subr.mxu0 0.0
  %2524 = vmatpush1.msra.mxu0 0.0
  %2525 = vmatprep.subr.mxu0 0.0
  %2526 = vmatpush1.msra.mxu0 0.0
  %2527 = vmatprep.subr.mxu0 0.0
  %2528 = vmatpush1.msra.mxu0 0.0
  %2529 = vmatprep.subr.mxu0 0.0
  %2530 = vmatpush1.msra.mxu0 0.0
  %2531 = vmatprep.subr.mxu0 0.0
  %2532 = vmatpush1.msra.mxu0 0.0
  %2533 = vmatprep.subr.mxu0 0.0
  %2534 = vmatpush1.msra.mxu0 0.0
  %2535 = vmatprep.subr.mxu0 0.0
  %2536 = vmatpush1.msra.mxu0 0.0
  %2537 = vmatprep.subr.mxu0 0.0
  %2538 = vmatpush1.msra.mxu0 0.0
  %2539 = vmatprep.subr.mxu0 0.0
  %2540 = vmatpush1.msra.mxu0 %v2508
  %2541 = vmatprep.subr.mxu0 0.0
  %2542 = vmatpush1.msra.mxu0 %v2507
  %2543 = vmatprep.subr.mxu0 0.0
  %2544 = vmatpush1.msra.mxu0 %v2506
  %2545 = vmatprep.subr.mxu0 0.0
  %2546 = vmatpush1.msra.mxu0 %v2505
  %2547 = vmatprep.subr.mxu0 0.0
  %2548 = vmatpush2.msra.mxu0 0.0
  %2549 = vmatprep.subr.mxu0 0.0
  %2550 = vmatpush2.msra.mxu0 0.0
  %2551 = vmatprep.subr.mxu0 0.0
  %2552 = vmatpush2.msra.mxu0 0.0
  %2553 = vmatprep.subr.mxu0 0.0
  %2554 = vmatpush2.msra.mxu0 0.0
  %2555 = vmatprep.subr.mxu0 0.0
  %2556 = vmatpush2.msra.mxu0 0.0
  %2557 = vmatprep.subr.mxu0 0.0
  %2558 = vmatpush2.msra.mxu0 0.0
  %2559 = vmatprep.subr.mxu0 0.0
  %2560 = vmatpush2.msra.mxu0 0.0
  %2561 = vmatprep.subr.mxu0 0.0
  %2562 = vmatpush2.msra.mxu0 0.0
  %2563 = vmatprep.subr.mxu0 0.0
  %2564 = vmatpush2.msra.mxu0 0.0
  %2565 = vmatprep.subr.mxu0 0.0
  %2566 = vmatpush2.msra.mxu0 0.0
  %2567 = vmatprep.subr.mxu0 0.0
  %2568 = vmatpush2.msra.mxu0 0.0
  %2569 = vmatprep.subr.mxu0 0.0
  %2570 = vmatpush2.msra.mxu0 0.0
  %2571 = vmatprep.subr.mxu0 0.0
  %2572 = vmatpush2.msra.mxu0 0.0
  %2573 = vmatprep.subr.mxu0 0.0
  %2574 = vmatpush2.msra.mxu0 0.0
  %2575 = vmatprep.subr.mxu0 0.0
  %2576 = vmatpush2.msra.mxu0 0.0
  %2577 = vmatprep.subr.mxu0 0.0
  %2578 = vmatpush2.msra.mxu0 0.0
  %2579 = vmatprep.mubr.f32.mxu0 0.0
  %2580 = vmatmul.mubr.f32.gmra.mxu0 %v2510
  %v2581 = vpop.f32.mrf.mxu0
  %v2582 = vadd.f32 0.0, %v2581
  %v2583 = vpop.f32.mrf.mxu0
  %2584 = vmatprep.mubr.f32.mxu0 0.0
  %2585 = vmatmul.mubr.f32.gmra.mxu0 %v2513
  %v2586 = vpop.f32.mrf.mxu0
  %v2587 = vadd.f32 0.0, %v2586
  %v2588 = vpop.f32.mrf.mxu0
  %2589 = vdwg.mxu0
  %v2590 = vadd.f32 %v1506, %v2582
  %v2591 = vadd.f32 %v1507, %v2587
  %s2592 = scalar_lea.vmem %s10, 1
  %v2593 = vld [vmem:[%s2592] sm:$0x1]
  %v2595 = vlaneseq
  %v2596 = vshrl.u32 %v2595, 7
  %v2597 = vsub.s32 0, %v2596
  %v2598 = vrot.slane %v2593, %v2597
  %v2600 = vadd.f32 %v2590, %v2598
  %v2601 = vadd.f32 %v2591, %v2598
  %s2602 = scalar_lea.vmem %s17, 1
  %v2603 = vld [vmem:[%s2602] sm:$0x1]
  %s2604 = scalar_lea.vmem %s18, 1
  %v2605 = vld [vmem:[%s2604] sm:$0x1]
  %v2606 = vsel %vm169, %v2600, 0.0
  %2607 = vadd.xlane.f32.xlu0 %v2606
  %v2608 = vpop.xlane.xlu0 %2607
  %v2609 = vsel %vm169, %v2601, 0.0
  %2610 = vadd.xlane.f32.xlu0 %v2609
  %v2611 = vpop.xlane.xlu0 %2610
  %v2612 = vmul.f32 %v2608, %v176
  %v2613 = vmul.f32 %v2611, %v176
  %v2614 = vsub.f32 %v2600, %v2612
  %v2615 = vsub.f32 %v2601, %v2613
  %v2616 = vmul.f32 %v2614, %v2614
  %v2617 = vmul.f32 %v2615, %v2615
  %v2618 = vsel %vm169, %v2616, 0.0
  %2619 = vadd.xlane.f32.xlu0 %v2618
  %v2620 = vpop.xlane.xlu0 %2619
  %v2621 = vsel %vm169, %v2617, 0.0
  %2622 = vadd.xlane.f32.xlu0 %v2621
  %v2623 = vpop.xlane.xlu0 %2622
  %v2624 = vmul.f32 %v2620, 0.032258064
  %v2625 = vmul.f32 %v2623, 0.032258064
  %v2626 = vrsqrt.pop %v2624
  %v2627 = vmul.f32 %v2624, %v2626
  %vm2628 = vcmp.eq.f32.partialorder %v2624, inf
  %v2629 = vsel %vm2628, %v2624, %v2627
  %vm2630 = vcmp.eq.f32.partialorder %v2624, 0.0
  %v2631 = vand.u32 %v2624, 2147483648
  %v2632 = vsel %vm2630, %v2631, %v2629
  %v2633 = vrsqrt.pop %v2625
  %v2634 = vmul.f32 %v2625, %v2633
  %vm2635 = vcmp.eq.f32.partialorder %v2625, inf
  %v2636 = vsel %vm2635, %v2625, %v2634
  %vm2637 = vcmp.eq.f32.partialorder %v2625, 0.0
  %v2638 = vand.u32 %v2625, 2147483648
  %v2639 = vsel %vm2637, %v2638, %v2636
  %v2640 = vadd.f32 %v2632, 1e-06
  %v2641 = vadd.f32 %v2639, 1e-06
  %v2642 = vrcp.pop %v2640
  %v2643 = vrcp.pop %v2641
  %v2645 = vlaneseq
  %v2646 = vshrl.u32 %v2645, 7
  %v2647 = vsub.s32 0, %v2646
  %v2648 = vrot.slane %v2603, %v2647
  %v2650 = vmul.f32 %v2648, %v2614
  %v2651 = vmul.f32 %v2648, %v2615
  %v2652 = vmul.f32 %v2650, %v2642
  %v2653 = vmul.f32 %v2651, %v2643
  %v2655 = vlaneseq
  %v2656 = vshrl.u32 %v2655, 7
  %v2657 = vsub.s32 0, %v2656
  %v2658 = vrot.slane %v2605, %v2657
  %v2660 = vadd.f32 %v2652, %v2658
  %v2661 = vadd.f32 %v2653, %v2658
  %s2662 = scalar_lea.vmem %s11, 32
  %v2663 = vld [vmem:[%s2662] sm:$0xff]
  %v2664 = vld [vmem:[%s2662 + $0x8] sm:$0xff]
  %v2665 = vld [vmem:[%s2662 + $0x10] sm:$0xff]
  %v2666 = vld [vmem:[%s2662 + $0x18] sm:$0xff]
  %s2667 = scalar_lea.vmem %s12, 1
  %v2668 = vld [vmem:[%s2667] sm:$0x1]
  %v2670 = vlaneseq
  %v2671 = vshrl.u32 %v2670, 7
  %v2672 = vsub.s32 0, %v2671
  %v2673 = vrot.slane %v2668, %v2672
  %v2676 = vsel %vm169, %v2660, 0
  %v2679 = vsel %vm169, %v2661, 0
  %2681 = vmatprep.subr.mxu0 0.0
  %2682 = vmatpush1.msra.mxu0 0.0
  %2683 = vmatprep.subr.mxu0 0.0
  %2684 = vmatpush1.msra.mxu0 0.0
  %2685 = vmatprep.subr.mxu0 0.0
  %2686 = vmatpush1.msra.mxu0 0.0
  %2687 = vmatprep.subr.mxu0 0.0
  %2688 = vmatpush1.msra.mxu0 0.0
  %2689 = vmatprep.subr.mxu0 0.0
  %2690 = vmatpush1.msra.mxu0 0.0
  %2691 = vmatprep.subr.mxu0 0.0
  %2692 = vmatpush1.msra.mxu0 0.0
  %2693 = vmatprep.subr.mxu0 0.0
  %2694 = vmatpush1.msra.mxu0 0.0
  %2695 = vmatprep.subr.mxu0 0.0
  %2696 = vmatpush1.msra.mxu0 0.0
  %2697 = vmatprep.subr.mxu0 0.0
  %2698 = vmatpush1.msra.mxu0 0.0
  %2699 = vmatprep.subr.mxu0 0.0
  %2700 = vmatpush1.msra.mxu0 0.0
  %2701 = vmatprep.subr.mxu0 0.0
  %2702 = vmatpush1.msra.mxu0 0.0
  %2703 = vmatprep.subr.mxu0 0.0
  %2704 = vmatpush1.msra.mxu0 0.0
  %2705 = vmatprep.subr.mxu0 0.0
  %2706 = vmatpush1.msra.mxu0 %v2666
  %2707 = vmatprep.subr.mxu0 0.0
  %2708 = vmatpush1.msra.mxu0 %v2665
  %2709 = vmatprep.subr.mxu0 0.0
  %2710 = vmatpush1.msra.mxu0 %v2664
  %2711 = vmatprep.subr.mxu0 0.0
  %2712 = vmatpush1.msra.mxu0 %v2663
  %2713 = vmatprep.subr.mxu0 0.0
  %2714 = vmatpush2.msra.mxu0 0.0
  %2715 = vmatprep.subr.mxu0 0.0
  %2716 = vmatpush2.msra.mxu0 0.0
  %2717 = vmatprep.subr.mxu0 0.0
  %2718 = vmatpush2.msra.mxu0 0.0
  %2719 = vmatprep.subr.mxu0 0.0
  %2720 = vmatpush2.msra.mxu0 0.0
  %2721 = vmatprep.subr.mxu0 0.0
  %2722 = vmatpush2.msra.mxu0 0.0
  %2723 = vmatprep.subr.mxu0 0.0
  %2724 = vmatpush2.msra.mxu0 0.0
  %2725 = vmatprep.subr.mxu0 0.0
  %2726 = vmatpush2.msra.mxu0 0.0
  %2727 = vmatprep.subr.mxu0 0.0
  %2728 = vmatpush2.msra.mxu0 0.0
  %2729 = vmatprep.subr.mxu0 0.0
  %2730 = vmatpush2.msra.mxu0 0.0
  %2731 = vmatprep.subr.mxu0 0.0
  %2732 = vmatpush2.msra.mxu0 0.0
  %2733 = vmatprep.subr.mxu0 0.0
  %2734 = vmatpush2.msra.mxu0 0.0
  %2735 = vmatprep.subr.mxu0 0.0
  %2736 = vmatpush2.msra.mxu0 0.0
  %2737 = vmatprep.subr.mxu0 0.0
  %2738 = vmatpush2.msra.mxu0 0.0
  %2739 = vmatprep.subr.mxu0 0.0
  %2740 = vmatpush2.msra.mxu0 0.0
  %2741 = vmatprep.subr.mxu0 0.0
  %2742 = vmatpush2.msra.mxu0 0.0
  %2743 = vmatprep.subr.mxu0 0.0
  %2744 = vmatpush2.msra.mxu0 0.0
  %2745 = vmatprep.mubr.f32.mxu0 0.0
  %2746 = vmatmul.mubr.f32.gmra.mxu0 %v2676
  %v2747 = vpop.f32.mrf.mxu0
  %v2748 = vadd.f32 %v2673, %v2747
  %v2749 = vpop.f32.mrf.mxu0
  %2750 = vmatprep.mubr.f32.mxu0 0.0
  %2751 = vmatmul.mubr.f32.gmra.mxu0 %v2679
  %v2752 = vpop.f32.mrf.mxu0
  %v2753 = vadd.f32 %v2673, %v2752
  %v2754 = vpop.f32.mrf.mxu0
  %2755 = vdwg.mxu0
  %v2756 = vmax.f32 %v2748, 0.0
  %v2757 = vmax.f32 %v2753, 0.0
  %s2758 = scalar_lea.vmem %s13, 64
  %v2759 = vld [vmem:[%s2758] sm:$0xff]
  %v2760 = vld [vmem:[%s2758 + $0x8] sm:$0xff]
  %v2761 = vld [vmem:[%s2758 + $0x10] sm:$0xff]
  %v2762 = vld [vmem:[%s2758 + $0x18] sm:$0xff]
  %v2763 = vld [vmem:[%s2758 + $0x20] sm:$0xff]
  %v2764 = vld [vmem:[%s2758 + $0x28] sm:$0xff]
  %v2765 = vld [vmem:[%s2758 + $0x30] sm:$0xff]
  %v2766 = vld [vmem:[%s2758 + $0x38] sm:$0xff]
  %v2768 = vsel %vm1415, %v2756, 0
  %v2771 = vsel %vm1415, %v2757, 0
  %2773 = vmatprep.subr.mxu0 0.0
  %2774 = vmatpush1.msra.mxu0 0.0
  %2775 = vmatprep.subr.mxu0 0.0
  %2776 = vmatpush1.msra.mxu0 0.0
  %2777 = vmatprep.subr.mxu0 0.0
  %2778 = vmatpush1.msra.mxu0 0.0
  %2779 = vmatprep.subr.mxu0 0.0
  %2780 = vmatpush1.msra.mxu0 0.0
  %2781 = vmatprep.subr.mxu0 0.0
  %2782 = vmatpush1.msra.mxu0 0.0
  %2783 = vmatprep.subr.mxu0 0.0
  %2784 = vmatpush1.msra.mxu0 0.0
  %2785 = vmatprep.subr.mxu0 0.0
  %2786 = vmatpush1.msra.mxu0 0.0
  %2787 = vmatprep.subr.mxu0 0.0
  %2788 = vmatpush1.msra.mxu0 0.0
  %2789 = vmatprep.subr.mxu0 0.0
  %2790 = vmatpush1.msra.mxu0 %v2766
  %2791 = vmatprep.subr.mxu0 0.0
  %2792 = vmatpush1.msra.mxu0 %v2765
  %2793 = vmatprep.subr.mxu0 0.0
  %2794 = vmatpush1.msra.mxu0 %v2764
  %2795 = vmatprep.subr.mxu0 0.0
  %2796 = vmatpush1.msra.mxu0 %v2763
  %2797 = vmatprep.subr.mxu0 0.0
  %2798 = vmatpush1.msra.mxu0 %v2762
  %2799 = vmatprep.subr.mxu0 0.0
  %2800 = vmatpush1.msra.mxu0 %v2761
  %2801 = vmatprep.subr.mxu0 0.0
  %2802 = vmatpush1.msra.mxu0 %v2760
  %2803 = vmatprep.subr.mxu0 0.0
  %2804 = vmatpush1.msra.mxu0 %v2759
  %2805 = vmatprep.subr.mxu0 0.0
  %2806 = vmatpush2.msra.mxu0 0.0
  %2807 = vmatprep.subr.mxu0 0.0
  %2808 = vmatpush2.msra.mxu0 0.0
  %2809 = vmatprep.subr.mxu0 0.0
  %2810 = vmatpush2.msra.mxu0 0.0
  %2811 = vmatprep.subr.mxu0 0.0
  %2812 = vmatpush2.msra.mxu0 0.0
  %2813 = vmatprep.subr.mxu0 0.0
  %2814 = vmatpush2.msra.mxu0 0.0
  %2815 = vmatprep.subr.mxu0 0.0
  %2816 = vmatpush2.msra.mxu0 0.0
  %2817 = vmatprep.subr.mxu0 0.0
  %2818 = vmatpush2.msra.mxu0 0.0
  %2819 = vmatprep.subr.mxu0 0.0
  %2820 = vmatpush2.msra.mxu0 0.0
  %2821 = vmatprep.subr.mxu0 0.0
  %2822 = vmatpush2.msra.mxu0 0.0
  %2823 = vmatprep.subr.mxu0 0.0
  %2824 = vmatpush2.msra.mxu0 0.0
  %2825 = vmatprep.subr.mxu0 0.0
  %2826 = vmatpush2.msra.mxu0 0.0
  %2827 = vmatprep.subr.mxu0 0.0
  %2828 = vmatpush2.msra.mxu0 0.0
  %2829 = vmatprep.subr.mxu0 0.0
  %2830 = vmatpush2.msra.mxu0 0.0
  %2831 = vmatprep.subr.mxu0 0.0
  %2832 = vmatpush2.msra.mxu0 0.0
  %2833 = vmatprep.subr.mxu0 0.0
  %2834 = vmatpush2.msra.mxu0 0.0
  %2835 = vmatprep.subr.mxu0 0.0
  %2836 = vmatpush2.msra.mxu0 0.0
  %2837 = vmatprep.mubr.f32.mxu0 0.0
  %2838 = vmatmul.mubr.f32.gmra.mxu0 %v2768
  %v2839 = vpop.f32.mrf.mxu0
  %v2840 = vadd.f32 0.0, %v2839
  %v2841 = vpop.f32.mrf.mxu0
  %2842 = vmatprep.mubr.f32.mxu0 0.0
  %2843 = vmatmul.mubr.f32.gmra.mxu0 %v2771
  %v2844 = vpop.f32.mrf.mxu0
  %v2845 = vadd.f32 0.0, %v2844
  %v2846 = vpop.f32.mrf.mxu0
  %2847 = vdwg.mxu0
  %v2848 = vadd.f32 %v2600, %v2840
  %v2849 = vadd.f32 %v2601, %v2845
  %s2850 = scalar_lea.vmem %s14, 1
  %v2851 = vld [vmem:[%s2850] sm:$0x1]
  %v2853 = vlaneseq
  %v2854 = vshrl.u32 %v2853, 7
  %v2855 = vsub.s32 0, %v2854
  %v2856 = vrot.slane %v2851, %v2855
  %v2858 = vadd.f32 %v2848, %v2856
  %v2859 = vadd.f32 %v2849, %v2856
  %2860 = vrot.lane.b32.xlu0 %v743, 8
  %v2861 = vpop.permute.xlu0 %2860
  %2863 = vrot.lane.b32.xlu0 %v913, 16
  %v2864 = vpop.permute.xlu0 %2863
  %2866 = vrot.lane.b32.xlu0 %v1076, 24
  %v2867 = vpop.permute.xlu0 %2866
  %2869 = vrot.lane.b32.xlu0 %v1925, 32
  %v2870 = vpop.permute.xlu0 %2869
  %2872 = vrot.lane.b32.xlu0 %v2088, 40
  %v2873 = vpop.permute.xlu0 %2872
  %2875 = vrot.lane.b32.xlu0 %v2258, 48
  %v2876 = vpop.permute.xlu0 %2875
  %2878 = vrot.lane.b32.xlu0 %v2421, 56
  %v2879 = vpop.permute.xlu0 %2878
  %v2881 = vsel %vm569, %v580, %v2861
  %v2882 = vsel %vm491, %v2881, %v2864
  %vm2883 = vcmask 195584
  %v2884 = vsel %vm2883, %v2882, %v2867
  %v2885 = vsel %vm169, %v2884, %v2870
  %vm2886 = vcmask 326656
  %v2887 = vsel %vm2886, %v2885, %v2873
  %vm2888 = vcmask 392192
  %v2889 = vsel %vm2888, %v2887, %v2876
  %vm2890 = vcmask 457728
  %v2891 = vsel %vm2890, %v2889, %v2879
  %2892 = vst.msk [vmem:[%s22] sm:$0xff] %vm1415, %v2891
  %v2893 = vld [vmem:[%s19] sm:$0x1]
  %v2894 = vld [vmem:[#allocation2] sm:$0x1]
  %2896 = vset.pattern.permute.xlu0 0
  %2897 = vperm.xlu0 %2896, %v2894
  %v2898 = vpop.permute.xlu0 %2897
  %v2900 = vlaneseq
  %v2901 = vshrl.u32 %v2900, 7
  %v2902 = vsub.s32 0, %v2901
  %v2903 = vrot.slane %v2898, %v2902
  %v2905 = vsel %vm169, %v2893, 0
  %v2908 = vsel %vm169, %v2858, 0
  %v2911 = vsel %vm169, %v2859, 0
  %2913 = vmatprep.subr.mxu0 0.0
  %2914 = vmatpush1.xpose.msra.mxu0 0.0
  %2915 = vmatprep.subr.mxu0 0.0
  %2916 = vmatpush1.xpose.msra.mxu0 0.0
  %2917 = vmatprep.subr.mxu0 0.0
  %2918 = vmatpush1.xpose.msra.mxu0 0.0
  %2919 = vmatprep.subr.mxu0 0.0
  %2920 = vmatpush1.xpose.msra.mxu0 0.0
  %2921 = vmatprep.subr.mxu0 0.0
  %2922 = vmatpush1.xpose.msra.mxu0 0.0
  %2923 = vmatprep.subr.mxu0 0.0
  %2924 = vmatpush1.xpose.msra.mxu0 0.0
  %2925 = vmatprep.subr.mxu0 0.0
  %2926 = vmatpush1.xpose.msra.mxu0 0.0
  %2927 = vmatprep.subr.mxu0 0.0
  %2928 = vmatpush1.xpose.msra.mxu0 0.0
  %2929 = vmatprep.subr.mxu0 0.0
  %2930 = vmatpush1.xpose.msra.mxu0 0.0
  %2931 = vmatprep.subr.mxu0 0.0
  %2932 = vmatpush1.xpose.msra.mxu0 0.0
  %2933 = vmatprep.subr.mxu0 0.0
  %2934 = vmatpush1.xpose.msra.mxu0 0.0
  %2935 = vmatprep.subr.mxu0 0.0
  %2936 = vmatpush1.xpose.msra.mxu0 0.0
  %2937 = vmatprep.subr.mxu0 0.0
  %2938 = vmatpush1.xpose.msra.mxu0 0.0
  %2939 = vmatprep.subr.mxu0 0.0
  %2940 = vmatpush1.xpose.msra.mxu0 0.0
  %2941 = vmatprep.subr.mxu0 0.0
  %2942 = vmatpush1.xpose.msra.mxu0 %v2911
  %2943 = vmatprep.subr.mxu0 0.0
  %2944 = vmatpush1.xpose.msra.mxu0 %v2908
  %2945 = vmatprep.subr.mxu0 0.0
  %2946 = vmatpush2.xpose.msra.mxu0 0.0
  %2947 = vmatprep.subr.mxu0 0.0
  %2948 = vmatpush2.xpose.msra.mxu0 0.0
  %2949 = vmatprep.subr.mxu0 0.0
  %2950 = vmatpush2.xpose.msra.mxu0 0.0
  %2951 = vmatprep.subr.mxu0 0.0
  %2952 = vmatpush2.xpose.msra.mxu0 0.0
  %2953 = vmatprep.subr.mxu0 0.0
  %2954 = vmatpush2.xpose.msra.mxu0 0.0
  %2955 = vmatprep.subr.mxu0 0.0
  %2956 = vmatpush2.xpose.msra.mxu0 0.0
  %2957 = vmatprep.subr.mxu0 0.0
  %2958 = vmatpush2.xpose.msra.mxu0 0.0
  %2959 = vmatprep.subr.mxu0 0.0
  %2960 = vmatpush2.xpose.msra.mxu0 0.0
  %2961 = vmatprep.subr.mxu0 0.0
  %2962 = vmatpush2.xpose.msra.mxu0 0.0
  %2963 = vmatprep.subr.mxu0 0.0
  %2964 = vmatpush2.xpose.msra.mxu0 0.0
  %2965 = vmatprep.subr.mxu0 0.0
  %2966 = vmatpush2.xpose.msra.mxu0 0.0
  %2967 = vmatprep.subr.mxu0 0.0
  %2968 = vmatpush2.xpose.msra.mxu0 0.0
  %2969 = vmatprep.subr.mxu0 0.0
  %2970 = vmatpush2.xpose.msra.mxu0 0.0
  %2971 = vmatprep.subr.mxu0 0.0
  %2972 = vmatpush2.xpose.msra.mxu0 0.0
  %2973 = vmatprep.subr.mxu0 0.0
  %2974 = vmatpush2.xpose.msra.mxu0 0.0
  %2975 = vmatprep.subr.mxu0 0.0
  %2976 = vmatpush2.xpose.msra.mxu0 0.0
  %2977 = vmatprep.mubr.f32.mxu0 0.0
  %2978 = vmatmul.mubr.f32.gmra.mxu0 %v2905
  %v2979 = vpop.f32.mrf.mxu0
  %v2980 = vadd.f32 %v2903, %v2979
  %v2981 = vpop.f32.mrf.mxu0
  %2982 = vdwg.mxu0
  %vm2983 = vcmask 122880
  %2984 = vst.msk [vmem:[%s21] sm:$0x1] %vm2983, %v2980
  // Predicated region
  $region86: #{decoder_transformer_forward.1} parent=0 // pred_check
    _
  $region87: #{decoder_transformer_forward.1} parent=0 // pred_check_branch
    %2986 = sbr.rel (0) target = $region89
  $region88: #{decoder_transformer_forward.1} parent=0 // pred_region
    _
  $region89: #{decoder_transformer_forward.1} parent=0 // pred_fallthru
    _
  // Predicated region
  $region90: #{decoder_transformer_forward.1} parent=0 // pred_check
    _
  $region91: #{decoder_transformer_forward.1} parent=0 // pred_check_branch
    %2988 = sbr.rel (0) target = $region93
  $region92: #{decoder_transformer_forward.1} parent=0 // pred_region
    _
  $region93: #{decoder_transformer_forward.1} parent=0 // pred_fallthru
    _
  // Predicated region
  $region94: #{decoder_transformer_forward.1} parent=0 // pred_check
    _
  $region95: #{decoder_transformer_forward.1} parent=0 // pred_check_branch
    %2990 = sbr.rel (0) target = $region97
  $region96: #{decoder_transformer_forward.1} parent=0 // pred_region
    _
  $region97: #{decoder_transformer_forward.1} parent=0 // pred_fallthru
    _
  // Predicated region
  $region98: #{decoder_transformer_forward.1} parent=0 // pred_check
    _
  $region99: #{decoder_transformer_forward.1} parent=0 // pred_check_branch
    %2992 = sbr.rel (0) target = $region101
  $region100: #{decoder_transformer_forward.1} parent=0 // pred_region
    _
  $region101: #{decoder_transformer_forward.1} parent=0 // pred_fallthru
    _

</llo_original>
